<compile_context>
chip_gen: v6e
topology: v6e:2x2x1
jax: 0.10.0
libtpu: 0.0.40
codegen_flags: <defaults>
</compile_context>

<pallas_src>
import math
from functools import partial

import jax
import jax.numpy as jnp
from jax import lax
from jax.experimental import pallas as pl
from jax.experimental.pallas import tpu as pltpu

VMEM = pltpu.MemorySpace.VMEM
LN_EPS = 1e-12
GELU_C = 1.41421  # module's truncated sqrt(2) constant (kept intentionally)


# ----------------------------- in-kernel helpers ----------------------------

def _ln(v, g, b):
    u = jnp.mean(v, axis=-1, keepdims=True)
    s = jnp.mean((v - u) ** 2, axis=-1, keepdims=True)
    return g * ((v - u) * lax.rsqrt(s + LN_EPS)) + b


# ------------------------------- Pallas kernels ------------------------------

def _attn_msg_kernel(xi_ref, kv_ref, wq_ref, bq_ref, wkv_ref, bkv_ref,
                     bones_ref, score_ref, v_ref):
    # q = x_i @ Wq + bq ; [k|v] = (x_j + e) @ Wkv + bkv
    # score (lane-dense [rows, D]) = per-head sum(q*k), broadcast across the
    # head's d_head lanes via a block-diagonal ones matmul.  The ones matrix
    # is pre-scaled by 1/sqrt(d_head).
    D = wq_ref.shape[1]
    q = jnp.dot(xi_ref[...], wq_ref[...],
                preferred_element_type=jnp.float32) + bq_ref[...]
    kv = jnp.dot(kv_ref[...], wkv_ref[...],
                 preferred_element_type=jnp.float32) + bkv_ref[...]
    k = kv[:, :D]
    v = kv[:, D:]
    score_ref[...] = jnp.dot(q * k, bones_ref[...],
                             preferred_element_type=jnp.float32)
    v_ref[...] = v


def _node_update_kernel(agg_ref, x_ref, h_ref,
                        w_ao_ref, b_ao_ref, g1_ref, bt1_ref,
                        wi_ref, bi_ref, wo_ref, bo_ref, g2_ref, bt2_ref,
                        wih_ref, whh_ref, bih_ref, bhh_ref, g3_ref, bt3_ref,
                        h_out_ref, x_out_ref):
    # AttentionOut + Intermediate + GTOut + GRU + LayerNorm, fully fused so the
    # [rows, 4D] FFN activation and intermediate tensors stay in VMEM.
    D = w_ao_ref.shape[1]
    x = x_ref[...]

    # --- AttentionOut: LN(agg @ W_ao + b + x) (dropout = 0) ---
    att = (jnp.dot(agg_ref[...], w_ao_ref[...],
                   preferred_element_type=jnp.float32) + b_ao_ref[...] + x)
    att = _ln(att, g1_ref[...], bt1_ref[...])

    # --- Intermediate (bias-GELU, 4D wide) + GTOut (linear + residual + LN) ---
    y = jnp.dot(att, wi_ref[...], preferred_element_type=jnp.float32) + bi_ref[...]
    y = y * 0.5 * (1.0 + lax.erf(y / GELU_C))          # bias_gelu
    m = (jnp.dot(y, wo_ref[...], preferred_element_type=jnp.float32)
         + bo_ref[...] + att)
    m = _ln(m, g2_ref[...], bt2_ref[...])

    # --- single-step nn.GRU (PyTorch gate order r, z, n) + BertLayerNorm ---
    h = h_ref[...]
    gi = jnp.dot(m, wih_ref[...], preferred_element_type=jnp.float32) + bih_ref[...]
    gh = jnp.dot(h, whh_ref[...], preferred_element_type=jnp.float32) + bhh_ref[...]
    r = jax.nn.sigmoid(gi[:, 0 * D:1 * D] + gh[:, 0 * D:1 * D])
    z = jax.nn.sigmoid(gi[:, 1 * D:2 * D] + gh[:, 1 * D:2 * D])
    n = jnp.tanh(gi[:, 2 * D:3 * D] + r * gh[:, 2 * D:3 * D])
    h_new = (1.0 - z) * n + z * h

    h_out_ref[...] = h_new
    x_out_ref[...] = _ln(h_new, g3_ref[...], bt3_ref[...])


def _linear_kernel(x_ref, w_ref, b_ref, o_ref):
    # prediction head: out = x @ W + b
    o_ref[...] = (jnp.dot(x_ref[...], w_ref[...],
                          preferred_element_type=jnp.float32) + b_ref[...])


# ------------------------------ Pallas wrappers -----------------------------

def _row_spec(bm, cols):
    return pl.BlockSpec((bm, cols), lambda i: (i, 0))


def _full_spec(shape):
    return pl.BlockSpec(shape, lambda i: (0, 0))


def _row_block(rows, block_rows):
    # full rows when small, otherwise an 8-aligned tile (block_rows % 8 == 0)
    return rows if rows <= block_rows else block_rows


_PARALLEL = pltpu.CompilerParams(dimension_semantics=("parallel",))


def attn_message(x_i, kv_in, wq_t, bq, wkv_t, bkv, bones, *, block_rows=512):
    E, D = x_i.shape
    bm = _row_block(E, block_rows)
    score, v = pl.pallas_call(
        _attn_msg_kernel,
        grid=(pl.cdiv(E, bm),),
        in_specs=[_row_spec(bm, D), _row_spec(bm, D),
                  _full_spec((D, D)), _full_spec((1, D)),
                  _full_spec((D, 2 * D)), _full_spec((1, 2 * D)),
                  _full_spec((D, D))],
        out_specs=(_row_spec(bm, D), _row_spec(bm, D)),
        out_shape=(jax.ShapeDtypeStruct((E, D), jnp.float32),
                   jax.ShapeDtypeStruct((E, D), jnp.float32)),
        compiler_params=_PARALLEL,
    )(x_i, kv_in, wq_t, bq, wkv_t, bkv, bones)
    return score, v


def node_update(agg, x, h, lp, *, block_rows=256):
    N, D = x.shape
    bm = _row_block(N, block_rows)
    h_new, x_new = pl.pallas_call(
        _node_update_kernel,
        grid=(pl.cdiv(N, bm),),
        in_specs=[_row_spec(bm, D), _row_spec(bm, D), _row_spec(bm, D),
                  _full_spec((D, D)), _full_spec((1, D)),
                  _full_spec((1, D)), _full_spec((1, D)),
                  _full_spec((D, 4 * D)), _full_spec((1, 4 * D)),
                  _full_spec((4 * D, D)), _full_spec((1, D)),
                  _full_spec((1, D)), _full_spec((1, D)),
                  _full_spec((D, 3 * D)), _full_spec((D, 3 * D)),
                  _full_spec((1, 3 * D)), _full_spec((1, 3 * D)),
                  _full_spec((1, D)), _full_spec((1, D))],
        out_specs=(_row_spec(bm, D), _row_spec(bm, D)),
        out_shape=(jax.ShapeDtypeStruct((N, D), jnp.float32),
                   jax.ShapeDtypeStruct((N, D), jnp.float32)),
        compiler_params=_PARALLEL,
    )(agg, x, h,
      lp['w_ao_t'], lp['b_ao'], lp['ln1_g'], lp['ln1_b'],
      lp['w_int_t'], lp['b_int'], lp['w_out_t'], lp['b_out'],
      lp['ln2_g'], lp['ln2_b'],
      lp['w_ih_t'], lp['w_hh_t'], lp['b_ih'], lp['b_hh'],
      lp['ln3_g'], lp['ln3_b'])
    return h_new, x_new


def linear(x, w_t, b):
    M, O = x.shape[0], w_t.shape[1]
    return pl.pallas_call(
        _linear_kernel,
        out_shape=jax.ShapeDtypeStruct((M, O), jnp.float32),
        in_specs=[pl.BlockSpec(memory_space=VMEM)] * 3,
        out_specs=pl.BlockSpec(memory_space=VMEM),
    )(x, w_t, b)


# --------------------------------- glue -------------------------------------
# Data-dependent gather/scatter (embedding lookups, per-edge gathers, segment
# softmax / segment_sum aggregation, pooling) stays in plain JAX.

def segment_softmax(score, index, num_segments):
    # torch_geometric.utils.softmax semantics on the lane-dense [E, D]
    # per-head broadcast score slab (columns within a head are equal).
    amax = jax.ops.segment_max(score, index, num_segments=num_segments)
    amax = jnp.where(jnp.isfinite(amax), amax, 0.0)
    ex = jnp.exp(score - amax[index])
    denom = jax.ops.segment_sum(ex, index, num_segments=num_segments)
    return ex / (denom[index] + 1e-16)


def gt_layer_forward(lp, x, src, dst, edge_attr, bones, num_message_passing):
    N = x.shape[0]
    h = x  # raw GRU hidden state
    for _ in range(num_message_passing):
        # --- GraphAttentionConv message (flow source->target, aggr='add') ---
        x_i = x[dst]                    # target-node features
        kv_in = x[src] + edge_attr      # x_j + pseudo
        score, v = attn_message(x_i, kv_in, lp['wq_t'], lp['bq'],
                                lp['wkv_t'], lp['bkv'], bones)
        alpha = segment_softmax(score, dst, N)                        # [E, D]
        agg = jax.ops.segment_sum(alpha * v, dst, num_segments=N)     # scatter-add
        # --- AttentionOut + Intermediate + GTOut + GRU + LayerNorm (fused) ---
        h, x = node_update(agg, x, h, lp)
    return x


def molgt_graphpred_forward(params, x_idx, edge_index, edge_attr_idx, batch,
                            node_seg, edge_seg, *, heads, num_message_passing,
                            num_graphs):
    D = params['emb_x'].shape[1]
    d_head = D // heads
    # embeddings (gather + sum over categorical feature columns)
    x = (params['emb_x'][x_idx].sum(axis=1)
         + params['emb_xseg'][node_seg]).astype(jnp.float32)
    e = (params['emb_e'][edge_attr_idx].sum(axis=1)
         + params['emb_eseg'][edge_seg]).astype(jnp.float32)

    src, dst = edge_index[0], edge_index[1]
    # block-diagonal ones matrix, pre-scaled by 1/sqrt(d_head): broadcasts the
    # per-head score across that head's d_head lanes.  Built once (constant
    # under jit), shared by all layers / iterations.
    bones = (jnp.kron(jnp.eye(heads, dtype=jnp.float32),
                      jnp.ones((d_head, d_head), jnp.float32))
             * (1.0 / math.sqrt(d_head)))                              # [D, D]

    for lp in params['layers']:
        x = gt_layer_forward(lp, x, src, dst, e, bones, num_message_passing)

    # global_mean_pool via sparse segment_sum (no dense one-hot matmul)
    N = x.shape[0]
    counts = jax.ops.segment_sum(jnp.ones((N,), jnp.float32), batch,
                                 num_segments=num_graphs)
    pooled = (jax.ops.segment_sum(x, batch, num_segments=num_graphs)
              / jnp.maximum(counts, 1.0)[:, None])
    return linear(pooled, params['w_pred_t'], params['b_pred'])


# ------------------------------ parameters ----------------------------------

def init_params(key, num_layer, emb_dim, num_tasks):
    """Random params in the PyTorch layout ([out, in] weights, 1-D biases)."""
    D = emb_dim
    counter = [0]

    def rand(shape, scale=0.1):
        counter[0] += 1
        return (jax.random.normal(jax.random.fold_in(key, counter[0]),
                                  shape, jnp.float32) * scale)

    params = dict(
        emb_x=rand((178, D)),
        emb_xseg=rand((3, D)),       # seg_size = 3
        emb_e=rand((18, D)),
        emb_eseg=rand((3, D)),
        w_pred=rand((num_tasks, D)),
        b_pred=rand((num_tasks,)),
        layers=[],
    )
    for _ in range(num_layer):
        params['layers'].append(dict(
            wq=rand((D, D)), bq=rand((D,)),
            wk=rand((D, D)), bk=rand((D,)),
            wv=rand((D, D)), bv=rand((D,)),
            w_ao=rand((D, D)), b_ao=rand((D,)),
            ln1_g=jnp.ones((D,), jnp.float32), ln1_b=jnp.zeros((D,), jnp.float32),
            w_int=rand((4 * D, D)), b_int=rand((4 * D,)),
            w_out=rand((D, 4 * D)), b_out=rand((D,)),
            ln2_g=jnp.ones((D,), jnp.float32), ln2_b=jnp.zeros((D,), jnp.float32),
            w_ih=rand((3 * D, D)), w_hh=rand((3 * D, D)),
            b_ih=rand((3 * D,)), b_hh=rand((3 * D,)),
            ln3_g=jnp.ones((D,), jnp.float32), ln3_b=jnp.zeros((D,), jnp.float32),
        ))
    return params


def prepare_params(p):
    """One-time layout prep: transpose weights to [in, out], concatenate
    K|V and GRU gate matrices, reshape biases/LN params to [1, O]."""
    D = p['emb_x'].shape[1]
    layers = []
    for lp in p['layers']:
        layers.append(dict(
            wq_t=lp['wq'].T, bq=lp['bq'].reshape(1, D),
            wkv_t=jnp.concatenate([lp['wk'].T, lp['wv'].T], axis=1),   # [D, 2D]
            bkv=jnp.concatenate([lp['bk'], lp['bv']]).reshape(1, 2 * D),
            w_ao_t=lp['w_ao'].T, b_ao=lp['b_ao'].reshape(1, D),
            ln1_g=lp['ln1_g'].reshape(1, D), ln1_b=lp['ln1_b'].reshape(1, D),
            w_int_t=lp['w_int'].T, b_int=lp['b_int'].reshape(1, 4 * D),
            w_out_t=lp['w_out'].T, b_out=lp['b_out'].reshape(1, D),
            ln2_g=lp['ln2_g'].reshape(1, D), ln2_b=lp['ln2_b'].reshape(1, D),
            w_ih_t=lp['w_ih'].T, w_hh_t=lp['w_hh'].T,                  # [D, 3D]
            b_ih=lp['b_ih'].reshape(1, 3 * D), b_hh=lp['b_hh'].reshape(1, 3 * D),
            ln3_g=lp['ln3_g'].reshape(1, D), ln3_b=lp['ln3_b'].reshape(1, D),
        ))
    return dict(
        emb_x=p['emb_x'], emb_xseg=p['emb_xseg'],
        emb_e=p['emb_e'], emb_eseg=p['emb_eseg'],
        w_pred_t=p['w_pred'].T, b_pred=p['b_pred'].reshape(1, -1),
        layers=layers,
    )


# --------------------------------- main --------------------------------------

if __name__ == "__main__":
    NUM_LAYER = 2
    EMB_DIM = 32
    HEADS = 4
    NUM_MESSAGE_PASSING = 2
    NUM_TASKS = 3
    N_NODES, N_EDGES, N_GRAPHS = 16, 32, 2
    FX, FE = 2, 2  # categorical feature columns per node / edge

    root = jax.random.PRNGKey(0)
    kx, ke, kns, kes, ksrc, kdst, kp = jax.random.split(root, 7)
    x_idx = jax.random.randint(kx, (N_NODES, FX), 0, 178)
    edge_attr_idx = jax.random.randint(ke, (N_EDGES, FE), 0, 18)
    node_seg = jax.random.randint(kns, (N_NODES,), 0, 3)
    edge_seg = jax.random.randint(kes, (N_EDGES,), 0, 3)
    src = jax.random.randint(ksrc, (N_EDGES,), 0, N_NODES)
    dst = jax.random.randint(kdst, (N_EDGES,), 0, N_NODES)
    edge_index = jnp.stack([src, dst])
    batch = jnp.repeat(jnp.arange(N_GRAPHS, dtype=jnp.int32),
                       N_NODES // N_GRAPHS)

    params = prepare_params(init_params(kp, NUM_LAYER, EMB_DIM, NUM_TASKS))

    fwd = jax.jit(partial(molgt_graphpred_forward,
                          heads=HEADS,
                          num_message_passing=NUM_MESSAGE_PASSING,
                          num_graphs=N_GRAPHS))
    out = fwd(params, x_idx, edge_index, edge_attr_idx, batch,
              node_seg, edge_seg)
    jax.block_until_ready(out)
    assert out.shape == (N_GRAPHS, NUM_TASKS)
    print("KERNEL_OK")
</pallas_src>

<mosaic_0001>
module attributes {stable_mosaic.version = 11 : i64} {
  func.func private @main(%arg0: i32) attributes {dimension_semantics = [#tpu.dimension_semantics<core_parallel>], iteration_bounds = array<i64: 2>, tpu.core_type = #tpu.core_type<sc_scalar_subcore>, window_params = []} {
    return
  }
}

module attributes {stable_mosaic.version = 11 : i64} {
  func.func private @main(%arg0: i32) attributes {dimension_semantics = [#tpu.dimension_semantics<core_parallel>], iteration_bounds = array<i64: 2>, tpu.core_type = #tpu.core_type<sc_scalar_subcore>, window_params = []} {
    return
  }
}

module attributes {stable_mosaic.version = 11 : i64} {
  func.func @_attn_msg_kernel(%arg0: i32, %arg1: memref<32x32xf32, #tpu.memory_space<vmem>>, %arg2: memref<32x32xf32, #tpu.memory_space<vmem>>, %arg3: memref<32x32xf32, #tpu.memory_space<vmem>>, %arg4: memref<1x32xf32, #tpu.memory_space<vmem>>, %arg5: memref<32x64xf32, #tpu.memory_space<vmem>>, %arg6: memref<1x64xf32, #tpu.memory_space<vmem>>, %arg7: memref<32x32xf32, #tpu.memory_space<vmem>>, %arg8: memref<32x32xf32, #tpu.memory_space<vmem>>, %arg9: memref<32x32xf32, #tpu.memory_space<vmem>>) attributes {dimension_semantics = [#tpu.dimension_semantics<parallel>], iteration_bounds = array<i64: 1>, scalar_prefetch = 0 : i64, scratch_operands = 0 : i64, tpu.core_type = #tpu.core_type<tc>, window_params = [{transform_indices = @transform_0, window_bounds = array<i64: 32, 32>}, {transform_indices = @transform_1, window_bounds = array<i64: 32, 32>}, {pipeline_mode = #tpu.pipeline_mode<synchronous>, transform_indices = @transform_2, window_bounds = array<i64: 32, 32>}, {pipeline_mode = #tpu.pipeline_mode<synchronous>, transform_indices = @transform_3, window_bounds = array<i64: 1, 32>}, {pipeline_mode = #tpu.pipeline_mode<synchronous>, transform_indices = @transform_4, window_bounds = array<i64: 32, 64>}, {pipeline_mode = #tpu.pipeline_mode<synchronous>, transform_indices = @transform_5, window_bounds = array<i64: 1, 64>}, {pipeline_mode = #tpu.pipeline_mode<synchronous>, transform_indices = @transform_6, window_bounds = array<i64: 32, 32>}, {transform_indices = @transform_7, window_bounds = array<i64: 32, 32>}, {transform_indices = @transform_8, window_bounds = array<i64: 32, 32>}]} {
    %c0 = arith.constant 0 : index
    %c0_0 = arith.constant 0 : index
    %0 = vector.load %arg1[%c0, %c0_0] : memref<32x32xf32, #tpu.memory_space<vmem>>, vector<32x32xf32>
    %c0_1 = arith.constant 0 : index
    %c0_2 = arith.constant 0 : index
    %1 = vector.load %arg3[%c0_1, %c0_2] : memref<32x32xf32, #tpu.memory_space<vmem>>, vector<32x32xf32>
    %cst = arith.constant dense<0.000000e+00> : vector<32x32xf32>
    %2 = tpu.matmul %0, %1, %cst {dimension_numbers = #tpu.dot_dimension_numbers<[1], [0], [0], [1], [0, 0, 1, 1], [], []>} : vector<32x32xf32>, vector<32x32xf32>, vector<32x32xf32> -> vector<32x32xf32>
    %c0_3 = arith.constant 0 : index
    %c0_4 = arith.constant 0 : index
    %3 = vector.load %arg4[%c0_3, %c0_4] : memref<1x32xf32, #tpu.memory_space<vmem>>, vector<1x32xf32>
    %4 = vector.broadcast %3 : vector<1x32xf32> to vector<32x32xf32>
    %5 = arith.addf %2, %4 : vector<32x32xf32>
    %c0_5 = arith.constant 0 : index
    %c0_6 = arith.constant 0 : index
    %6 = vector.load %arg2[%c0_5, %c0_6] : memref<32x32xf32, #tpu.memory_space<vmem>>, vector<32x32xf32>
    %c0_7 = arith.constant 0 : index
    %c0_8 = arith.constant 0 : index
    %7 = vector.load %arg5[%c0_7, %c0_8] : memref<32x64xf32, #tpu.memory_space<vmem>>, vector<32x64xf32>
    %cst_9 = arith.constant dense<0.000000e+00> : vector<32x64xf32>
    %8 = tpu.matmul %6, %7, %cst_9 {dimension_numbers = #tpu.dot_dimension_numbers<[1], [0], [0], [1], [0, 0, 1, 1], [], []>} : vector<32x32xf32>, vector<32x64xf32>, vector<32x64xf32> -> vector<32x64xf32>
    %c0_10 = arith.constant 0 : index
    %c0_11 = arith.constant 0 : index
    %9 = vector.load %arg6[%c0_10, %c0_11] : memref<1x64xf32, #tpu.memory_space<vmem>>, vector<1x64xf32>
    %10 = vector.broadcast %9 : vector<1x64xf32> to vector<32x64xf32>
    %11 = arith.addf %8, %10 : vector<32x64xf32>
    %12 = vector.extract_strided_slice %11 {offsets = [0, 0], sizes = [32, 32], strides = [1, 1]} : vector<32x64xf32> to vector<32x32xf32>
    %13 = vector.extract_strided_slice %11 {offsets = [0, 32], sizes = [32, 32], strides = [1, 1]} : vector<32x64xf32> to vector<32x32xf32>
    %14 = arith.mulf %5, %12 : vector<32x32xf32>
    %c0_12 = arith.constant 0 : index
    %c0_13 = arith.constant 0 : index
    %15 = vector.load %arg7[%c0_12, %c0_13] : memref<32x32xf32, #tpu.memory_space<vmem>>, vector<32x32xf32>
    %cst_14 = arith.constant dense<0.000000e+00> : vector<32x32xf32>
    %16 = tpu.matmul %14, %15, %cst_14 {dimension_numbers = #tpu.dot_dimension_numbers<[1], [0], [0], [1], [0, 0, 1, 1], [], []>} : vector<32x32xf32>, vector<32x32xf32>, vector<32x32xf32> -> vector<32x32xf32>
    %c0_15 = arith.constant 0 : index
    %c0_16 = arith.constant 0 : index
    %17 = vector.load %arg8[%c0_15, %c0_16] : memref<32x32xf32, #tpu.memory_space<vmem>>, vector<32x32xf32>
    tpu.vector_store %arg8[%c0_15, %c0_16], %16 {strides = array<i32>} : memref<32x32xf32, #tpu.memory_space<vmem>>, vector<32x32xf32>,
    %c0_17 = arith.constant 0 : index
    %c0_18 = arith.constant 0 : index
    %18 = vector.load %arg9[%c0_17, %c0_18] : memref<32x32xf32, #tpu.memory_space<vmem>>, vector<32x32xf32>
    tpu.vector_store %arg9[%c0_17, %c0_18], %13 {strides = array<i32>} : memref<32x32xf32, #tpu.memory_space<vmem>>, vector<32x32xf32>,
    return
  }
  func.func @transform_0(%arg0: i32) -> (i32, i32) {
    %c0_i32 = arith.constant 0 : i32
    %c0_i32_0 = arith.constant 0 : i32
    return %arg0, %c0_i32 : i32, i32
  }
  func.func @transform_1(%arg0: i32) -> (i32, i32) {
    %c0_i32 = arith.constant 0 : i32
    %c0_i32_0 = arith.constant 0 : i32
    return %arg0, %c0_i32 : i32, i32
  }
  func.func @transform_2(%arg0: i32) -> (i32, i32) {
    %c0_i32 = arith.constant 0 : i32
    %c0_i32_0 = arith.constant 0 : i32
    %c0_i32_1 = arith.constant 0 : i32
    return %c0_i32, %c0_i32_0 : i32, i32
  }
  func.func @transform_3(%arg0: i32) -> (i32, i32) {
    %c0_i32 = arith.constant 0 : i32
    %c0_i32_0 = arith.constant 0 : i32
    %c0_i32_1 = arith.constant 0 : i32
    return %c0_i32, %c0_i32_0 : i32, i32
  }
  func.func @transform_4(%arg0: i32) -> (i32, i32) {
    %c0_i32 = arith.constant 0 : i32
    %c0_i32_0 = arith.constant 0 : i32
    %c0_i32_1 = arith.constant 0 : i32
    return %c0_i32, %c0_i32_0 : i32, i32
  }
  func.func @transform_5(%arg0: i32) -> (i32, i32) {
    %c0_i32 = arith.constant 0 : i32
    %c0_i32_0 = arith.constant 0 : i32
    %c0_i32_1 = arith.constant 0 : i32
    return %c0_i32, %c0_i32_0 : i32, i32
  }
  func.func @transform_6(%arg0: i32) -> (i32, i32) {
    %c0_i32 = arith.constant 0 : i32
    %c0_i32_0 = arith.constant 0 : i32
    %c0_i32_1 = arith.constant 0 : i32
    return %c0_i32, %c0_i32_0 : i32, i32
  }
  func.func @transform_7(%arg0: i32) -> (i32, i32) {
    %c0_i32 = arith.constant 0 : i32
    %c0_i32_0 = arith.constant 0 : i32
    return %arg0, %c0_i32 : i32, i32
  }
  func.func @transform_8(%arg0: i32) -> (i32, i32) {
    %c0_i32 = arith.constant 0 : i32
    %c0_i32_0 = arith.constant 0 : i32
    return %arg0, %c0_i32 : i32, i32
  }
}

module attributes {stable_mosaic.version = 11 : i64} {
  func.func @_node_update_kernel(%arg0: i32, %arg1: memref<16x32xf32, #tpu.memory_space<vmem>>, %arg2: memref<16x32xf32, #tpu.memory_space<vmem>>, %arg3: memref<16x32xf32, #tpu.memory_space<vmem>>, %arg4: memref<32x32xf32, #tpu.memory_space<vmem>>, %arg5: memref<1x32xf32, #tpu.memory_space<vmem>>, %arg6: memref<1x32xf32, #tpu.memory_space<vmem>>, %arg7: memref<1x32xf32, #tpu.memory_space<vmem>>, %arg8: memref<32x128xf32, #tpu.memory_space<vmem>>, %arg9: memref<1x128xf32, #tpu.memory_space<vmem>>, %arg10: memref<128x32xf32, #tpu.memory_space<vmem>>, %arg11: memref<1x32xf32, #tpu.memory_space<vmem>>, %arg12: memref<1x32xf32, #tpu.memory_space<vmem>>, %arg13: memref<1x32xf32, #tpu.memory_space<vmem>>, %arg14: memref<32x96xf32, #tpu.memory_space<vmem>>, %arg15: memref<32x96xf32, #tpu.memory_space<vmem>>, %arg16: memref<1x96xf32, #tpu.memory_space<vmem>>, %arg17: memref<1x96xf32, #tpu.memory_space<vmem>>, %arg18: memref<1x32xf32, #tpu.memory_space<vmem>>, %arg19: memref<1x32xf32, #tpu.memory_space<vmem>>, %arg20: memref<16x32xf32, #tpu.memory_space<vmem>>, %arg21: memref<16x32xf32, #tpu.memory_space<vmem>>) attributes {dimension_semantics = [#tpu.dimension_semantics<parallel>], iteration_bounds = array<i64: 1>, scalar_prefetch = 0 : i64, scratch_operands = 0 : i64, tpu.core_type = #tpu.core_type<tc>, window_params = [{transform_indices = @transform_0, window_bounds = array<i64: 16, 32>}, {transform_indices = @transform_1, window_bounds = array<i64: 16, 32>}, {transform_indices = @transform_2, window_bounds = array<i64: 16, 32>}, {pipeline_mode = #tpu.pipeline_mode<synchronous>, transform_indices = @transform_3, window_bounds = array<i64: 32, 32>}, {pipeline_mode = #tpu.pipeline_mode<synchronous>, transform_indices = @transform_4, window_bounds = array<i64: 1, 32>}, {pipeline_mode = #tpu.pipeline_mode<synchronous>, transform_indices = @transform_5, window_bounds = array<i64: 1, 32>}, {pipeline_mode = #tpu.pipeline_mode<synchronous>, transform_indices = @transform_6, window_bounds = array<i64: 1, 32>}, {pipeline_mode = #tpu.pipeline_mode<synchronous>, transform_indices = @transform_7, window_bounds = array<i64: 32, 128>}, {pipeline_mode = #tpu.pipeline_mode<synchronous>, transform_indices = @transform_8, window_bounds = array<i64: 1, 128>}, {pipeline_mode = #tpu.pipeline_mode<synchronous>, transform_indices = @transform_9, window_bounds = array<i64: 128, 32>}, {pipeline_mode = #tpu.pipeline_mode<synchronous>, transform_indices = @transform_10, window_bounds = array<i64: 1, 32>}, {pipeline_mode = #tpu.pipeline_mode<synchronous>, transform_indices = @transform_11, window_bounds = array<i64: 1, 32>}, {pipeline_mode = #tpu.pipeline_mode<synchronous>, transform_indices = @transform_12, window_bounds = array<i64: 1, 32>}, {pipeline_mode = #tpu.pipeline_mode<synchronous>, transform_indices = @transform_13, window_bounds = array<i64: 32, 96>}, {pipeline_mode = #tpu.pipeline_mode<synchronous>, transform_indices = @transform_14, window_bounds = array<i64: 32, 96>}, {pipeline_mode = #tpu.pipeline_mode<synchronous>, transform_indices = @transform_15, window_bounds = array<i64: 1, 96>}, {pipeline_mode = #tpu.pipeline_mode<synchronous>, transform_indices = @transform_16, window_bounds = array<i64: 1, 96>}, {pipeline_mode = #tpu.pipeline_mode<synchronous>, transform_indices = @transform_17, window_bounds = array<i64: 1, 32>}, {pipeline_mode = #tpu.pipeline_mode<synchronous>, transform_indices = @transform_18, window_bounds = array<i64: 1, 32>}, {transform_indices = @transform_19, window_bounds = array<i64: 16, 32>}, {transform_indices = @transform_20, window_bounds = array<i64: 16, 32>}]} {
    %c0 = arith.constant 0 : index
    %c0_0 = arith.constant 0 : index
    %0 = vector.load %arg2[%c0, %c0_0] : memref<16x32xf32, #tpu.memory_space<vmem>>, vector<16x32xf32>
    %c0_1 = arith.constant 0 : index
    %c0_2 = arith.constant 0 : index
    %1 = vector.load %arg1[%c0_1, %c0_2] : memref<16x32xf32, #tpu.memory_space<vmem>>, vector<16x32xf32>
    %c0_3 = arith.constant 0 : index
    %c0_4 = arith.constant 0 : index
    %2 = vector.load %arg4[%c0_3, %c0_4] : memref<32x32xf32, #tpu.memory_space<vmem>>, vector<32x32xf32>
    %cst = arith.constant dense<0.000000e+00> : vector<16x32xf32>
    %3 = tpu.matmul %1, %2, %cst {dimension_numbers = #tpu.dot_dimension_numbers<[1], [0], [0], [1], [0, 0, 1, 1], [], []>} : vector<16x32xf32>, vector<32x32xf32>, vector<16x32xf32> -> vector<16x32xf32>
    %c0_5 = arith.constant 0 : index
    %c0_6 = arith.constant 0 : index
    %4 = vector.load %arg5[%c0_5, %c0_6] : memref<1x32xf32, #tpu.memory_space<vmem>>, vector<1x32xf32>
    %5 = vector.broadcast %4 : vector<1x32xf32> to vector<16x32xf32>
    %6 = arith.addf %3, %5 : vector<16x32xf32>
    %7 = arith.addf %6, %0 : vector<16x32xf32>
    %c0_7 = arith.constant 0 : index
    %c0_8 = arith.constant 0 : index
    %8 = vector.load %arg6[%c0_7, %c0_8] : memref<1x32xf32, #tpu.memory_space<vmem>>, vector<1x32xf32>
    %c0_9 = arith.constant 0 : index
    %c0_10 = arith.constant 0 : index
    %9 = vector.load %arg7[%c0_9, %c0_10] : memref<1x32xf32, #tpu.memory_space<vmem>>, vector<1x32xf32>
    %cst_11 = arith.constant dense<0.000000e+00> : vector<16xf32>
    %10 = vector.multi_reduction <add>, %7, %cst_11 [1] : vector<16x32xf32> to vector<16xf32>
    %11 = vector.shape_cast %10 : vector<16xf32> to vector<16x1xf32>
    %cst_12 = arith.constant 3.200000e+01 : f32
    %12 = vector.broadcast %cst_12 : f32 to vector<16x1xf32>
    %13 = arith.divf %11, %12 : vector<16x1xf32>
    %14 = vector.broadcast %13 : vector<16x1xf32> to vector<16x32xf32>
    %15 = arith.subf %7, %14 : vector<16x32xf32>
    %16 = arith.mulf %15, %15 : vector<16x32xf32>
    %cst_13 = arith.constant dense<0.000000e+00> : vector<16xf32>
    %17 = vector.multi_reduction <add>, %16, %cst_13 [1] : vector<16x32xf32> to vector<16xf32>
    %18 = vector.shape_cast %17 : vector<16xf32> to vector<16x1xf32>
    %cst_14 = arith.constant 3.200000e+01 : f32
    %19 = vector.broadcast %cst_14 : f32 to vector<16x1xf32>
    %20 = arith.divf %18, %19 : vector<16x1xf32>
    %21 = vector.broadcast %13 : vector<16x1xf32> to vector<16x32xf32>
    %22 = arith.subf %7, %21 : vector<16x32xf32>
    %cst_15 = arith.constant 9.99999996E-13 : f32
    %23 = vector.broadcast %cst_15 : f32 to vector<16x1xf32>
    %24 = arith.addf %20, %23 : vector<16x1xf32>
    %25 = math.rsqrt %24 : vector<16x1xf32>
    %26 = vector.broadcast %25 : vector<16x1xf32> to vector<16x32xf32>
    %27 = arith.mulf %22, %26 : vector<16x32xf32>
    %28 = vector.broadcast %8 : vector<1x32xf32> to vector<16x32xf32>
    %29 = arith.mulf %28, %27 : vector<16x32xf32>
    %30 = vector.broadcast %9 : vector<1x32xf32> to vector<16x32xf32>
    %31 = arith.addf %29, %30 : vector<16x32xf32>
    %c0_16 = arith.constant 0 : index
    %c0_17 = arith.constant 0 : index
    %32 = vector.load %arg8[%c0_16, %c0_17] : memref<32x128xf32, #tpu.memory_space<vmem>>, vector<32x128xf32>
    %cst_18 = arith.constant dense<0.000000e+00> : vector<16x128xf32>
    %33 = tpu.matmul %31, %32, %cst_18 {dimension_numbers = #tpu.dot_dimension_numbers<[1], [0], [0], [1], [0, 0, 1, 1], [], []>} : vector<16x32xf32>, vector<32x128xf32>, vector<16x128xf32> -> vector<16x128xf32>
    %c0_19 = arith.constant 0 : index
    %c0_20 = arith.constant 0 : index
    %34 = vector.load %arg9[%c0_19, %c0_20] : memref<1x128xf32, #tpu.memory_space<vmem>>, vector<1x128xf32>
    %35 = vector.broadcast %34 : vector<1x128xf32> to vector<16x128xf32>
    %36 = arith.addf %33, %35 : vector<16x128xf32>
    %cst_21 = arith.constant 5.000000e-01 : f32
    %37 = vector.broadcast %cst_21 : f32 to vector<16x128xf32>
    %38 = arith.mulf %36, %37 : vector<16x128xf32>
    %cst_22 = arith.constant 1.414210e+00 : f32
    %39 = vector.broadcast %cst_22 : f32 to vector<16x128xf32>
    %40 = arith.divf %36, %39 : vector<16x128xf32>
    %41 = math.erf %40 : vector<16x128xf32>
    %cst_23 = arith.constant 1.000000e+00 : f32
    %42 = vector.broadcast %cst_23 : f32 to vector<16x128xf32>
    %43 = arith.addf %42, %41 : vector<16x128xf32>
    %44 = arith.mulf %38, %43 : vector<16x128xf32>
    %c0_24 = arith.constant 0 : index
    %c0_25 = arith.constant 0 : index
    %45 = vector.load %arg10[%c0_24, %c0_25] : memref<128x32xf32, #tpu.memory_space<vmem>>, vector<128x32xf32>
    %cst_26 = arith.constant dense<0.000000e+00> : vector<16x32xf32>
    %46 = tpu.matmul %44, %45, %cst_26 {dimension_numbers = #tpu.dot_dimension_numbers<[1], [0], [0], [1], [0, 0, 1, 1], [], []>} : vector<16x128xf32>, vector<128x32xf32>, vector<16x32xf32> -> vector<16x32xf32>
    %c0_27 = arith.constant 0 : index
    %c0_28 = arith.constant 0 : index
    %47 = vector.load %arg11[%c0_27, %c0_28] : memref<1x32xf32, #tpu.memory_space<vmem>>, vector<1x32xf32>
    %48 = vector.broadcast %47 : vector<1x32xf32> to vector<16x32xf32>
    %49 = arith.addf %46, %48 : vector<16x32xf32>
    %50 = arith.addf %49, %31 : vector<16x32xf32>
    %c0_29 = arith.constant 0 : index
    %c0_30 = arith.constant 0 : index
    %51 = vector.load %arg12[%c0_29, %c0_30] : memref<1x32xf32, #tpu.memory_space<vmem>>, vector<1x32xf32>
    %c0_31 = arith.constant 0 : index
    %c0_32 = arith.constant 0 : index
    %52 = vector.load %arg13[%c0_31, %c0_32] : memref<1x32xf32, #tpu.memory_space<vmem>>, vector<1x32xf32>
    %cst_33 = arith.constant dense<0.000000e+00> : vector<16xf32>
    %53 = vector.multi_reduction <add>, %50, %cst_33 [1] : vector<16x32xf32> to vector<16xf32>
    %54 = vector.shape_cast %53 : vector<16xf32> to vector<16x1xf32>
    %cst_34 = arith.constant 3.200000e+01 : f32
    %55 = vector.broadcast %cst_34 : f32 to vector<16x1xf32>
    %56 = arith.divf %54, %55 : vector<16x1xf32>
    %57 = vector.broadcast %56 : vector<16x1xf32> to vector<16x32xf32>
    %58 = arith.subf %50, %57 : vector<16x32xf32>
    %59 = arith.mulf %58, %58 : vector<16x32xf32>
    %cst_35 = arith.constant dense<0.000000e+00> : vector<16xf32>
    %60 = vector.multi_reduction <add>, %59, %cst_35 [1] : vector<16x32xf32> to vector<16xf32>
    %61 = vector.shape_cast %60 : vector<16xf32> to vector<16x1xf32>
    %cst_36 = arith.constant 3.200000e+01 : f32
    %62 = vector.broadcast %cst_36 : f32 to vector<16x1xf32>
    %63 = arith.divf %61, %62 : vector<16x1xf32>
    %64 = vector.broadcast %56 : vector<16x1xf32> to vector<16x32xf32>
    %65 = arith.subf %50, %64 : vector<16x32xf32>
    %cst_37 = arith.constant 9.99999996E-13 : f32
    %66 = vector.broadcast %cst_37 : f32 to vector<16x1xf32>
    %67 = arith.addf %63, %66 : vector<16x1xf32>
    %68 = math.rsqrt %67 : vector<16x1xf32>
    %69 = vector.broadcast %68 : vector<16x1xf32> to vector<16x32xf32>
    %70 = arith.mulf %65, %69 : vector<16x32xf32>
    %71 = vector.broadcast %51 : vector<1x32xf32> to vector<16x32xf32>
    %72 = arith.mulf %71, %70 : vector<16x32xf32>
    %73 = vector.broadcast %52 : vector<1x32xf32> to vector<16x32xf32>
    %74 = arith.addf %72, %73 : vector<16x32xf32>
    %c0_38 = arith.constant 0 : index
    %c0_39 = arith.constant 0 : index
    %75 = vector.load %arg3[%c0_38, %c0_39] : memref<16x32xf32, #tpu.memory_space<vmem>>, vector<16x32xf32>
    %c0_40 = arith.constant 0 : index
    %c0_41 = arith.constant 0 : index
    %76 = vector.load %arg14[%c0_40, %c0_41] : memref<32x96xf32, #tpu.memory_space<vmem>>, vector<32x96xf32>
    %cst_42 = arith.constant dense<0.000000e+00> : vector<16x96xf32>
    %77 = tpu.matmul %74, %76, %cst_42 {dimension_numbers = #tpu.dot_dimension_numbers<[1], [0], [0], [1], [0, 0, 1, 1], [], []>} : vector<16x32xf32>, vector<32x96xf32>, vector<16x96xf32> -> vector<16x96xf32>
    %c0_43 = arith.constant 0 : index
    %c0_44 = arith.constant 0 : index
    %78 = vector.load %arg16[%c0_43, %c0_44] : memref<1x96xf32, #tpu.memory_space<vmem>>, vector<1x96xf32>
    %79 = vector.broadcast %78 : vector<1x96xf32> to vector<16x96xf32>
    %80 = arith.addf %77, %79 : vector<16x96xf32>
    %c0_45 = arith.constant 0 : index
    %c0_46 = arith.constant 0 : index
    %81 = vector.load %arg15[%c0_45, %c0_46] : memref<32x96xf32, #tpu.memory_space<vmem>>, vector<32x96xf32>
    %cst_47 = arith.constant dense<0.000000e+00> : vector<16x96xf32>
    %82 = tpu.matmul %75, %81, %cst_47 {dimension_numbers = #tpu.dot_dimension_numbers<[1], [0], [0], [1], [0, 0, 1, 1], [], []>} : vector<16x32xf32>, vector<32x96xf32>, vector<16x96xf32> -> vector<16x96xf32>
    %c0_48 = arith.constant 0 : index
    %c0_49 = arith.constant 0 : index
    %83 = vector.load %arg17[%c0_48, %c0_49] : memref<1x96xf32, #tpu.memory_space<vmem>>, vector<1x96xf32>
    %84 = vector.broadcast %83 : vector<1x96xf32> to vector<16x96xf32>
    %85 = arith.addf %82, %84 : vector<16x96xf32>
    %86 = vector.extract_strided_slice %80 {offsets = [0, 0], sizes = [16, 32], strides = [1, 1]} : vector<16x96xf32> to vector<16x32xf32>
    %87 = vector.extract_strided_slice %85 {offsets = [0, 0], sizes = [16, 32], strides = [1, 1]} : vector<16x96xf32> to vector<16x32xf32>
    %88 = arith.addf %86, %87 : vector<16x32xf32>
    %89 = arith.negf %88 : vector<16x32xf32>
    %90 = math.exp %89 : vector<16x32xf32>
    %cst_50 = arith.constant 1.000000e+00 : f32
    %91 = vector.broadcast %cst_50 : f32 to vector<16x32xf32>
    %92 = arith.addf %91, %90 : vector<16x32xf32>
    %93 = arith.divf %91, %92 : vector<16x32xf32>
    %94 = vector.extract_strided_slice %80 {offsets = [0, 32], sizes = [16, 32], strides = [1, 1]} : vector<16x96xf32> to vector<16x32xf32>
    %95 = vector.extract_strided_slice %85 {offsets = [0, 32], sizes = [16, 32], strides = [1, 1]} : vector<16x96xf32> to vector<16x32xf32>
    %96 = arith.addf %94, %95 : vector<16x32xf32>
    %97 = arith.negf %96 : vector<16x32xf32>
    %98 = math.exp %97 : vector<16x32xf32>
    %cst_51 = arith.constant 1.000000e+00 : f32
    %99 = vector.broadcast %cst_51 : f32 to vector<16x32xf32>
    %100 = arith.addf %99, %98 : vector<16x32xf32>
    %101 = arith.divf %99, %100 : vector<16x32xf32>
    %102 = vector.extract_strided_slice %80 {offsets = [0, 64], sizes = [16, 32], strides = [1, 1]} : vector<16x96xf32> to vector<16x32xf32>
    %103 = vector.extract_strided_slice %85 {offsets = [0, 64], sizes = [16, 32], strides = [1, 1]} : vector<16x96xf32> to vector<16x32xf32>
    %104 = arith.mulf %93, %103 : vector<16x32xf32>
    %105 = arith.addf %102, %104 : vector<16x32xf32>
    %106 = math.tanh %105 : vector<16x32xf32>
    %cst_52 = arith.constant 1.000000e+00 : f32
    %107 = vector.broadcast %cst_52 : f32 to vector<16x32xf32>
    %108 = arith.subf %107, %101 : vector<16x32xf32>
    %109 = arith.mulf %108, %106 : vector<16x32xf32>
    %110 = arith.mulf %101, %75 : vector<16x32xf32>
    %111 = arith.addf %109, %110 : vector<16x32xf32>
    %c0_53 = arith.constant 0 : index
    %c0_54 = arith.constant 0 : index
    %112 = vector.load %arg20[%c0_53, %c0_54] : memref<16x32xf32, #tpu.memory_space<vmem>>, vector<16x32xf32>
    tpu.vector_store %arg20[%c0_53, %c0_54], %111 {strides = array<i32>} : memref<16x32xf32, #tpu.memory_space<vmem>>, vector<16x32xf32>,
    %c0_55 = arith.constant 0 : index
    %c0_56 = arith.constant 0 : index
    %113 = vector.load %arg18[%c0_55, %c0_56] : memref<1x32xf32, #tpu.memory_space<vmem>>, vector<1x32xf32>
    %c0_57 = arith.constant 0 : index
    %c0_58 = arith.constant 0 : index
    %114 = vector.load %arg19[%c0_57, %c0_58] : memref<1x32xf32, #tpu.memory_space<vmem>>, vector<1x32xf32>
    %cst_59 = arith.constant dense<0.000000e+00> : vector<16xf32>
    %115 = vector.multi_reduction <add>, %111, %cst_59 [1] : vector<16x32xf32> to vector<16xf32>
    %116 = vector.shape_cast %115 : vector<16xf32> to vector<16x1xf32>
    %cst_60 = arith.constant 3.200000e+01 : f32
    %117 = vector.broadcast %cst_60 : f32 to vector<16x1xf32>
    %118 = arith.divf %116, %117 : vector<16x1xf32>
    %119 = vector.broadcast %118 : vector<16x1xf32> to vector<16x32xf32>
    %120 = arith.subf %111, %119 : vector<16x32xf32>
    %121 = arith.mulf %120, %120 : vector<16x32xf32>
    %cst_61 = arith.constant dense<0.000000e+00> : vector<16xf32>
    %122 = vector.multi_reduction <add>, %121, %cst_61 [1] : vector<16x32xf32> to vector<16xf32>
    %123 = vector.shape_cast %122 : vector<16xf32> to vector<16x1xf32>
    %cst_62 = arith.constant 3.200000e+01 : f32
    %124 = vector.broadcast %cst_62 : f32 to vector<16x1xf32>
    %125 = arith.divf %123, %124 : vector<16x1xf32>
    %126 = vector.broadcast %118 : vector<16x1xf32> to vector<16x32xf32>
    %127 = arith.subf %111, %126 : vector<16x32xf32>
    %cst_63 = arith.constant 9.99999996E-13 : f32
    %128 = vector.broadcast %cst_63 : f32 to vector<16x1xf32>
    %129 = arith.addf %125, %128 : vector<16x1xf32>
    %130 = math.rsqrt %129 : vector<16x1xf32>
    %131 = vector.broadcast %130 : vector<16x1xf32> to vector<16x32xf32>
    %132 = arith.mulf %127, %131 : vector<16x32xf32>
    %133 = vector.broadcast %113 : vector<1x32xf32> to vector<16x32xf32>
    %134 = arith.mulf %133, %132 : vector<16x32xf32>
    %135 = vector.broadcast %114 : vector<1x32xf32> to vector<16x32xf32>
    %136 = arith.addf %134, %135 : vector<16x32xf32>
    %c0_64 = arith.constant 0 : index
    %c0_65 = arith.constant 0 : index
    %137 = vector.load %arg21[%c0_64, %c0_65] : memref<16x32xf32, #tpu.memory_space<vmem>>, vector<16x32xf32>
    tpu.vector_store %arg21[%c0_64, %c0_65], %136 {strides = array<i32>} : memref<16x32xf32, #tpu.memory_space<vmem>>, vector<16x32xf32>,
    return
  }
  func.func @transform_0(%arg0: i32) -> (i32, i32) {
    %c0_i32 = arith.constant 0 : i32
    %c0_i32_0 = arith.constant 0 : i32
    return %arg0, %c0_i32 : i32, i32
  }
  func.func @transform_1(%arg0: i32) -> (i32, i32) {
    %c0_i32 = arith.constant 0 : i32
    %c0_i32_0 = arith.constant 0 : i32
    return %arg0, %c0_i32 : i32, i32
  }
  func.func @transform_2(%arg0: i32) -> (i32, i32) {
    %c0_i32 = arith.constant 0 : i32
    %c0_i32_0 = arith.constant 0 : i32
    return %arg0, %c0_i32 : i32, i32
  }
  func.func @transform_3(%arg0: i32) -> (i32, i32) {
    %c0_i32 = arith.constant 0 : i32
    %c0_i32_0 = arith.constant 0 : i32
    %c0_i32_1 = arith.constant 0 : i32
    return %c0_i32, %c0_i32_0 : i32, i32
  }
  func.func @transform_4(%arg0: i32) -> (i32, i32) {
    %c0_i32 = arith.constant 0 : i32
    %c0_i32_0 = arith.constant 0 : i32
    %c0_i32_1 = arith.constant 0 : i32
    return %c0_i32, %c0_i32_0 : i32, i32
  }
  func.func @transform_5(%arg0: i32) -> (i32, i32) {
    %c0_i32 = arith.constant 0 : i32
    %c0_i32_0 = arith.constant 0 : i32
    %c0_i32_1 = arith.constant 0 : i32
    return %c0_i32, %c0_i32_0 : i32, i32
  }
  func.func @transform_6(%arg0: i32) -> (i32, i32) {
    %c0_i32 = arith.constant 0 : i32
    %c0_i32_0 = arith.constant 0 : i32
    %c0_i32_1 = arith.constant 0 : i32
    return %c0_i32, %c0_i32_0 : i32, i32
  }
  func.func @transform_7(%arg0: i32) -> (i32, i32) {
    %c0_i32 = arith.constant 0 : i32
    %c0_i32_0 = arith.constant 0 : i32
    %c0_i32_1 = arith.constant 0 : i32
    return %c0_i32, %c0_i32_0 : i32, i32
  }
  func.func @transform_8(%arg0: i32) -> (i32, i32) {
    %c0_i32 = arith.constant 0 : i32
    %c0_i32_0 = arith.constant 0 : i32
    %c0_i32_1 = arith.constant 0 : i32
    return %c0_i32, %c0_i32_0 : i32, i32
  }
  func.func @transform_9(%arg0: i32) -> (i32, i32) {
    %c0_i32 = arith.constant 0 : i32
    %c0_i32_0 = arith.constant 0 : i32
    %c0_i32_1 = arith.constant 0 : i32
    return %c0_i32, %c0_i32_0 : i32, i32
  }
  func.func @transform_10(%arg0: i32) -> (i32, i32) {
    %c0_i32 = arith.constant 0 : i32
    %c0_i32_0 = arith.constant 0 : i32
    %c0_i32_1 = arith.constant 0 : i32
    return %c0_i32, %c0_i32_0 : i32, i32
  }
  func.func @transform_11(%arg0: i32) -> (i32, i32) {
    %c0_i32 = arith.constant 0 : i32
    %c0_i32_0 = arith.constant 0 : i32
    %c0_i32_1 = arith.constant 0 : i32
    return %c0_i32, %c0_i32_0 : i32, i32
  }
  func.func @transform_12(%arg0: i32) -> (i32, i32) {
    %c0_i32 = arith.constant 0 : i32
    %c0_i32_0 = arith.constant 0 : i32
    %c0_i32_1 = arith.constant 0 : i32
    return %c0_i32, %c0_i32_0 : i32, i32
  }
  func.func @transform_13(%arg0: i32) -> (i32, i32) {
    %c0_i32 = arith.constant 0 : i32
    %c0_i32_0 = arith.constant 0 : i32
    %c0_i32_1 = arith.constant 0 : i32
    return %c0_i32, %c0_i32_0 : i32, i32
  }
  func.func @transform_14(%arg0: i32) -> (i32, i32) {
    %c0_i32 = arith.constant 0 : i32
    %c0_i32_0 = arith.constant 0 : i32
    %c0_i32_1 = arith.constant 0 : i32
    return %c0_i32, %c0_i32_0 : i32, i32
  }
  func.func @transform_15(%arg0: i32) -> (i32, i32) {
    %c0_i32 = arith.constant 0 : i32
    %c0_i32_0 = arith.constant 0 : i32
    %c0_i32_1 = arith.constant 0 : i32
    return %c0_i32, %c0_i32_0 : i32, i32
  }
  func.func @transform_16(%arg0: i32) -> (i32, i32) {
    %c0_i32 = arith.constant 0 : i32
    %c0_i32_0 = arith.constant 0 : i32
    %c0_i32_1 = arith.constant 0 : i32
    return %c0_i32, %c0_i32_0 : i32, i32
  }
  func.func @transform_17(%arg0: i32) -> (i32, i32) {
    %c0_i32 = arith.constant 0 : i32
    %c0_i32_0 = arith.constant 0 : i32
    %c0_i32_1 = arith.constant 0 : i32
    return %c0_i32, %c0_i32_0 : i32, i32
  }
  func.func @transform_18(%arg0: i32) -> (i32, i32) {
    %c0_i32 = arith.constant 0 : i32
    %c0_i32_0 = arith.constant 0 : i32
    %c0_i32_1 = arith.constant 0 : i32
    return %c0_i32, %c0_i32_0 : i32, i32
  }
  func.func @transform_19(%arg0: i32) -> (i32, i32) {
    %c0_i32 = arith.constant 0 : i32
    %c0_i32_0 = arith.constant 0 : i32
    return %arg0, %c0_i32 : i32, i32
  }
  func.func @transform_20(%arg0: i32) -> (i32, i32) {
    %c0_i32 = arith.constant 0 : i32
    %c0_i32_0 = arith.constant 0 : i32
    return %arg0, %c0_i32 : i32, i32
  }
}

module attributes {stable_mosaic.version = 11 : i64} {
  func.func @_node_update_kernel(%arg0: i32, %arg1: memref<16x32xf32, #tpu.memory_space<vmem>>, %arg2: memref<16x32xf32, #tpu.memory_space<vmem>>, %arg3: memref<16x32xf32, #tpu.memory_space<vmem>>, %arg4: memref<32x32xf32, #tpu.memory_space<vmem>>, %arg5: memref<1x32xf32, #tpu.memory_space<vmem>>, %arg6: memref<1x32xf32, #tpu.memory_space<vmem>>, %arg7: memref<1x32xf32, #tpu.memory_space<vmem>>, %arg8: memref<32x128xf32, #tpu.memory_space<vmem>>, %arg9: memref<1x128xf32, #tpu.memory_space<vmem>>, %arg10: memref<128x32xf32, #tpu.memory_space<vmem>>, %arg11: memref<1x32xf32, #tpu.memory_space<vmem>>, %arg12: memref<1x32xf32, #tpu.memory_space<vmem>>, %arg13: memref<1x32xf32, #tpu.memory_space<vmem>>, %arg14: memref<32x96xf32, #tpu.memory_space<vmem>>, %arg15: memref<32x96xf32, #tpu.memory_space<vmem>>, %arg16: memref<1x96xf32, #tpu.memory_space<vmem>>, %arg17: memref<1x96xf32, #tpu.memory_space<vmem>>, %arg18: memref<1x32xf32, #tpu.memory_space<vmem>>, %arg19: memref<1x32xf32, #tpu.memory_space<vmem>>, %arg20: memref<16x32xf32, #tpu.memory_space<vmem>>, %arg21: memref<16x32xf32, #tpu.memory_space<vmem>>) attributes {dimension_semantics = [#tpu.dimension_semantics<parallel>], iteration_bounds = array<i64: 1>, scalar_prefetch = 0 : i64, scratch_operands = 0 : i64, tpu.core_type = #tpu.core_type<tc>, window_params = [{transform_indices = @transform_0, window_bounds = array<i64: 16, 32>}, {transform_indices = @transform_1, window_bounds = array<i64: 16, 32>}, {transform_indices = @transform_2, window_bounds = array<i64: 16, 32>}, {pipeline_mode = #tpu.pipeline_mode<synchronous>, transform_indices = @transform_3, window_bounds = array<i64: 32, 32>}, {pipeline_mode = #tpu.pipeline_mode<synchronous>, transform_indices = @transform_4, window_bounds = array<i64: 1, 32>}, {pipeline_mode = #tpu.pipeline_mode<synchronous>, transform_indices = @transform_5, window_bounds = array<i64: 1, 32>}, {pipeline_mode = #tpu.pipeline_mode<synchronous>, transform_indices = @transform_6, window_bounds = array<i64: 1, 32>}, {pipeline_mode = #tpu.pipeline_mode<synchronous>, transform_indices = @transform_7, window_bounds = array<i64: 32, 128>}, {pipeline_mode = #tpu.pipeline_mode<synchronous>, transform_indices = @transform_8, window_bounds = array<i64: 1, 128>}, {pipeline_mode = #tpu.pipeline_mode<synchronous>, transform_indices = @transform_9, window_bounds = array<i64: 128, 32>}, {pipeline_mode = #tpu.pipeline_mode<synchronous>, transform_indices = @transform_10, window_bounds = array<i64: 1, 32>}, {pipeline_mode = #tpu.pipeline_mode<synchronous>, transform_indices = @transform_11, window_bounds = array<i64: 1, 32>}, {pipeline_mode = #tpu.pipeline_mode<synchronous>, transform_indices = @transform_12, window_bounds = array<i64: 1, 32>}, {pipeline_mode = #tpu.pipeline_mode<synchronous>, transform_indices = @transform_13, window_bounds = array<i64: 32, 96>}, {pipeline_mode = #tpu.pipeline_mode<synchronous>, transform_indices = @transform_14, window_bounds = array<i64: 32, 96>}, {pipeline_mode = #tpu.pipeline_mode<synchronous>, transform_indices = @transform_15, window_bounds = array<i64: 1, 96>}, {pipeline_mode = #tpu.pipeline_mode<synchronous>, transform_indices = @transform_16, window_bounds = array<i64: 1, 96>}, {pipeline_mode = #tpu.pipeline_mode<synchronous>, transform_indices = @transform_17, window_bounds = array<i64: 1, 32>}, {pipeline_mode = #tpu.pipeline_mode<synchronous>, transform_indices = @transform_18, window_bounds = array<i64: 1, 32>}, {transform_indices = @transform_19, window_bounds = array<i64: 16, 32>}, {transform_indices = @transform_20, window_bounds = array<i64: 16, 32>}]} {
    %c0 = arith.constant 0 : index
    %c0_0 = arith.constant 0 : index
    %0 = vector.load %arg2[%c0, %c0_0] : memref<16x32xf32, #tpu.memory_space<vmem>>, vector<16x32xf32>
    %c0_1 = arith.constant 0 : index
    %c0_2 = arith.constant 0 : index
    %1 = vector.load %arg1[%c0_1, %c0_2] : memref<16x32xf32, #tpu.memory_space<vmem>>, vector<16x32xf32>
    %c0_3 = arith.constant 0 : index
    %c0_4 = arith.constant 0 : index
    %2 = vector.load %arg4[%c0_3, %c0_4] : memref<32x32xf32, #tpu.memory_space<vmem>>, vector<32x32xf32>
    %cst = arith.constant dense<0.000000e+00> : vector<16x32xf32>
    %3 = tpu.matmul %1, %2, %cst {dimension_numbers = #tpu.dot_dimension_numbers<[1], [0], [0], [1], [0, 0, 1, 1], [], []>} : vector<16x32xf32>, vector<32x32xf32>, vector<16x32xf32> -> vector<16x32xf32>
    %c0_5 = arith.constant 0 : index
    %c0_6 = arith.constant 0 : index
    %4 = vector.load %arg5[%c0_5, %c0_6] : memref<1x32xf32, #tpu.memory_space<vmem>>, vector<1x32xf32>
    %5 = vector.broadcast %4 : vector<1x32xf32> to vector<16x32xf32>
    %6 = arith.addf %3, %5 : vector<16x32xf32>
    %7 = arith.addf %6, %0 : vector<16x32xf32>
    %c0_7 = arith.constant 0 : index
    %c0_8 = arith.constant 0 : index
    %8 = vector.load %arg6[%c0_7, %c0_8] : memref<1x32xf32, #tpu.memory_space<vmem>>, vector<1x32xf32>
    %c0_9 = arith.constant 0 : index
    %c0_10 = arith.constant 0 : index
    %9 = vector.load %arg7[%c0_9, %c0_10] : memref<1x32xf32, #tpu.memory_space<vmem>>, vector<1x32xf32>
    %cst_11 = arith.constant dense<0.000000e+00> : vector<16xf32>
    %10 = vector.multi_reduction <add>, %7, %cst_11 [1] : vector<16x32xf32> to vector<16xf32>
    %11 = vector.shape_cast %10 : vector<16xf32> to vector<16x1xf32>
    %cst_12 = arith.constant 3.200000e+01 : f32
    %12 = vector.broadcast %cst_12 : f32 to vector<16x1xf32>
    %13 = arith.divf %11, %12 : vector<16x1xf32>
    %14 = vector.broadcast %13 : vector<16x1xf32> to vector<16x32xf32>
    %15 = arith.subf %7, %14 : vector<16x32xf32>
    %16 = arith.mulf %15, %15 : vector<16x32xf32>
    %cst_13 = arith.constant dense<0.000000e+00> : vector<16xf32>
    %17 = vector.multi_reduction <add>, %16, %cst_13 [1] : vector<16x32xf32> to vector<16xf32>
    %18 = vector.shape_cast %17 : vector<16xf32> to vector<16x1xf32>
    %cst_14 = arith.constant 3.200000e+01 : f32
    %19 = vector.broadcast %cst_14 : f32 to vector<16x1xf32>
    %20 = arith.divf %18, %19 : vector<16x1xf32>
    %21 = vector.broadcast %13 : vector<16x1xf32> to vector<16x32xf32>
    %22 = arith.subf %7, %21 : vector<16x32xf32>
    %cst_15 = arith.constant 9.99999996E-13 : f32
    %23 = vector.broadcast %cst_15 : f32 to vector<16x1xf32>
    %24 = arith.addf %20, %23 : vector<16x1xf32>
    %25 = math.rsqrt %24 : vector<16x1xf32>
    %26 = vector.broadcast %25 : vector<16x1xf32> to vector<16x32xf32>
    %27 = arith.mulf %22, %26 : vector<16x32xf32>
    %28 = vector.broadcast %8 : vector<1x32xf32> to vector<16x32xf32>
    %29 = arith.mulf %28, %27 : vector<16x32xf32>
    %30 = vector.broadcast %9 : vector<1x32xf32> to vector<16x32xf32>
    %31 = arith.addf %29, %30 : vector<16x32xf32>
    %c0_16 = arith.constant 0 : index
    %c0_17 = arith.constant 0 : index
    %32 = vector.load %arg8[%c0_16, %c0_17] : memref<32x128xf32, #tpu.memory_space<vmem>>, vector<32x128xf32>
    %cst_18 = arith.constant dense<0.000000e+00> : vector<16x128xf32>
    %33 = tpu.matmul %31, %32, %cst_18 {dimension_numbers = #tpu.dot_dimension_numbers<[1], [0], [0], [1], [0, 0, 1, 1], [], []>} : vector<16x32xf32>, vector<32x128xf32>, vector<16x128xf32> -> vector<16x128xf32>
    %c0_19 = arith.constant 0 : index
    %c0_20 = arith.constant 0 : index
    %34 = vector.load %arg9[%c0_19, %c0_20] : memref<1x128xf32, #tpu.memory_space<vmem>>, vector<1x128xf32>
    %35 = vector.broadcast %34 : vector<1x128xf32> to vector<16x128xf32>
    %36 = arith.addf %33, %35 : vector<16x128xf32>
    %cst_21 = arith.constant 5.000000e-01 : f32
    %37 = vector.broadcast %cst_21 : f32 to vector<16x128xf32>
    %38 = arith.mulf %36, %37 : vector<16x128xf32>
    %cst_22 = arith.constant 1.414210e+00 : f32
    %39 = vector.broadcast %cst_22 : f32 to vector<16x128xf32>
    %40 = arith.divf %36, %39 : vector<16x128xf32>
    %41 = math.erf %40 : vector<16x128xf32>
    %cst_23 = arith.constant 1.000000e+00 : f32
    %42 = vector.broadcast %cst_23 : f32 to vector<16x128xf32>
    %43 = arith.addf %42, %41 : vector<16x128xf32>
    %44 = arith.mulf %38, %43 : vector<16x128xf32>
    %c0_24 = arith.constant 0 : index
    %c0_25 = arith.constant 0 : index
    %45 = vector.load %arg10[%c0_24, %c0_25] : memref<128x32xf32, #tpu.memory_space<vmem>>, vector<128x32xf32>
    %cst_26 = arith.constant dense<0.000000e+00> : vector<16x32xf32>
    %46 = tpu.matmul %44, %45, %cst_26 {dimension_numbers = #tpu.dot_dimension_numbers<[1], [0], [0], [1], [0, 0, 1, 1], [], []>} : vector<16x128xf32>, vector<128x32xf32>, vector<16x32xf32> -> vector<16x32xf32>
    %c0_27 = arith.constant 0 : index
    %c0_28 = arith.constant 0 : index
    %47 = vector.load %arg11[%c0_27, %c0_28] : memref<1x32xf32, #tpu.memory_space<vmem>>, vector<1x32xf32>
    %48 = vector.broadcast %47 : vector<1x32xf32> to vector<16x32xf32>
    %49 = arith.addf %46, %48 : vector<16x32xf32>
    %50 = arith.addf %49, %31 : vector<16x32xf32>
    %c0_29 = arith.constant 0 : index
    %c0_30 = arith.constant 0 : index
    %51 = vector.load %arg12[%c0_29, %c0_30] : memref<1x32xf32, #tpu.memory_space<vmem>>, vector<1x32xf32>
    %c0_31 = arith.constant 0 : index
    %c0_32 = arith.constant 0 : index
    %52 = vector.load %arg13[%c0_31, %c0_32] : memref<1x32xf32, #tpu.memory_space<vmem>>, vector<1x32xf32>
    %cst_33 = arith.constant dense<0.000000e+00> : vector<16xf32>
    %53 = vector.multi_reduction <add>, %50, %cst_33 [1] : vector<16x32xf32> to vector<16xf32>
    %54 = vector.shape_cast %53 : vector<16xf32> to vector<16x1xf32>
    %cst_34 = arith.constant 3.200000e+01 : f32
    %55 = vector.broadcast %cst_34 : f32 to vector<16x1xf32>
    %56 = arith.divf %54, %55 : vector<16x1xf32>
    %57 = vector.broadcast %56 : vector<16x1xf32> to vector<16x32xf32>
    %58 = arith.subf %50, %57 : vector<16x32xf32>
    %59 = arith.mulf %58, %58 : vector<16x32xf32>
    %cst_35 = arith.constant dense<0.000000e+00> : vector<16xf32>
    %60 = vector.multi_reduction <add>, %59, %cst_35 [1] : vector<16x32xf32> to vector<16xf32>
    %61 = vector.shape_cast %60 : vector<16xf32> to vector<16x1xf32>
    %cst_36 = arith.constant 3.200000e+01 : f32
    %62 = vector.broadcast %cst_36 : f32 to vector<16x1xf32>
    %63 = arith.divf %61, %62 : vector<16x1xf32>
    %64 = vector.broadcast %56 : vector<16x1xf32> to vector<16x32xf32>
    %65 = arith.subf %50, %64 : vector<16x32xf32>
    %cst_37 = arith.constant 9.99999996E-13 : f32
    %66 = vector.broadcast %cst_37 : f32 to vector<16x1xf32>
    %67 = arith.addf %63, %66 : vector<16x1xf32>
    %68 = math.rsqrt %67 : vector<16x1xf32>
    %69 = vector.broadcast %68 : vector<16x1xf32> to vector<16x32xf32>
    %70 = arith.mulf %65, %69 : vector<16x32xf32>
    %71 = vector.broadcast %51 : vector<1x32xf32> to vector<16x32xf32>
    %72 = arith.mulf %71, %70 : vector<16x32xf32>
    %73 = vector.broadcast %52 : vector<1x32xf32> to vector<16x32xf32>
    %74 = arith.addf %72, %73 : vector<16x32xf32>
    %c0_38 = arith.constant 0 : index
    %c0_39 = arith.constant 0 : index
    %75 = vector.load %arg3[%c0_38, %c0_39] : memref<16x32xf32, #tpu.memory_space<vmem>>, vector<16x32xf32>
    %c0_40 = arith.constant 0 : index
    %c0_41 = arith.constant 0 : index
    %76 = vector.load %arg14[%c0_40, %c0_41] : memref<32x96xf32, #tpu.memory_space<vmem>>, vector<32x96xf32>
    %cst_42 = arith.constant dense<0.000000e+00> : vector<16x96xf32>
    %77 = tpu.matmul %74, %76, %cst_42 {dimension_numbers = #tpu.dot_dimension_numbers<[1], [0], [0], [1], [0, 0, 1, 1], [], []>} : vector<16x32xf32>, vector<32x96xf32>, vector<16x96xf32> -> vector<16x96xf32>
    %c0_43 = arith.constant 0 : index
    %c0_44 = arith.constant 0 : index
    %78 = vector.load %arg16[%c0_43, %c0_44] : memref<1x96xf32, #tpu.memory_space<vmem>>, vector<1x96xf32>
    %79 = vector.broadcast %78 : vector<1x96xf32> to vector<16x96xf32>
    %80 = arith.addf %77, %79 : vector<16x96xf32>
    %c0_45 = arith.constant 0 : index
    %c0_46 = arith.constant 0 : index
    %81 = vector.load %arg15[%c0_45, %c0_46] : memref<32x96xf32, #tpu.memory_space<vmem>>, vector<32x96xf32>
    %cst_47 = arith.constant dense<0.000000e+00> : vector<16x96xf32>
    %82 = tpu.matmul %75, %81, %cst_47 {dimension_numbers = #tpu.dot_dimension_numbers<[1], [0], [0], [1], [0, 0, 1, 1], [], []>} : vector<16x32xf32>, vector<32x96xf32>, vector<16x96xf32> -> vector<16x96xf32>
    %c0_48 = arith.constant 0 : index
    %c0_49 = arith.constant 0 : index
    %83 = vector.load %arg17[%c0_48, %c0_49] : memref<1x96xf32, #tpu.memory_space<vmem>>, vector<1x96xf32>
    %84 = vector.broadcast %83 : vector<1x96xf32> to vector<16x96xf32>
    %85 = arith.addf %82, %84 : vector<16x96xf32>
    %86 = vector.extract_strided_slice %80 {offsets = [0, 0], sizes = [16, 32], strides = [1, 1]} : vector<16x96xf32> to vector<16x32xf32>
    %87 = vector.extract_strided_slice %85 {offsets = [0, 0], sizes = [16, 32], strides = [1, 1]} : vector<16x96xf32> to vector<16x32xf32>
    %88 = arith.addf %86, %87 : vector<16x32xf32>
    %89 = arith.negf %88 : vector<16x32xf32>
    %90 = math.exp %89 : vector<16x32xf32>
    %cst_50 = arith.constant 1.000000e+00 : f32
    %91 = vector.broadcast %cst_50 : f32 to vector<16x32xf32>
    %92 = arith.addf %91, %90 : vector<16x32xf32>
    %93 = arith.divf %91, %92 : vector<16x32xf32>
    %94 = vector.extract_strided_slice %80 {offsets = [0, 32], sizes = [16, 32], strides = [1, 1]} : vector<16x96xf32> to vector<16x32xf32>
    %95 = vector.extract_strided_slice %85 {offsets = [0, 32], sizes = [16, 32], strides = [1, 1]} : vector<16x96xf32> to vector<16x32xf32>
    %96 = arith.addf %94, %95 : vector<16x32xf32>
    %97 = arith.negf %96 : vector<16x32xf32>
    %98 = math.exp %97 : vector<16x32xf32>
    %cst_51 = arith.constant 1.000000e+00 : f32
    %99 = vector.broadcast %cst_51 : f32 to vector<16x32xf32>
    %100 = arith.addf %99, %98 : vector<16x32xf32>
    %101 = arith.divf %99, %100 : vector<16x32xf32>
    %102 = vector.extract_strided_slice %80 {offsets = [0, 64], sizes = [16, 32], strides = [1, 1]} : vector<16x96xf32> to vector<16x32xf32>
    %103 = vector.extract_strided_slice %85 {offsets = [0, 64], sizes = [16, 32], strides = [1, 1]} : vector<16x96xf32> to vector<16x32xf32>
    %104 = arith.mulf %93, %103 : vector<16x32xf32>
    %105 = arith.addf %102, %104 : vector<16x32xf32>
    %106 = math.tanh %105 : vector<16x32xf32>
    %cst_52 = arith.constant 1.000000e+00 : f32
    %107 = vector.broadcast %cst_52 : f32 to vector<16x32xf32>
    %108 = arith.subf %107, %101 : vector<16x32xf32>
    %109 = arith.mulf %108, %106 : vector<16x32xf32>
    %110 = arith.mulf %101, %75 : vector<16x32xf32>
    %111 = arith.addf %109, %110 : vector<16x32xf32>
    %c0_53 = arith.constant 0 : index
    %c0_54 = arith.constant 0 : index
    %112 = vector.load %arg20[%c0_53, %c0_54] : memref<16x32xf32, #tpu.memory_space<vmem>>, vector<16x32xf32>
    tpu.vector_store %arg20[%c0_53, %c0_54], %111 {strides = array<i32>} : memref<16x32xf32, #tpu.memory_space<vmem>>, vector<16x32xf32>,
    %c0_55 = arith.constant 0 : index
    %c0_56 = arith.constant 0 : index
    %113 = vector.load %arg18[%c0_55, %c0_56] : memref<1x32xf32, #tpu.memory_space<vmem>>, vector<1x32xf32>
    %c0_57 = arith.constant 0 : index
    %c0_58 = arith.constant 0 : index
    %114 = vector.load %arg19[%c0_57, %c0_58] : memref<1x32xf32, #tpu.memory_space<vmem>>, vector<1x32xf32>
    %cst_59 = arith.constant dense<0.000000e+00> : vector<16xf32>
    %115 = vector.multi_reduction <add>, %111, %cst_59 [1] : vector<16x32xf32> to vector<16xf32>
    %116 = vector.shape_cast %115 : vector<16xf32> to vector<16x1xf32>
    %cst_60 = arith.constant 3.200000e+01 : f32
    %117 = vector.broadcast %cst_60 : f32 to vector<16x1xf32>
    %118 = arith.divf %116, %117 : vector<16x1xf32>
    %119 = vector.broadcast %118 : vector<16x1xf32> to vector<16x32xf32>
    %120 = arith.subf %111, %119 : vector<16x32xf32>
    %121 = arith.mulf %120, %120 : vector<16x32xf32>
    %cst_61 = arith.constant dense<0.000000e+00> : vector<16xf32>
    %122 = vector.multi_reduction <add>, %121, %cst_61 [1] : vector<16x32xf32> to vector<16xf32>
    %123 = vector.shape_cast %122 : vector<16xf32> to vector<16x1xf32>
    %cst_62 = arith.constant 3.200000e+01 : f32
    %124 = vector.broadcast %cst_62 : f32 to vector<16x1xf32>
    %125 = arith.divf %123, %124 : vector<16x1xf32>
    %126 = vector.broadcast %118 : vector<16x1xf32> to vector<16x32xf32>
    %127 = arith.subf %111, %126 : vector<16x32xf32>
    %cst_63 = arith.constant 9.99999996E-13 : f32
    %128 = vector.broadcast %cst_63 : f32 to vector<16x1xf32>
    %129 = arith.addf %125, %128 : vector<16x1xf32>
    %130 = math.rsqrt %129 : vector<16x1xf32>
    %131 = vector.broadcast %130 : vector<16x1xf32> to vector<16x32xf32>
    %132 = arith.mulf %127, %131 : vector<16x32xf32>
    %133 = vector.broadcast %113 : vector<1x32xf32> to vector<16x32xf32>
    %134 = arith.mulf %133, %132 : vector<16x32xf32>
    %135 = vector.broadcast %114 : vector<1x32xf32> to vector<16x32xf32>
    %136 = arith.addf %134, %135 : vector<16x32xf32>
    %c0_64 = arith.constant 0 : index
    %c0_65 = arith.constant 0 : index
    %137 = vector.load %arg21[%c0_64, %c0_65] : memref<16x32xf32, #tpu.memory_space<vmem>>, vector<16x32xf32>
    tpu.vector_store %arg21[%c0_64, %c0_65], %136 {strides = array<i32>} : memref<16x32xf32, #tpu.memory_space<vmem>>, vector<16x32xf32>,
    return
  }
  func.func @transform_0(%arg0: i32) -> (i32, i32) {
    %c0_i32 = arith.constant 0 : i32
    %c0_i32_0 = arith.constant 0 : i32
    return %arg0, %c0_i32 : i32, i32
  }
  func.func @transform_1(%arg0: i32) -> (i32, i32) {
    %c0_i32 = arith.constant 0 : i32
    %c0_i32_0 = arith.constant 0 : i32
    return %arg0, %c0_i32 : i32, i32
  }
  func.func @transform_2(%arg0: i32) -> (i32, i32) {
    %c0_i32 = arith.constant 0 : i32
    %c0_i32_0 = arith.constant 0 : i32
    return %arg0, %c0_i32 : i32, i32
  }
  func.func @transform_3(%arg0: i32) -> (i32, i32) {
    %c0_i32 = arith.constant 0 : i32
    %c0_i32_0 = arith.constant 0 : i32
    %c0_i32_1 = arith.constant 0 : i32
    return %c0_i32, %c0_i32_0 : i32, i32
  }
  func.func @transform_4(%arg0: i32) -> (i32, i32) {
    %c0_i32 = arith.constant 0 : i32
    %c0_i32_0 = arith.constant 0 : i32
    %c0_i32_1 = arith.constant 0 : i32
    return %c0_i32, %c0_i32_0 : i32, i32
  }
  func.func @transform_5(%arg0: i32) -> (i32, i32) {
    %c0_i32 = arith.constant 0 : i32
    %c0_i32_0 = arith.constant 0 : i32
    %c0_i32_1 = arith.constant 0 : i32
    return %c0_i32, %c0_i32_0 : i32, i32
  }
  func.func @transform_6(%arg0: i32) -> (i32, i32) {
    %c0_i32 = arith.constant 0 : i32
    %c0_i32_0 = arith.constant 0 : i32
    %c0_i32_1 = arith.constant 0 : i32
    return %c0_i32, %c0_i32_0 : i32, i32
  }
  func.func @transform_7(%arg0: i32) -> (i32, i32) {
    %c0_i32 = arith.constant 0 : i32
    %c0_i32_0 = arith.constant 0 : i32
    %c0_i32_1 = arith.constant 0 : i32
    return %c0_i32, %c0_i32_0 : i32, i32
  }
  func.func @transform_8(%arg0: i32) -> (i32, i32) {
    %c0_i32 = arith.constant 0 : i32
    %c0_i32_0 = arith.constant 0 : i32
    %c0_i32_1 = arith.constant 0 : i32
    return %c0_i32, %c0_i32_0 : i32, i32
  }
  func.func @transform_9(%arg0: i32) -> (i32, i32) {
    %c0_i32 = arith.constant 0 : i32
    %c0_i32_0 = arith.constant 0 : i32
    %c0_i32_1 = arith.constant 0 : i32
    return %c0_i32, %c0_i32_0 : i32, i32
  }
  func.func @transform_10(%arg0: i32) -> (i32, i32) {
    %c0_i32 = arith.constant 0 : i32
    %c0_i32_0 = arith.constant 0 : i32
    %c0_i32_1 = arith.constant 0 : i32
    return %c0_i32, %c0_i32_0 : i32, i32
  }
  func.func @transform_11(%arg0: i32) -> (i32, i32) {
    %c0_i32 = arith.constant 0 : i32
    %c0_i32_0 = arith.constant 0 : i32
    %c0_i32_1 = arith.constant 0 : i32
    return %c0_i32, %c0_i32_0 : i32, i32
  }
  func.func @transform_12(%arg0: i32) -> (i32, i32) {
    %c0_i32 = arith.constant 0 : i32
    %c0_i32_0 = arith.constant 0 : i32
    %c0_i32_1 = arith.constant 0 : i32
    return %c0_i32, %c0_i32_0 : i32, i32
  }
  func.func @transform_13(%arg0: i32) -> (i32, i32) {
    %c0_i32 = arith.constant 0 : i32
    %c0_i32_0 = arith.constant 0 : i32
    %c0_i32_1 = arith.constant 0 : i32
    return %c0_i32, %c0_i32_0 : i32, i32
  }
  func.func @transform_14(%arg0: i32) -> (i32, i32) {
    %c0_i32 = arith.constant 0 : i32
    %c0_i32_0 = arith.constant 0 : i32
    %c0_i32_1 = arith.constant 0 : i32
    return %c0_i32, %c0_i32_0 : i32, i32
  }
  func.func @transform_15(%arg0: i32) -> (i32, i32) {
    %c0_i32 = arith.constant 0 : i32
    %c0_i32_0 = arith.constant 0 : i32
    %c0_i32_1 = arith.constant 0 : i32
    return %c0_i32, %c0_i32_0 : i32, i32
  }
  func.func @transform_16(%arg0: i32) -> (i32, i32) {
    %c0_i32 = arith.constant 0 : i32
    %c0_i32_0 = arith.constant 0 : i32
    %c0_i32_1 = arith.constant 0 : i32
    return %c0_i32, %c0_i32_0 : i32, i32
  }
  func.func @transform_17(%arg0: i32) -> (i32, i32) {
    %c0_i32 = arith.constant 0 : i32
    %c0_i32_0 = arith.constant 0 : i32
    %c0_i32_1 = arith.constant 0 : i32
    return %c0_i32, %c0_i32_0 : i32, i32
  }
  func.func @transform_18(%arg0: i32) -> (i32, i32) {
    %c0_i32 = arith.constant 0 : i32
    %c0_i32_0 = arith.constant 0 : i32
    %c0_i32_1 = arith.constant 0 : i32
    return %c0_i32, %c0_i32_0 : i32, i32
  }
  func.func @transform_19(%arg0: i32) -> (i32, i32) {
    %c0_i32 = arith.constant 0 : i32
    %c0_i32_0 = arith.constant 0 : i32
    return %arg0, %c0_i32 : i32, i32
  }
  func.func @transform_20(%arg0: i32) -> (i32, i32) {
    %c0_i32 = arith.constant 0 : i32
    %c0_i32_0 = arith.constant 0 : i32
    return %arg0, %c0_i32 : i32, i32
  }
}

module attributes {stable_mosaic.version = 11 : i64} {
  func.func @_linear_kernel(%arg0: memref<2x32xf32, #tpu.memory_space<vmem>>, %arg1: memref<32x3xf32, #tpu.memory_space<vmem>>, %arg2: memref<1x3xf32, #tpu.memory_space<vmem>>, %arg3: memref<2x3xf32, #tpu.memory_space<vmem>>) attributes {dimension_semantics = [], scalar_prefetch = 0 : i64, scratch_operands = 0 : i64, tpu.core_type = #tpu.core_type<tc>} {
    %c0 = arith.constant 0 : index
    %c0_0 = arith.constant 0 : index
    %0 = vector.load %arg0[%c0, %c0_0] : memref<2x32xf32, #tpu.memory_space<vmem>>, vector<2x32xf32>
    %c0_1 = arith.constant 0 : index
    %c0_2 = arith.constant 0 : index
    %1 = vector.load %arg1[%c0_1, %c0_2] : memref<32x3xf32, #tpu.memory_space<vmem>>, vector<32x3xf32>
    %cst = arith.constant dense<0.000000e+00> : vector<2x3xf32>
    %2 = tpu.matmul %0, %1, %cst {dimension_numbers = #tpu.dot_dimension_numbers<[1], [0], [0], [1], [0, 0, 1, 1], [], []>} : vector<2x32xf32>, vector<32x3xf32>, vector<2x3xf32> -> vector<2x3xf32>
    %c0_3 = arith.constant 0 : index
    %c0_4 = arith.constant 0 : index
    %3 = vector.load %arg2[%c0_3, %c0_4] : memref<1x3xf32, #tpu.memory_space<vmem>>, vector<1x3xf32>
    %4 = vector.broadcast %3 : vector<1x3xf32> to vector<2x3xf32>
    %5 = arith.addf %2, %4 : vector<2x3xf32>
    %c0_5 = arith.constant 0 : index
    %c0_6 = arith.constant 0 : index
    %6 = vector.load %arg3[%c0_5, %c0_6] : memref<2x3xf32, #tpu.memory_space<vmem>>, vector<2x3xf32>
    tpu.vector_store %arg3[%c0_5, %c0_6], %5 {strides = array<i32>} : memref<2x3xf32, #tpu.memory_space<vmem>>, vector<2x3xf32>,
    return
  }
}

</mosaic_0001>

<llo_original>
// kernel: molgt_graphpred_forward.9
$region0: #{molgt_graphpred_forward.9}
  #allocation0 [shape = 'u32[]', space=smem, size = 0x4, offset = 0x4, fixed_abs, tag = 'smem constant byte address 0x4 - core index']
  #allocation1 [shape = 'u32[144,128]{1,0:T(1,128)}', space=vmem, size = 0x12000, scoped, tag = 'internal scratch']
  %s0 = inlined_call_operand.vmem [shape: f32[32,32], index: 0, kind: input, shape index: {}]
  %s1 = inlined_call_operand.vmem [shape: f32[32,32], index: 1, kind: input, shape index: {}]
  %s2 = inlined_call_operand.vmem [shape: f32[32,32], index: 2, kind: input, shape index: {}]
  %s3 = inlined_call_operand.vmem [shape: f32[1,32], index: 3, kind: input, shape index: {}]
  %s4 = inlined_call_operand.vmem [shape: f32[32,64], index: 4, kind: input, shape index: {}]
  %s5 = inlined_call_operand.vmem [shape: f32[1,64], index: 5, kind: input, shape index: {}]
  %s6 = inlined_call_operand.vmem [shape: f32[32,32], index: 6, kind: input, shape index: {}]
  %s7 = inlined_call_operand.vmem [shape: f32[32,32], index: 7, kind: output, shape index: {0}]
  %s8 = inlined_call_operand.vmem [shape: f32[32,32], index: 8, kind: output, shape index: {1}]
  %9 = xla_tuple %s7, %s8
  %s10 = sld [smem:[#allocation0]]
  $region46: #{molgt_graphpred_forward.9} parent=0
    _
  %s12 = ssub.s32 1, %s10
  %s13 = scalar_select 0, %s12, %s10
  // Predicated region
  $region2: #{molgt_graphpred_forward.9} parent=0 // pred_check
    _
  $region3: #{molgt_graphpred_forward.9} parent=0 // pred_check_branch
    %15 = sbr.rel (0) target = $region5
  $region4: #{molgt_graphpred_forward.9} parent=0 // pred_region
    _
  $region5: #{molgt_graphpred_forward.9} parent=0 // pred_fallthru
    _
  // Predicated region
  $region6: #{molgt_graphpred_forward.9} parent=0 // pred_check
    _
  $region7: #{molgt_graphpred_forward.9} parent=0 // pred_check_branch
    %17 = sbr.rel (0) target = $region9
  $region8: #{molgt_graphpred_forward.9} parent=0 // pred_region
    _
  $region9: #{molgt_graphpred_forward.9} parent=0 // pred_fallthru
    _
  // Predicated region
  $region10: #{molgt_graphpred_forward.9} parent=0 // pred_check
    _
  $region11: #{molgt_graphpred_forward.9} parent=0 // pred_check_branch
    %19 = sbr.rel (0) target = $region13
  $region12: #{molgt_graphpred_forward.9} parent=0 // pred_region
    _
  $region13: #{molgt_graphpred_forward.9} parent=0 // pred_fallthru
    _
  // Predicated region
  $region14: #{molgt_graphpred_forward.9} parent=0 // pred_check
    _
  $region15: #{molgt_graphpred_forward.9} parent=0 // pred_check_branch
    %21 = sbr.rel (0) target = $region17
  $region16: #{molgt_graphpred_forward.9} parent=0 // pred_region
    _
  $region17: #{molgt_graphpred_forward.9} parent=0 // pred_fallthru
    _
  // Predicated region
  $region18: #{molgt_graphpred_forward.9} parent=0 // pred_check
    _
  $region19: #{molgt_graphpred_forward.9} parent=0 // pred_check_branch
    %23 = sbr.rel (0) target = $region21
  $region20: #{molgt_graphpred_forward.9} parent=0 // pred_region
    _
  $region21: #{molgt_graphpred_forward.9} parent=0 // pred_fallthru
    _
  // Predicated region
  $region22: #{molgt_graphpred_forward.9} parent=0 // pred_check
    _
  $region23: #{molgt_graphpred_forward.9} parent=0 // pred_check_branch
    %25 = sbr.rel (0) target = $region25
  $region24: #{molgt_graphpred_forward.9} parent=0 // pred_region
    _
  $region25: #{molgt_graphpred_forward.9} parent=0 // pred_fallthru
    _
  // Predicated region
  $region26: #{molgt_graphpred_forward.9} parent=0 // pred_check
    _
  $region27: #{molgt_graphpred_forward.9} parent=0 // pred_check_branch
    %27 = sbr.rel (0) target = $region29
  $region28: #{molgt_graphpred_forward.9} parent=0 // pred_region
    _
  $region29: #{molgt_graphpred_forward.9} parent=0 // pred_fallthru
    _
  %v28 = vld [vmem:[%s0] sm:$0xff]
  %v29 = vld [vmem:[%s0 + $0x8] sm:$0xff]
  %v30 = vld [vmem:[%s0 + $0x10] sm:$0xff]
  %v31 = vld [vmem:[%s0 + $0x18] sm:$0xff]
  %v32 = vld [vmem:[%s2] sm:$0xff]
  %v33 = vld [vmem:[%s2 + $0x8] sm:$0xff]
  %v34 = vld [vmem:[%s2 + $0x10] sm:$0xff]
  %v35 = vld [vmem:[%s2 + $0x18] sm:$0xff]
  %v36 = vld [vmem:[%s3] sm:$0x1]
  %v38 = vlaneseq
  %v39 = vshrl.u32 %v38, 7
  %v40 = vsub.s32 0, %v39
  %v41 = vrot.slane %v36, %v40
  %vm43 = vcmask 261120
  %v45 = vsel %vm43, %v28, 0
  %v48 = vsel %vm43, %v29, 0
  %v51 = vsel %vm43, %v30, 0
  %v54 = vsel %vm43, %v31, 0
  %56 = vmatprep.subr.mxu0 0.0
  %57 = vmatpush1.msra.mxu0 0.0
  %58 = vmatprep.subr.mxu0 0.0
  %59 = vmatpush1.msra.mxu0 0.0
  %60 = vmatprep.subr.mxu0 0.0
  %61 = vmatpush1.msra.mxu0 0.0
  %62 = vmatprep.subr.mxu0 0.0
  %63 = vmatpush1.msra.mxu0 0.0
  %64 = vmatprep.subr.mxu0 0.0
  %65 = vmatpush1.msra.mxu0 0.0
  %66 = vmatprep.subr.mxu0 0.0
  %67 = vmatpush1.msra.mxu0 0.0
  %68 = vmatprep.subr.mxu0 0.0
  %69 = vmatpush1.msra.mxu0 0.0
  %70 = vmatprep.subr.mxu0 0.0
  %71 = vmatpush1.msra.mxu0 0.0
  %72 = vmatprep.subr.mxu0 0.0
  %73 = vmatpush1.msra.mxu0 0.0
  %74 = vmatprep.subr.mxu0 0.0
  %75 = vmatpush1.msra.mxu0 0.0
  %76 = vmatprep.subr.mxu0 0.0
  %77 = vmatpush1.msra.mxu0 0.0
  %78 = vmatprep.subr.mxu0 0.0
  %79 = vmatpush1.msra.mxu0 0.0
  %80 = vmatprep.subr.mxu0 0.0
  %81 = vmatpush1.msra.mxu0 %v35
  %82 = vmatprep.subr.mxu0 0.0
  %83 = vmatpush1.msra.mxu0 %v34
  %84 = vmatprep.subr.mxu0 0.0
  %85 = vmatpush1.msra.mxu0 %v33
  %86 = vmatprep.subr.mxu0 0.0
  %87 = vmatpush1.msra.mxu0 %v32
  %88 = vmatprep.subr.mxu0 0.0
  %89 = vmatpush2.msra.mxu0 0.0
  %90 = vmatprep.subr.mxu0 0.0
  %91 = vmatpush2.msra.mxu0 0.0
  %92 = vmatprep.subr.mxu0 0.0
  %93 = vmatpush2.msra.mxu0 0.0
  %94 = vmatprep.subr.mxu0 0.0
  %95 = vmatpush2.msra.mxu0 0.0
  %96 = vmatprep.subr.mxu0 0.0
  %97 = vmatpush2.msra.mxu0 0.0
  %98 = vmatprep.subr.mxu0 0.0
  %99 = vmatpush2.msra.mxu0 0.0
  %100 = vmatprep.subr.mxu0 0.0
  %101 = vmatpush2.msra.mxu0 0.0
  %102 = vmatprep.subr.mxu0 0.0
  %103 = vmatpush2.msra.mxu0 0.0
  %104 = vmatprep.subr.mxu0 0.0
  %105 = vmatpush2.msra.mxu0 0.0
  %106 = vmatprep.subr.mxu0 0.0
  %107 = vmatpush2.msra.mxu0 0.0
  %108 = vmatprep.subr.mxu0 0.0
  %109 = vmatpush2.msra.mxu0 0.0
  %110 = vmatprep.subr.mxu0 0.0
  %111 = vmatpush2.msra.mxu0 0.0
  %112 = vmatprep.subr.mxu0 0.0
  %113 = vmatpush2.msra.mxu0 0.0
  %114 = vmatprep.subr.mxu0 0.0
  %115 = vmatpush2.msra.mxu0 0.0
  %116 = vmatprep.subr.mxu0 0.0
  %117 = vmatpush2.msra.mxu0 0.0
  %118 = vmatprep.subr.mxu0 0.0
  %119 = vmatpush2.msra.mxu0 0.0
  %120 = vmatprep.mubr.f32.mxu0 0.0
  %121 = vmatmul.mubr.f32.gmra.mxu0 %v45
  %v122 = vpop.f32.mrf.mxu0
  %v123 = vadd.f32 %v41, %v122
  %v124 = vpop.f32.mrf.mxu0
  %125 = vmatprep.mubr.f32.mxu0 0.0
  %126 = vmatmul.mubr.f32.gmra.mxu0 %v48
  %v127 = vpop.f32.mrf.mxu0
  %v128 = vadd.f32 %v41, %v127
  %v129 = vpop.f32.mrf.mxu0
  %130 = vmatprep.mubr.f32.mxu0 0.0
  %131 = vmatmul.mubr.f32.gmra.mxu0 %v51
  %v132 = vpop.f32.mrf.mxu0
  %v133 = vadd.f32 %v41, %v132
  %v134 = vpop.f32.mrf.mxu0
  %135 = vmatprep.mubr.f32.mxu0 0.0
  %136 = vmatmul.mubr.f32.gmra.mxu0 %v54
  %v137 = vpop.f32.mrf.mxu0
  %v138 = vadd.f32 %v41, %v137
  %v139 = vpop.f32.mrf.mxu0
  %140 = vdwg.mxu0
  %v141 = vld [vmem:[%s1] sm:$0xff]
  %v142 = vld [vmem:[%s1 + $0x8] sm:$0xff]
  %v143 = vld [vmem:[%s1 + $0x10] sm:$0xff]
  %v144 = vld [vmem:[%s1 + $0x18] sm:$0xff]
  %v145 = vld [vmem:[%s4] sm:$0xff]
  %v146 = vld [vmem:[%s4 + $0x8] sm:$0xff]
  %v147 = vld [vmem:[%s4 + $0x10] sm:$0xff]
  %v148 = vld [vmem:[%s4 + $0x18] sm:$0xff]
  %v149 = vld [vmem:[%s5] sm:$0x1]
  %v151 = vlaneseq
  %v152 = vshrl.u32 %v151, 7
  %v153 = vsub.s32 0, %v152
  %v154 = vrot.slane %v149, %v153
  %v157 = vsel %vm43, %v141, 0
  %v160 = vsel %vm43, %v142, 0
  %v163 = vsel %vm43, %v143, 0
  %v166 = vsel %vm43, %v144, 0
  %168 = vmatprep.subr.mxu0 0.0
  %169 = vmatpush1.msra.mxu0 0.0
  %170 = vmatprep.subr.mxu0 0.0
  %171 = vmatpush1.msra.mxu0 0.0
  %172 = vmatprep.subr.mxu0 0.0
  %173 = vmatpush1.msra.mxu0 0.0
  %174 = vmatprep.subr.mxu0 0.0
  %175 = vmatpush1.msra.mxu0 0.0
  %176 = vmatprep.subr.mxu0 0.0
  %177 = vmatpush1.msra.mxu0 0.0
  %178 = vmatprep.subr.mxu0 0.0
  %179 = vmatpush1.msra.mxu0 0.0
  %180 = vmatprep.subr.mxu0 0.0
  %181 = vmatpush1.msra.mxu0 0.0
  %182 = vmatprep.subr.mxu0 0.0
  %183 = vmatpush1.msra.mxu0 0.0
  %184 = vmatprep.subr.mxu0 0.0
  %185 = vmatpush1.msra.mxu0 0.0
  %186 = vmatprep.subr.mxu0 0.0
  %187 = vmatpush1.msra.mxu0 0.0
  %188 = vmatprep.subr.mxu0 0.0
  %189 = vmatpush1.msra.mxu0 0.0
  %190 = vmatprep.subr.mxu0 0.0
  %191 = vmatpush1.msra.mxu0 0.0
  %192 = vmatprep.subr.mxu0 0.0
  %193 = vmatpush1.msra.mxu0 %v148
  %194 = vmatprep.subr.mxu0 0.0
  %195 = vmatpush1.msra.mxu0 %v147
  %196 = vmatprep.subr.mxu0 0.0
  %197 = vmatpush1.msra.mxu0 %v146
  %198 = vmatprep.subr.mxu0 0.0
  %199 = vmatpush1.msra.mxu0 %v145
  %200 = vmatprep.subr.mxu0 0.0
  %201 = vmatpush2.msra.mxu0 0.0
  %202 = vmatprep.subr.mxu0 0.0
  %203 = vmatpush2.msra.mxu0 0.0
  %204 = vmatprep.subr.mxu0 0.0
  %205 = vmatpush2.msra.mxu0 0.0
  %206 = vmatprep.subr.mxu0 0.0
  %207 = vmatpush2.msra.mxu0 0.0
  %208 = vmatprep.subr.mxu0 0.0
  %209 = vmatpush2.msra.mxu0 0.0
  %210 = vmatprep.subr.mxu0 0.0
  %211 = vmatpush2.msra.mxu0 0.0
  %212 = vmatprep.subr.mxu0 0.0
  %213 = vmatpush2.msra.mxu0 0.0
  %214 = vmatprep.subr.mxu0 0.0
  %215 = vmatpush2.msra.mxu0 0.0
  %216 = vmatprep.subr.mxu0 0.0
  %217 = vmatpush2.msra.mxu0 0.0
  %218 = vmatprep.subr.mxu0 0.0
  %219 = vmatpush2.msra.mxu0 0.0
  %220 = vmatprep.subr.mxu0 0.0
  %221 = vmatpush2.msra.mxu0 0.0
  %222 = vmatprep.subr.mxu0 0.0
  %223 = vmatpush2.msra.mxu0 0.0
  %224 = vmatprep.subr.mxu0 0.0
  %225 = vmatpush2.msra.mxu0 0.0
  %226 = vmatprep.subr.mxu0 0.0
  %227 = vmatpush2.msra.mxu0 0.0
  %228 = vmatprep.subr.mxu0 0.0
  %229 = vmatpush2.msra.mxu0 0.0
  %230 = vmatprep.subr.mxu0 0.0
  %231 = vmatpush2.msra.mxu0 0.0
  %232 = vmatprep.mubr.f32.mxu0 0.0
  %233 = vmatmul.mubr.f32.gmra.mxu0 %v157
  %v234 = vpop.f32.mrf.mxu0
  %v235 = vadd.f32 %v154, %v234
  %v236 = vpop.f32.mrf.mxu0
  %237 = vmatprep.mubr.f32.mxu0 0.0
  %238 = vmatmul.mubr.f32.gmra.mxu0 %v160
  %v239 = vpop.f32.mrf.mxu0
  %v240 = vadd.f32 %v154, %v239
  %v241 = vpop.f32.mrf.mxu0
  %242 = vmatprep.mubr.f32.mxu0 0.0
  %243 = vmatmul.mubr.f32.gmra.mxu0 %v163
  %v244 = vpop.f32.mrf.mxu0
  %v245 = vadd.f32 %v154, %v244
  %v246 = vpop.f32.mrf.mxu0
  %247 = vmatprep.mubr.f32.mxu0 0.0
  %248 = vmatmul.mubr.f32.gmra.mxu0 %v166
  %v249 = vpop.f32.mrf.mxu0
  %v250 = vadd.f32 %v154, %v249
  %v251 = vpop.f32.mrf.mxu0
  %252 = vdwg.mxu0
  %v253 = vmul.f32 %v123, %v235
  %v254 = vmul.f32 %v128, %v240
  %v255 = vmul.f32 %v133, %v245
  %v256 = vmul.f32 %v138, %v250
  %v257 = vld [vmem:[%s6] sm:$0xff]
  %v258 = vld [vmem:[%s6 + $0x8] sm:$0xff]
  %v259 = vld [vmem:[%s6 + $0x10] sm:$0xff]
  %v260 = vld [vmem:[%s6 + $0x18] sm:$0xff]
  %v262 = vsel %vm43, %v253, 0
  %v265 = vsel %vm43, %v254, 0
  %v268 = vsel %vm43, %v255, 0
  %v271 = vsel %vm43, %v256, 0
  %273 = vmatprep.subr.mxu0 0.0
  %274 = vmatpush1.msra.mxu0 0.0
  %275 = vmatprep.subr.mxu0 0.0
  %276 = vmatpush1.msra.mxu0 0.0
  %277 = vmatprep.subr.mxu0 0.0
  %278 = vmatpush1.msra.mxu0 0.0
  %279 = vmatprep.subr.mxu0 0.0
  %280 = vmatpush1.msra.mxu0 0.0
  %281 = vmatprep.subr.mxu0 0.0
  %282 = vmatpush1.msra.mxu0 0.0
  %283 = vmatprep.subr.mxu0 0.0
  %284 = vmatpush1.msra.mxu0 0.0
  %285 = vmatprep.subr.mxu0 0.0
  %286 = vmatpush1.msra.mxu0 0.0
  %287 = vmatprep.subr.mxu0 0.0
  %288 = vmatpush1.msra.mxu0 0.0
  %289 = vmatprep.subr.mxu0 0.0
  %290 = vmatpush1.msra.mxu0 0.0
  %291 = vmatprep.subr.mxu0 0.0
  %292 = vmatpush1.msra.mxu0 0.0
  %293 = vmatprep.subr.mxu0 0.0
  %294 = vmatpush1.msra.mxu0 0.0
  %295 = vmatprep.subr.mxu0 0.0
  %296 = vmatpush1.msra.mxu0 0.0
  %297 = vmatprep.subr.mxu0 0.0
  %298 = vmatpush1.msra.mxu0 %v260
  %299 = vmatprep.subr.mxu0 0.0
  %300 = vmatpush1.msra.mxu0 %v259
  %301 = vmatprep.subr.mxu0 0.0
  %302 = vmatpush1.msra.mxu0 %v258
  %303 = vmatprep.subr.mxu0 0.0
  %304 = vmatpush1.msra.mxu0 %v257
  %305 = vmatprep.subr.mxu0 0.0
  %306 = vmatpush2.msra.mxu0 0.0
  %307 = vmatprep.subr.mxu0 0.0
  %308 = vmatpush2.msra.mxu0 0.0
  %309 = vmatprep.subr.mxu0 0.0
  %310 = vmatpush2.msra.mxu0 0.0
  %311 = vmatprep.subr.mxu0 0.0
  %312 = vmatpush2.msra.mxu0 0.0
  %313 = vmatprep.subr.mxu0 0.0
  %314 = vmatpush2.msra.mxu0 0.0
  %315 = vmatprep.subr.mxu0 0.0
  %316 = vmatpush2.msra.mxu0 0.0
  %317 = vmatprep.subr.mxu0 0.0
  %318 = vmatpush2.msra.mxu0 0.0
  %319 = vmatprep.subr.mxu0 0.0
  %320 = vmatpush2.msra.mxu0 0.0
  %321 = vmatprep.subr.mxu0 0.0
  %322 = vmatpush2.msra.mxu0 0.0
  %323 = vmatprep.subr.mxu0 0.0
  %324 = vmatpush2.msra.mxu0 0.0
  %325 = vmatprep.subr.mxu0 0.0
  %326 = vmatpush2.msra.mxu0 0.0
  %327 = vmatprep.subr.mxu0 0.0
  %328 = vmatpush2.msra.mxu0 0.0
  %329 = vmatprep.subr.mxu0 0.0
  %330 = vmatpush2.msra.mxu0 0.0
  %331 = vmatprep.subr.mxu0 0.0
  %332 = vmatpush2.msra.mxu0 0.0
  %333 = vmatprep.subr.mxu0 0.0
  %334 = vmatpush2.msra.mxu0 0.0
  %335 = vmatprep.subr.mxu0 0.0
  %336 = vmatpush2.msra.mxu0 0.0
  %337 = vmatprep.mubr.f32.mxu0 0.0
  %338 = vmatmul.mubr.f32.gmra.mxu0 %v262
  %v339 = vpop.f32.mrf.mxu0
  %v340 = vadd.f32 0.0, %v339
  %v341 = vpop.f32.mrf.mxu0
  %342 = vmatprep.mubr.f32.mxu0 0.0
  %343 = vmatmul.mubr.f32.gmra.mxu0 %v265
  %v344 = vpop.f32.mrf.mxu0
  %v345 = vadd.f32 0.0, %v344
  %v346 = vpop.f32.mrf.mxu0
  %347 = vmatprep.mubr.f32.mxu0 0.0
  %348 = vmatmul.mubr.f32.gmra.mxu0 %v268
  %v349 = vpop.f32.mrf.mxu0
  %v350 = vadd.f32 0.0, %v349
  %v351 = vpop.f32.mrf.mxu0
  %352 = vmatprep.mubr.f32.mxu0 0.0
  %353 = vmatmul.mubr.f32.gmra.mxu0 %v271
  %v354 = vpop.f32.mrf.mxu0
  %v355 = vadd.f32 0.0, %v354
  %v356 = vpop.f32.mrf.mxu0
  %357 = vdwg.mxu0
  %358 = vst.msk [vmem:[%s7] sm:$0xff] %vm43, %v340
  %359 = vst.msk [vmem:[%s7 + $0x8] sm:$0xff] %vm43, %v345
  %360 = vst.msk [vmem:[%s7 + $0x10] sm:$0xff] %vm43, %v350
  %361 = vst.msk [vmem:[%s7 + $0x18] sm:$0xff] %vm43, %v355
  %366 = vrot.lane.b32.xlu0 %v235, 96
  %v367 = vpop.permute.xlu0 %366
  %368 = vrot.lane.b32.xlu0 %v240, 96
  %v369 = vpop.permute.xlu0 %368
  %370 = vrot.lane.b32.xlu0 %v245, 96
  %v371 = vpop.permute.xlu0 %370
  %372 = vrot.lane.b32.xlu0 %v250, 96
  %v373 = vpop.permute.xlu0 %372
  %378 = vst.msk [vmem:[%s8] sm:$0xff] %vm43, %v367
  %379 = vst.msk [vmem:[%s8 + $0x8] sm:$0xff] %vm43, %v369
  %380 = vst.msk [vmem:[%s8 + $0x10] sm:$0xff] %vm43, %v371
  %381 = vst.msk [vmem:[%s8 + $0x18] sm:$0xff] %vm43, %v373
  // Predicated region
  $region30: #{molgt_graphpred_forward.9} parent=0 // pred_check
    _
  $region31: #{molgt_graphpred_forward.9} parent=0 // pred_check_branch
    %383 = sbr.rel (0) target = $region33
  $region32: #{molgt_graphpred_forward.9} parent=0 // pred_region
    _
  $region33: #{molgt_graphpred_forward.9} parent=0 // pred_fallthru
    _
  // Predicated region
  $region34: #{molgt_graphpred_forward.9} parent=0 // pred_check
    _
  $region35: #{molgt_graphpred_forward.9} parent=0 // pred_check_branch
    %385 = sbr.rel (0) target = $region37
  $region36: #{molgt_graphpred_forward.9} parent=0 // pred_region
    _
  $region37: #{molgt_graphpred_forward.9} parent=0 // pred_fallthru
    _
  // Predicated region
  $region38: #{molgt_graphpred_forward.9} parent=0 // pred_check
    _
  $region39: #{molgt_graphpred_forward.9} parent=0 // pred_check_branch
    %387 = sbr.rel (0) target = $region41
  $region40: #{molgt_graphpred_forward.9} parent=0 // pred_region
    _
  $region41: #{molgt_graphpred_forward.9} parent=0 // pred_fallthru
    _
  // Predicated region
  $region42: #{molgt_graphpred_forward.9} parent=0 // pred_check
    _
  $region43: #{molgt_graphpred_forward.9} parent=0 // pred_check_branch
    %389 = sbr.rel (0) target = $region45
  $region44: #{molgt_graphpred_forward.9} parent=0 // pred_region
    _
  $region45: #{molgt_graphpred_forward.9} parent=0 // pred_fallthru
    _

// kernel: molgt_graphpred_forward.12
$region0: #{molgt_graphpred_forward.12}
  #allocation0 [shape = 'u32[]', space=smem, size = 0x4, offset = 0x4, fixed_abs, tag = 'smem constant byte address 0x4 - core index']
  #allocation1 [shape = 'u32[144,128]{1,0:T(1,128)}', space=vmem, size = 0x12000, scoped, tag = 'internal scratch']
  %s0 = inlined_call_operand.vmem [shape: f32[16,32], index: 0, kind: input, shape index: {}]
  %s1 = inlined_call_operand.vmem [shape: f32[16,32], index: 1, kind: input, shape index: {}]
  %s2 = inlined_call_operand.vmem [shape: f32[16,32], index: 2, kind: input, shape index: {}]
  %s3 = inlined_call_operand.vmem [shape: f32[32,32], index: 3, kind: input, shape index: {}]
  %s4 = inlined_call_operand.vmem [shape: f32[1,32], index: 4, kind: input, shape index: {}]
  %s5 = inlined_call_operand.vmem [shape: f32[1,32], index: 5, kind: input, shape index: {}]
  %s6 = inlined_call_operand.vmem [shape: f32[1,32], index: 6, kind: input, shape index: {}]
  %s7 = inlined_call_operand.vmem [shape: f32[32,128], index: 7, kind: input, shape index: {}]
  %s8 = inlined_call_operand.vmem [shape: f32[1,128], index: 8, kind: input, shape index: {}]
  %s9 = inlined_call_operand.vmem [shape: f32[128,32], index: 9, kind: input, shape index: {}]
  %s10 = inlined_call_operand.vmem [shape: f32[1,32], index: 10, kind: input, shape index: {}]
  %s11 = inlined_call_operand.vmem [shape: f32[1,32], index: 11, kind: input, shape index: {}]
  %s12 = inlined_call_operand.vmem [shape: f32[1,32], index: 12, kind: input, shape index: {}]
  %s13 = inlined_call_operand.vmem [shape: f32[32,96], index: 13, kind: input, shape index: {}]
  %s14 = inlined_call_operand.vmem [shape: f32[32,96], index: 14, kind: input, shape index: {}]
  %s15 = inlined_call_operand.vmem [shape: f32[1,96], index: 15, kind: input, shape index: {}]
  %s16 = inlined_call_operand.vmem [shape: f32[1,96], index: 16, kind: input, shape index: {}]
  %s17 = inlined_call_operand.vmem [shape: f32[1,32], index: 17, kind: input, shape index: {}]
  %s18 = inlined_call_operand.vmem [shape: f32[1,32], index: 18, kind: input, shape index: {}]
  %s19 = inlined_call_operand.hbm [shape: f32[16,32], index: 19, kind: output, shape index: {0}]
  %s20 = inlined_call_operand.vmem [shape: f32[16,32], index: 20, kind: output, shape index: {1}]
  %21 = xla_tuple %s19, %s20
  %s22 = sld [smem:[#allocation0]]
  $region94: #{molgt_graphpred_forward.12} parent=0
    _
  %s24 = ssub.s32 1, %s22
  %s25 = scalar_select 0, %s24, %s22
  $region1: #{molgt_graphpred_forward.12} parent=0
    #allocation2 [shape = 'u8[8192]{0}', space=vmem, size = 0x2000, scoped, tag = 'output window, operand 0, single buffered']
    #allocation3 [shape = 's32[1]{0}', space=sflag, size = 0x4, scoped, tag = 'scoped memory for molgt_graphpred_forward.12']
    %26 = vsyncpa [#allocation3], 0
    // Predicated region
    $region2: #{molgt_graphpred_forward.12} parent=1 // pred_check
      _
    $region3: #{molgt_graphpred_forward.12} parent=1 // pred_check_branch
      %28 = sbr.rel (0) target = $region5
    $region4: #{molgt_graphpred_forward.12} parent=1 // pred_region
      _
    $region5: #{molgt_graphpred_forward.12} parent=1 // pred_fallthru
      _
    // Predicated region
    $region6: #{molgt_graphpred_forward.12} parent=1 // pred_check
      _
    $region7: #{molgt_graphpred_forward.12} parent=1 // pred_check_branch
      %30 = sbr.rel (0) target = $region9
    $region8: #{molgt_graphpred_forward.12} parent=1 // pred_region
      _
    $region9: #{molgt_graphpred_forward.12} parent=1 // pred_fallthru
      _
    // Predicated region
    $region10: #{molgt_graphpred_forward.12} parent=1 // pred_check
      _
    $region11: #{molgt_graphpred_forward.12} parent=1 // pred_check_branch
      %32 = sbr.rel (0) target = $region13
    $region12: #{molgt_graphpred_forward.12} parent=1 // pred_region
      _
    $region13: #{molgt_graphpred_forward.12} parent=1 // pred_fallthru
      _
    // Predicated region
    $region14: #{molgt_graphpred_forward.12} parent=1 // pred_check
      _
    $region15: #{molgt_graphpred_forward.12} parent=1 // pred_check_branch
      %34 = sbr.rel (0) target = $region17
    $region16: #{molgt_graphpred_forward.12} parent=1 // pred_region
      _
    $region17: #{molgt_graphpred_forward.12} parent=1 // pred_fallthru
      _
    // Predicated region
    $region18: #{molgt_graphpred_forward.12} parent=1 // pred_check
      _
    $region19: #{molgt_graphpred_forward.12} parent=1 // pred_check_branch
      %36 = sbr.rel (0) target = $region21
    $region20: #{molgt_graphpred_forward.12} parent=1 // pred_region
      _
    $region21: #{molgt_graphpred_forward.12} parent=1 // pred_fallthru
      _
    // Predicated region
    $region22: #{molgt_graphpred_forward.12} parent=1 // pred_check
      _
    $region23: #{molgt_graphpred_forward.12} parent=1 // pred_check_branch
      %38 = sbr.rel (0) target = $region25
    $region24: #{molgt_graphpred_forward.12} parent=1 // pred_region
      _
    $region25: #{molgt_graphpred_forward.12} parent=1 // pred_fallthru
      _
    // Predicated region
    $region26: #{molgt_graphpred_forward.12} parent=1 // pred_check
      _
    $region27: #{molgt_graphpred_forward.12} parent=1 // pred_check_branch
      %40 = sbr.rel (0) target = $region29
    $region28: #{molgt_graphpred_forward.12} parent=1 // pred_region
      _
    $region29: #{molgt_graphpred_forward.12} parent=1 // pred_fallthru
      _
    // Predicated region
    $region30: #{molgt_graphpred_forward.12} parent=1 // pred_check
      _
    $region31: #{molgt_graphpred_forward.12} parent=1 // pred_check_branch
      %42 = sbr.rel (0) target = $region33
    $region32: #{molgt_graphpred_forward.12} parent=1 // pred_region
      _
    $region33: #{molgt_graphpred_forward.12} parent=1 // pred_fallthru
      _
    // Predicated region
    $region34: #{molgt_graphpred_forward.12} parent=1 // pred_check
      _
    $region35: #{molgt_graphpred_forward.12} parent=1 // pred_check_branch
      %44 = sbr.rel (0) target = $region37
    $region36: #{molgt_graphpred_forward.12} parent=1 // pred_region
      _
    $region37: #{molgt_graphpred_forward.12} parent=1 // pred_fallthru
      _
    // Predicated region
    $region38: #{molgt_graphpred_forward.12} parent=1 // pred_check
      _
    $region39: #{molgt_graphpred_forward.12} parent=1 // pred_check_branch
      %46 = sbr.rel (0) target = $region41
    $region40: #{molgt_graphpred_forward.12} parent=1 // pred_region
      _
    $region41: #{molgt_graphpred_forward.12} parent=1 // pred_fallthru
      _
    // Predicated region
    $region42: #{molgt_graphpred_forward.12} parent=1 // pred_check
      _
    $region43: #{molgt_graphpred_forward.12} parent=1 // pred_check_branch
      %48 = sbr.rel (0) target = $region45
    $region44: #{molgt_graphpred_forward.12} parent=1 // pred_region
      _
    $region45: #{molgt_graphpred_forward.12} parent=1 // pred_fallthru
      _
    // Predicated region
    $region46: #{molgt_graphpred_forward.12} parent=1 // pred_check
      _
    $region47: #{molgt_graphpred_forward.12} parent=1 // pred_check_branch
      %50 = sbr.rel (0) target = $region49
    $region48: #{molgt_graphpred_forward.12} parent=1 // pred_region
      _
    $region49: #{molgt_graphpred_forward.12} parent=1 // pred_fallthru
      _
    // Predicated region
    $region50: #{molgt_graphpred_forward.12} parent=1 // pred_check
      _
    $region51: #{molgt_graphpred_forward.12} parent=1 // pred_check_branch
      %52 = sbr.rel (0) target = $region53
    $region52: #{molgt_graphpred_forward.12} parent=1 // pred_region
      _
    $region53: #{molgt_graphpred_forward.12} parent=1 // pred_fallthru
      _
    // Predicated region
    $region54: #{molgt_graphpred_forward.12} parent=1 // pred_check
      _
    $region55: #{molgt_graphpred_forward.12} parent=1 // pred_check_branch
      %54 = sbr.rel (0) target = $region57
    $region56: #{molgt_graphpred_forward.12} parent=1 // pred_region
      _
    $region57: #{molgt_graphpred_forward.12} parent=1 // pred_fallthru
      _
    // Predicated region
    $region58: #{molgt_graphpred_forward.12} parent=1 // pred_check
      _
    $region59: #{molgt_graphpred_forward.12} parent=1 // pred_check_branch
      %56 = sbr.rel (0) target = $region61
    $region60: #{molgt_graphpred_forward.12} parent=1 // pred_region
      _
    $region61: #{molgt_graphpred_forward.12} parent=1 // pred_fallthru
      _
    // Predicated region
    $region62: #{molgt_graphpred_forward.12} parent=1 // pred_check
      _
    $region63: #{molgt_graphpred_forward.12} parent=1 // pred_check_branch
      %58 = sbr.rel (0) target = $region65
    $region64: #{molgt_graphpred_forward.12} parent=1 // pred_region
      _
    $region65: #{molgt_graphpred_forward.12} parent=1 // pred_fallthru
      _
    // Predicated region
    $region66: #{molgt_graphpred_forward.12} parent=1 // pred_check
      _
    $region67: #{molgt_graphpred_forward.12} parent=1 // pred_check_branch
      %60 = sbr.rel (0) target = $region69
    $region68: #{molgt_graphpred_forward.12} parent=1 // pred_region
      _
    $region69: #{molgt_graphpred_forward.12} parent=1 // pred_fallthru
      _
    // Predicated region
    $region70: #{molgt_graphpred_forward.12} parent=1 // pred_check
      _
    $region71: #{molgt_graphpred_forward.12} parent=1 // pred_check_branch
      %62 = sbr.rel (0) target = $region73
    $region72: #{molgt_graphpred_forward.12} parent=1 // pred_region
      _
    $region73: #{molgt_graphpred_forward.12} parent=1 // pred_fallthru
      _
    // Predicated region
    $region74: #{molgt_graphpred_forward.12} parent=1 // pred_check
      _
    $region75: #{molgt_graphpred_forward.12} parent=1 // pred_check_branch
      %64 = sbr.rel (0) target = $region77
    $region76: #{molgt_graphpred_forward.12} parent=1 // pred_region
      _
    $region77: #{molgt_graphpred_forward.12} parent=1 // pred_fallthru
      _
    %v65 = vld [vmem:[%s1] sm:$0xff]
    %v66 = vld [vmem:[%s1 + $0x8] sm:$0xff]
    %v67 = vld [vmem:[%s0] sm:$0xff]
    %v68 = vld [vmem:[%s0 + $0x8] sm:$0xff]
    %v69 = vld [vmem:[%s3] sm:$0xff]
    %v70 = vld [vmem:[%s3 + $0x8] sm:$0xff]
    %v71 = vld [vmem:[%s3 + $0x10] sm:$0xff]
    %v72 = vld [vmem:[%s3 + $0x18] sm:$0xff]
    %v73 = vld [vmem:[%s4] sm:$0x1]
    %v75 = vlaneseq
    %v76 = vshrl.u32 %v75, 7
    %v77 = vsub.s32 0, %v76
    %v78 = vrot.slane %v73, %v77
    %vm80 = vcmask 261120
    %v82 = vsel %vm80, %v67, 0
    %v85 = vsel %vm80, %v68, 0
    %87 = vmatprep.subr.mxu0 0.0
    %88 = vmatpush1.msra.mxu0 0.0
    %89 = vmatprep.subr.mxu0 0.0
    %90 = vmatpush1.msra.mxu0 0.0
    %91 = vmatprep.subr.mxu0 0.0
    %92 = vmatpush1.msra.mxu0 0.0
    %93 = vmatprep.subr.mxu0 0.0
    %94 = vmatpush1.msra.mxu0 0.0
    %95 = vmatprep.subr.mxu0 0.0
    %96 = vmatpush1.msra.mxu0 0.0
    %97 = vmatprep.subr.mxu0 0.0
    %98 = vmatpush1.msra.mxu0 0.0
    %99 = vmatprep.subr.mxu0 0.0
    %100 = vmatpush1.msra.mxu0 0.0
    %101 = vmatprep.subr.mxu0 0.0
    %102 = vmatpush1.msra.mxu0 0.0
    %103 = vmatprep.subr.mxu0 0.0
    %104 = vmatpush1.msra.mxu0 0.0
    %105 = vmatprep.subr.mxu0 0.0
    %106 = vmatpush1.msra.mxu0 0.0
    %107 = vmatprep.subr.mxu0 0.0
    %108 = vmatpush1.msra.mxu0 0.0
    %109 = vmatprep.subr.mxu0 0.0
    %110 = vmatpush1.msra.mxu0 0.0
    %111 = vmatprep.subr.mxu0 0.0
    %112 = vmatpush1.msra.mxu0 %v72
    %113 = vmatprep.subr.mxu0 0.0
    %114 = vmatpush1.msra.mxu0 %v71
    %115 = vmatprep.subr.mxu0 0.0
    %116 = vmatpush1.msra.mxu0 %v70
    %117 = vmatprep.subr.mxu0 0.0
    %118 = vmatpush1.msra.mxu0 %v69
    %119 = vmatprep.subr.mxu0 0.0
    %120 = vmatpush2.msra.mxu0 0.0
    %121 = vmatprep.subr.mxu0 0.0
    %122 = vmatpush2.msra.mxu0 0.0
    %123 = vmatprep.subr.mxu0 0.0
    %124 = vmatpush2.msra.mxu0 0.0
    %125 = vmatprep.subr.mxu0 0.0
    %126 = vmatpush2.msra.mxu0 0.0
    %127 = vmatprep.subr.mxu0 0.0
    %128 = vmatpush2.msra.mxu0 0.0
    %129 = vmatprep.subr.mxu0 0.0
    %130 = vmatpush2.msra.mxu0 0.0
    %131 = vmatprep.subr.mxu0 0.0
    %132 = vmatpush2.msra.mxu0 0.0
    %133 = vmatprep.subr.mxu0 0.0
    %134 = vmatpush2.msra.mxu0 0.0
    %135 = vmatprep.subr.mxu0 0.0
    %136 = vmatpush2.msra.mxu0 0.0
    %137 = vmatprep.subr.mxu0 0.0
    %138 = vmatpush2.msra.mxu0 0.0
    %139 = vmatprep.subr.mxu0 0.0
    %140 = vmatpush2.msra.mxu0 0.0
    %141 = vmatprep.subr.mxu0 0.0
    %142 = vmatpush2.msra.mxu0 0.0
    %143 = vmatprep.subr.mxu0 0.0
    %144 = vmatpush2.msra.mxu0 0.0
    %145 = vmatprep.subr.mxu0 0.0
    %146 = vmatpush2.msra.mxu0 0.0
    %147 = vmatprep.subr.mxu0 0.0
    %148 = vmatpush2.msra.mxu0 0.0
    %149 = vmatprep.subr.mxu0 0.0
    %150 = vmatpush2.msra.mxu0 0.0
    %151 = vmatprep.mubr.f32.mxu0 0.0
    %152 = vmatmul.mubr.f32.gmra.mxu0 %v82
    %v153 = vpop.f32.mrf.mxu0
    %v154 = vadd.f32 %v78, %v153
    %v155 = vpop.f32.mrf.mxu0
    %156 = vmatprep.mubr.f32.mxu0 0.0
    %157 = vmatmul.mubr.f32.gmra.mxu0 %v85
    %v158 = vpop.f32.mrf.mxu0
    %v159 = vadd.f32 %v78, %v158
    %v160 = vpop.f32.mrf.mxu0
    %161 = vdwg.mxu0
    %v162 = vadd.f32 %v154, %v65
    %v163 = vadd.f32 %v159, %v66
    %v164 = vld [vmem:[%s5] sm:$0x1]
    %v165 = vld [vmem:[%s6] sm:$0x1]
    %v166 = vsel %vm80, %v162, 0.0
    %167 = vadd.xlane.f32.xlu0 %v166
    %v168 = vpop.xlane.xlu0 %167
    %v169 = vsel %vm80, %v163, 0.0
    %170 = vadd.xlane.f32.xlu0 %v169
    %v171 = vpop.xlane.xlu0 %170
    %v172 = vrcp.pop 32.0
    %v173 = vmul.f32 %v168, %v172
    %v174 = vmul.f32 %v171, %v172
    %v175 = vsub.f32 %v162, %v173
    %v176 = vsub.f32 %v163, %v174
    %v177 = vmul.f32 %v175, %v175
    %v178 = vmul.f32 %v176, %v176
    %v179 = vsel %vm80, %v177, 0.0
    %180 = vadd.xlane.f32.xlu0 %v179
    %v181 = vpop.xlane.xlu0 %180
    %v182 = vsel %vm80, %v178, 0.0
    %183 = vadd.xlane.f32.xlu0 %v182
    %v184 = vpop.xlane.xlu0 %183
    %v185 = vmul.f32 %v181, %v172
    %v186 = vmul.f32 %v184, %v172
    %v187 = vadd.f32 %v185, 1e-12
    %v188 = vadd.f32 %v186, 1e-12
    %v189 = vrsqrt.pop %v187
    %v190 = vrsqrt.pop %v188
    %v191 = vmul.f32 %v175, %v189
    %v192 = vmul.f32 %v176, %v190
    %v194 = vlaneseq
    %v195 = vshrl.u32 %v194, 7
    %v196 = vsub.s32 0, %v195
    %v197 = vrot.slane %v164, %v196
    %v199 = vmul.f32 %v197, %v191
    %v200 = vmul.f32 %v197, %v192
    %v202 = vlaneseq
    %v203 = vshrl.u32 %v202, 7
    %v204 = vsub.s32 0, %v203
    %v205 = vrot.slane %v165, %v204
    %v207 = vadd.f32 %v199, %v205
    %v208 = vadd.f32 %v200, %v205
    %v209 = vld [vmem:[%s7] sm:$0xff]
    %v210 = vld [vmem:[%s7 + $0x8] sm:$0xff]
    %v211 = vld [vmem:[%s7 + $0x10] sm:$0xff]
    %v212 = vld [vmem:[%s7 + $0x18] sm:$0xff]
    %v213 = vld [vmem:[%s8] sm:$0x1]
    %v215 = vlaneseq
    %v216 = vshrl.u32 %v215, 7
    %v217 = vsub.s32 0, %v216
    %v218 = vrot.slane %v213, %v217
    %v221 = vsel %vm80, %v207, 0
    %v224 = vsel %vm80, %v208, 0
    %226 = vmatprep.subr.mxu0 0.0
    %227 = vmatpush1.msra.mxu0 0.0
    %228 = vmatprep.subr.mxu0 0.0
    %229 = vmatpush1.msra.mxu0 0.0
    %230 = vmatprep.subr.mxu0 0.0
    %231 = vmatpush1.msra.mxu0 0.0
    %232 = vmatprep.subr.mxu0 0.0
    %233 = vmatpush1.msra.mxu0 0.0
    %234 = vmatprep.subr.mxu0 0.0
    %235 = vmatpush1.msra.mxu0 0.0
    %236 = vmatprep.subr.mxu0 0.0
    %237 = vmatpush1.msra.mxu0 0.0
    %238 = vmatprep.subr.mxu0 0.0
    %239 = vmatpush1.msra.mxu0 0.0
    %240 = vmatprep.subr.mxu0 0.0
    %241 = vmatpush1.msra.mxu0 0.0
    %242 = vmatprep.subr.mxu0 0.0
    %243 = vmatpush1.msra.mxu0 0.0
    %244 = vmatprep.subr.mxu0 0.0
    %245 = vmatpush1.msra.mxu0 0.0
    %246 = vmatprep.subr.mxu0 0.0
    %247 = vmatpush1.msra.mxu0 0.0
    %248 = vmatprep.subr.mxu0 0.0
    %249 = vmatpush1.msra.mxu0 0.0
    %250 = vmatprep.subr.mxu0 0.0
    %251 = vmatpush1.msra.mxu0 %v212
    %252 = vmatprep.subr.mxu0 0.0
    %253 = vmatpush1.msra.mxu0 %v211
    %254 = vmatprep.subr.mxu0 0.0
    %255 = vmatpush1.msra.mxu0 %v210
    %256 = vmatprep.subr.mxu0 0.0
    %257 = vmatpush1.msra.mxu0 %v209
    %258 = vmatprep.subr.mxu0 0.0
    %259 = vmatpush2.msra.mxu0 0.0
    %260 = vmatprep.subr.mxu0 0.0
    %261 = vmatpush2.msra.mxu0 0.0
    %262 = vmatprep.subr.mxu0 0.0
    %263 = vmatpush2.msra.mxu0 0.0
    %264 = vmatprep.subr.mxu0 0.0
    %265 = vmatpush2.msra.mxu0 0.0
    %266 = vmatprep.subr.mxu0 0.0
    %267 = vmatpush2.msra.mxu0 0.0
    %268 = vmatprep.subr.mxu0 0.0
    %269 = vmatpush2.msra.mxu0 0.0
    %270 = vmatprep.subr.mxu0 0.0
    %271 = vmatpush2.msra.mxu0 0.0
    %272 = vmatprep.subr.mxu0 0.0
    %273 = vmatpush2.msra.mxu0 0.0
    %274 = vmatprep.subr.mxu0 0.0
    %275 = vmatpush2.msra.mxu0 0.0
    %276 = vmatprep.subr.mxu0 0.0
    %277 = vmatpush2.msra.mxu0 0.0
    %278 = vmatprep.subr.mxu0 0.0
    %279 = vmatpush2.msra.mxu0 0.0
    %280 = vmatprep.subr.mxu0 0.0
    %281 = vmatpush2.msra.mxu0 0.0
    %282 = vmatprep.subr.mxu0 0.0
    %283 = vmatpush2.msra.mxu0 0.0
    %284 = vmatprep.subr.mxu0 0.0
    %285 = vmatpush2.msra.mxu0 0.0
    %286 = vmatprep.subr.mxu0 0.0
    %287 = vmatpush2.msra.mxu0 0.0
    %288 = vmatprep.subr.mxu0 0.0
    %289 = vmatpush2.msra.mxu0 0.0
    %290 = vmatprep.mubr.f32.mxu0 0.0
    %291 = vmatmul.mubr.f32.gmra.mxu0 %v221
    %v292 = vpop.f32.mrf.mxu0
    %v293 = vadd.f32 %v218, %v292
    %v294 = vpop.f32.mrf.mxu0
    %295 = vmatprep.mubr.f32.mxu0 0.0
    %296 = vmatmul.mubr.f32.gmra.mxu0 %v224
    %v297 = vpop.f32.mrf.mxu0
    %v298 = vadd.f32 %v218, %v297
    %v299 = vpop.f32.mrf.mxu0
    %300 = vdwg.mxu0
    %v301 = vmul.f32 %v293, 0.5
    %v302 = vmul.f32 %v298, 0.5
    %v303 = vrcp.pop 1.41421
    %v304 = vmul.f32 %v293, %v303
    %v305 = vmul.f32 %v298, %v303
    %v306 = verf.f32.pop %v304
    %v307 = verf.f32.pop %v305
    %v308 = vadd.f32 %v306, 1.0
    %v309 = vadd.f32 %v307, 1.0
    %v310 = vmul.f32 %v301, %v308
    %v311 = vmul.f32 %v302, %v309
    %v312 = vld [vmem:[%s9] sm:$0xff]
    %v313 = vld [vmem:[%s9 + $0x8] sm:$0xff]
    %v314 = vld [vmem:[%s9 + $0x10] sm:$0xff]
    %v315 = vld [vmem:[%s9 + $0x18] sm:$0xff]
    %v316 = vld [vmem:[%s9 + $0x20] sm:$0xff]
    %v317 = vld [vmem:[%s9 + $0x28] sm:$0xff]
    %v318 = vld [vmem:[%s9 + $0x30] sm:$0xff]
    %v319 = vld [vmem:[%s9 + $0x38] sm:$0xff]
    %v320 = vld [vmem:[%s9 + $0x40] sm:$0xff]
    %v321 = vld [vmem:[%s9 + $0x48] sm:$0xff]
    %v322 = vld [vmem:[%s9 + $0x50] sm:$0xff]
    %v323 = vld [vmem:[%s9 + $0x58] sm:$0xff]
    %v324 = vld [vmem:[%s9 + $0x60] sm:$0xff]
    %v325 = vld [vmem:[%s9 + $0x68] sm:$0xff]
    %v326 = vld [vmem:[%s9 + $0x70] sm:$0xff]
    %v327 = vld [vmem:[%s9 + $0x78] sm:$0xff]
    %v328 = vld [vmem:[%s10] sm:$0x1]
    %v330 = vlaneseq
    %v331 = vshrl.u32 %v330, 7
    %v332 = vsub.s32 0, %v331
    %v333 = vrot.slane %v328, %v332
    %335 = vmatprep.subr.mxu0 0.0
    %336 = vmatpush1.msra.mxu0 %v327
    %337 = vmatprep.subr.mxu0 0.0
    %338 = vmatpush1.msra.mxu0 %v326
    %339 = vmatprep.subr.mxu0 0.0
    %340 = vmatpush1.msra.mxu0 %v325
    %341 = vmatprep.subr.mxu0 0.0
    %342 = vmatpush1.msra.mxu0 %v324
    %343 = vmatprep.subr.mxu0 0.0
    %344 = vmatpush1.msra.mxu0 %v323
    %345 = vmatprep.subr.mxu0 0.0
    %346 = vmatpush1.msra.mxu0 %v322
    %347 = vmatprep.subr.mxu0 0.0
    %348 = vmatpush1.msra.mxu0 %v321
    %349 = vmatprep.subr.mxu0 0.0
    %350 = vmatpush1.msra.mxu0 %v320
    %351 = vmatprep.subr.mxu0 0.0
    %352 = vmatpush1.msra.mxu0 %v319
    %353 = vmatprep.subr.mxu0 0.0
    %354 = vmatpush1.msra.mxu0 %v318
    %355 = vmatprep.subr.mxu0 0.0
    %356 = vmatpush1.msra.mxu0 %v317
    %357 = vmatprep.subr.mxu0 0.0
    %358 = vmatpush1.msra.mxu0 %v316
    %359 = vmatprep.subr.mxu0 0.0
    %360 = vmatpush1.msra.mxu0 %v315
    %361 = vmatprep.subr.mxu0 0.0
    %362 = vmatpush1.msra.mxu0 %v314
    %363 = vmatprep.subr.mxu0 0.0
    %364 = vmatpush1.msra.mxu0 %v313
    %365 = vmatprep.subr.mxu0 0.0
    %366 = vmatpush1.msra.mxu0 %v312
    %367 = vmatprep.subr.mxu0 0.0
    %368 = vmatpush2.msra.mxu0 0.0
    %369 = vmatprep.subr.mxu0 0.0
    %370 = vmatpush2.msra.mxu0 0.0
    %371 = vmatprep.subr.mxu0 0.0
    %372 = vmatpush2.msra.mxu0 0.0
    %373 = vmatprep.subr.mxu0 0.0
    %374 = vmatpush2.msra.mxu0 0.0
    %375 = vmatprep.subr.mxu0 0.0
    %376 = vmatpush2.msra.mxu0 0.0
    %377 = vmatprep.subr.mxu0 0.0
    %378 = vmatpush2.msra.mxu0 0.0
    %379 = vmatprep.subr.mxu0 0.0
    %380 = vmatpush2.msra.mxu0 0.0
    %381 = vmatprep.subr.mxu0 0.0
    %382 = vmatpush2.msra.mxu0 0.0
    %383 = vmatprep.subr.mxu0 0.0
    %384 = vmatpush2.msra.mxu0 0.0
    %385 = vmatprep.subr.mxu0 0.0
    %386 = vmatpush2.msra.mxu0 0.0
    %387 = vmatprep.subr.mxu0 0.0
    %388 = vmatpush2.msra.mxu0 0.0
    %389 = vmatprep.subr.mxu0 0.0
    %390 = vmatpush2.msra.mxu0 0.0
    %391 = vmatprep.subr.mxu0 0.0
    %392 = vmatpush2.msra.mxu0 0.0
    %393 = vmatprep.subr.mxu0 0.0
    %394 = vmatpush2.msra.mxu0 0.0
    %395 = vmatprep.subr.mxu0 0.0
    %396 = vmatpush2.msra.mxu0 0.0
    %397 = vmatprep.subr.mxu0 0.0
    %398 = vmatpush2.msra.mxu0 0.0
    %399 = vmatprep.mubr.f32.mxu0 0.0
    %400 = vmatmul.mubr.f32.gmra.mxu0 %v310
    %v401 = vpop.f32.mrf.mxu0
    %v402 = vadd.f32 %v333, %v401
    %v403 = vpop.f32.mrf.mxu0
    %404 = vmatprep.mubr.f32.mxu0 0.0
    %405 = vmatmul.mubr.f32.gmra.mxu0 %v311
    %v406 = vpop.f32.mrf.mxu0
    %v407 = vadd.f32 %v333, %v406
    %v408 = vpop.f32.mrf.mxu0
    %409 = vdwg.mxu0
    %v410 = vadd.f32 %v402, %v207
    %v411 = vadd.f32 %v407, %v208
    %v412 = vld [vmem:[%s11] sm:$0x1]
    %v413 = vld [vmem:[%s12] sm:$0x1]
    %v414 = vsel %vm80, %v410, 0.0
    %415 = vadd.xlane.f32.xlu0 %v414
    %v416 = vpop.xlane.xlu0 %415
    %v417 = vsel %vm80, %v411, 0.0
    %418 = vadd.xlane.f32.xlu0 %v417
    %v419 = vpop.xlane.xlu0 %418
    %v420 = vmul.f32 %v416, %v172
    %v421 = vmul.f32 %v419, %v172
    %v422 = vsub.f32 %v410, %v420
    %v423 = vsub.f32 %v411, %v421
    %v424 = vmul.f32 %v422, %v422
    %v425 = vmul.f32 %v423, %v423
    %v426 = vsel %vm80, %v424, 0.0
    %427 = vadd.xlane.f32.xlu0 %v426
    %v428 = vpop.xlane.xlu0 %427
    %v429 = vsel %vm80, %v425, 0.0
    %430 = vadd.xlane.f32.xlu0 %v429
    %v431 = vpop.xlane.xlu0 %430
    %v432 = vmul.f32 %v428, %v172
    %v433 = vmul.f32 %v431, %v172
    %v434 = vadd.f32 %v432, 1e-12
    %v435 = vadd.f32 %v433, 1e-12
    %v436 = vrsqrt.pop %v434
    %v437 = vrsqrt.pop %v435
    %v438 = vmul.f32 %v422, %v436
    %v439 = vmul.f32 %v423, %v437
    %v441 = vlaneseq
    %v442 = vshrl.u32 %v441, 7
    %v443 = vsub.s32 0, %v442
    %v444 = vrot.slane %v412, %v443
    %v446 = vmul.f32 %v444, %v438
    %v447 = vmul.f32 %v444, %v439
    %v449 = vlaneseq
    %v450 = vshrl.u32 %v449, 7
    %v451 = vsub.s32 0, %v450
    %v452 = vrot.slane %v413, %v451
    %v454 = vadd.f32 %v446, %v452
    %v455 = vadd.f32 %v447, %v452
    %v456 = vld [vmem:[%s2] sm:$0xff]
    %v457 = vld [vmem:[%s2 + $0x8] sm:$0xff]
    %v458 = vld [vmem:[%s13] sm:$0xff]
    %v459 = vld [vmem:[%s13 + $0x8] sm:$0xff]
    %v460 = vld [vmem:[%s13 + $0x10] sm:$0xff]
    %v461 = vld [vmem:[%s13 + $0x18] sm:$0xff]
    %v462 = vld [vmem:[%s15] sm:$0x1]
    %v464 = vlaneseq
    %v465 = vshrl.u32 %v464, 7
    %v466 = vsub.s32 0, %v465
    %v467 = vrot.slane %v462, %v466
    %v470 = vsel %vm80, %v454, 0
    %v473 = vsel %vm80, %v455, 0
    %475 = vmatprep.subr.mxu0 0.0
    %476 = vmatpush1.msra.mxu0 0.0
    %477 = vmatprep.subr.mxu0 0.0
    %478 = vmatpush1.msra.mxu0 0.0
    %479 = vmatprep.subr.mxu0 0.0
    %480 = vmatpush1.msra.mxu0 0.0
    %481 = vmatprep.subr.mxu0 0.0
    %482 = vmatpush1.msra.mxu0 0.0
    %483 = vmatprep.subr.mxu0 0.0
    %484 = vmatpush1.msra.mxu0 0.0
    %485 = vmatprep.subr.mxu0 0.0
    %486 = vmatpush1.msra.mxu0 0.0
    %487 = vmatprep.subr.mxu0 0.0
    %488 = vmatpush1.msra.mxu0 0.0
    %489 = vmatprep.subr.mxu0 0.0
    %490 = vmatpush1.msra.mxu0 0.0
    %491 = vmatprep.subr.mxu0 0.0
    %492 = vmatpush1.msra.mxu0 0.0
    %493 = vmatprep.subr.mxu0 0.0
    %494 = vmatpush1.msra.mxu0 0.0
    %495 = vmatprep.subr.mxu0 0.0
    %496 = vmatpush1.msra.mxu0 0.0
    %497 = vmatprep.subr.mxu0 0.0
    %498 = vmatpush1.msra.mxu0 0.0
    %499 = vmatprep.subr.mxu0 0.0
    %500 = vmatpush1.msra.mxu0 %v461
    %501 = vmatprep.subr.mxu0 0.0
    %502 = vmatpush1.msra.mxu0 %v460
    %503 = vmatprep.subr.mxu0 0.0
    %504 = vmatpush1.msra.mxu0 %v459
    %505 = vmatprep.subr.mxu0 0.0
    %506 = vmatpush1.msra.mxu0 %v458
    %507 = vmatprep.subr.mxu0 0.0
    %508 = vmatpush2.msra.mxu0 0.0
    %509 = vmatprep.subr.mxu0 0.0
    %510 = vmatpush2.msra.mxu0 0.0
    %511 = vmatprep.subr.mxu0 0.0
    %512 = vmatpush2.msra.mxu0 0.0
    %513 = vmatprep.subr.mxu0 0.0
    %514 = vmatpush2.msra.mxu0 0.0
    %515 = vmatprep.subr.mxu0 0.0
    %516 = vmatpush2.msra.mxu0 0.0
    %517 = vmatprep.subr.mxu0 0.0
    %518 = vmatpush2.msra.mxu0 0.0
    %519 = vmatprep.subr.mxu0 0.0
    %520 = vmatpush2.msra.mxu0 0.0
    %521 = vmatprep.subr.mxu0 0.0
    %522 = vmatpush2.msra.mxu0 0.0
    %523 = vmatprep.subr.mxu0 0.0
    %524 = vmatpush2.msra.mxu0 0.0
    %525 = vmatprep.subr.mxu0 0.0
    %526 = vmatpush2.msra.mxu0 0.0
    %527 = vmatprep.subr.mxu0 0.0
    %528 = vmatpush2.msra.mxu0 0.0
    %529 = vmatprep.subr.mxu0 0.0
    %530 = vmatpush2.msra.mxu0 0.0
    %531 = vmatprep.subr.mxu0 0.0
    %532 = vmatpush2.msra.mxu0 0.0
    %533 = vmatprep.subr.mxu0 0.0
    %534 = vmatpush2.msra.mxu0 0.0
    %535 = vmatprep.subr.mxu0 0.0
    %536 = vmatpush2.msra.mxu0 0.0
    %537 = vmatprep.subr.mxu0 0.0
    %538 = vmatpush2.msra.mxu0 0.0
    %539 = vmatprep.mubr.f32.mxu0 0.0
    %540 = vmatmul.mubr.f32.gmra.mxu0 %v470
    %v541 = vpop.f32.mrf.mxu0
    %v542 = vadd.f32 %v467, %v541
    %v543 = vpop.f32.mrf.mxu0
    %544 = vmatprep.mubr.f32.mxu0 0.0
    %545 = vmatmul.mubr.f32.gmra.mxu0 %v473
    %v546 = vpop.f32.mrf.mxu0
    %v547 = vadd.f32 %v467, %v546
    %v548 = vpop.f32.mrf.mxu0
    %549 = vdwg.mxu0
    %v550 = vld [vmem:[%s14] sm:$0xff]
    %v551 = vld [vmem:[%s14 + $0x8] sm:$0xff]
    %v552 = vld [vmem:[%s14 + $0x10] sm:$0xff]
    %v553 = vld [vmem:[%s14 + $0x18] sm:$0xff]
    %v554 = vld [vmem:[%s16] sm:$0x1]
    %v556 = vlaneseq
    %v557 = vshrl.u32 %v556, 7
    %v558 = vsub.s32 0, %v557
    %v559 = vrot.slane %v554, %v558
    %v562 = vsel %vm80, %v456, 0
    %v565 = vsel %vm80, %v457, 0
    %567 = vmatprep.subr.mxu0 0.0
    %568 = vmatpush1.msra.mxu0 0.0
    %569 = vmatprep.subr.mxu0 0.0
    %570 = vmatpush1.msra.mxu0 0.0
    %571 = vmatprep.subr.mxu0 0.0
    %572 = vmatpush1.msra.mxu0 0.0
    %573 = vmatprep.subr.mxu0 0.0
    %574 = vmatpush1.msra.mxu0 0.0
    %575 = vmatprep.subr.mxu0 0.0
    %576 = vmatpush1.msra.mxu0 0.0
    %577 = vmatprep.subr.mxu0 0.0
    %578 = vmatpush1.msra.mxu0 0.0
    %579 = vmatprep.subr.mxu0 0.0
    %580 = vmatpush1.msra.mxu0 0.0
    %581 = vmatprep.subr.mxu0 0.0
    %582 = vmatpush1.msra.mxu0 0.0
    %583 = vmatprep.subr.mxu0 0.0
    %584 = vmatpush1.msra.mxu0 0.0
    %585 = vmatprep.subr.mxu0 0.0
    %586 = vmatpush1.msra.mxu0 0.0
    %587 = vmatprep.subr.mxu0 0.0
    %588 = vmatpush1.msra.mxu0 0.0
    %589 = vmatprep.subr.mxu0 0.0
    %590 = vmatpush1.msra.mxu0 0.0
    %591 = vmatprep.subr.mxu0 0.0
    %592 = vmatpush1.msra.mxu0 %v553
    %593 = vmatprep.subr.mxu0 0.0
    %594 = vmatpush1.msra.mxu0 %v552
    %595 = vmatprep.subr.mxu0 0.0
    %596 = vmatpush1.msra.mxu0 %v551
    %597 = vmatprep.subr.mxu0 0.0
    %598 = vmatpush1.msra.mxu0 %v550
    %599 = vmatprep.subr.mxu0 0.0
    %600 = vmatpush2.msra.mxu0 0.0
    %601 = vmatprep.subr.mxu0 0.0
    %602 = vmatpush2.msra.mxu0 0.0
    %603 = vmatprep.subr.mxu0 0.0
    %604 = vmatpush2.msra.mxu0 0.0
    %605 = vmatprep.subr.mxu0 0.0
    %606 = vmatpush2.msra.mxu0 0.0
    %607 = vmatprep.subr.mxu0 0.0
    %608 = vmatpush2.msra.mxu0 0.0
    %609 = vmatprep.subr.mxu0 0.0
    %610 = vmatpush2.msra.mxu0 0.0
    %611 = vmatprep.subr.mxu0 0.0
    %612 = vmatpush2.msra.mxu0 0.0
    %613 = vmatprep.subr.mxu0 0.0
    %614 = vmatpush2.msra.mxu0 0.0
    %615 = vmatprep.subr.mxu0 0.0
    %616 = vmatpush2.msra.mxu0 0.0
    %617 = vmatprep.subr.mxu0 0.0
    %618 = vmatpush2.msra.mxu0 0.0
    %619 = vmatprep.subr.mxu0 0.0
    %620 = vmatpush2.msra.mxu0 0.0
    %621 = vmatprep.subr.mxu0 0.0
    %622 = vmatpush2.msra.mxu0 0.0
    %623 = vmatprep.subr.mxu0 0.0
    %624 = vmatpush2.msra.mxu0 0.0
    %625 = vmatprep.subr.mxu0 0.0
    %626 = vmatpush2.msra.mxu0 0.0
    %627 = vmatprep.subr.mxu0 0.0
    %628 = vmatpush2.msra.mxu0 0.0
    %629 = vmatprep.subr.mxu0 0.0
    %630 = vmatpush2.msra.mxu0 0.0
    %631 = vmatprep.mubr.f32.mxu0 0.0
    %632 = vmatmul.mubr.f32.gmra.mxu0 %v562
    %v633 = vpop.f32.mrf.mxu0
    %v634 = vadd.f32 %v559, %v633
    %v635 = vpop.f32.mrf.mxu0
    %636 = vmatprep.mubr.f32.mxu0 0.0
    %637 = vmatmul.mubr.f32.gmra.mxu0 %v565
    %v638 = vpop.f32.mrf.mxu0
    %v639 = vadd.f32 %v559, %v638
    %v640 = vpop.f32.mrf.mxu0
    %641 = vdwg.mxu0
    %v642 = vadd.f32 %v542, %v634
    %v643 = vadd.f32 %v547, %v639
    %v644 = vxor.u32 %v642, 2147483648
    %v645 = vxor.u32 %v643, 2147483648
    %v646 = vmul.f32 %v644, 1.442695
    %v647 = vpow.pop %v646
    %v648 = vmul.f32 %v645, 1.442695
    %v649 = vpow.pop %v648
    %v650 = vadd.f32 %v647, 1.0
    %v651 = vadd.f32 %v649, 1.0
    %v652 = vrcp.pop %v650
    %v653 = vmul.f32 1.0, %v652
    %v654 = vrcp.pop %v651
    %v655 = vmul.f32 1.0, %v654
    %658 = vrot.lane.b32.xlu0 %v634, 64
    %v659 = vpop.permute.xlu0 %658
    %660 = vrot.lane.b32.xlu0 %v639, 64
    %v661 = vpop.permute.xlu0 %660
    %v664 = vmul.f32 %v653, %v659
    %v665 = vmul.f32 %v655, %v661
    %668 = vrot.lane.b32.xlu0 %v664, 64
    %v669 = vpop.permute.xlu0 %668
    %670 = vrot.lane.b32.xlu0 %v665, 64
    %v671 = vpop.permute.xlu0 %670
    %v674 = vadd.f32 %v542, %v669
    %v675 = vadd.f32 %v547, %v671
    %v676 = vtanh.pop %v674
    %v677 = vtanh.pop %v675
    %v678 = vsub.f32 1.0, %v653
    %v679 = vsub.f32 1.0, %v655
    %682 = vrot.lane.b32.xlu0 %v676, 96
    %v683 = vpop.permute.xlu0 %682
    %684 = vrot.lane.b32.xlu0 %v677, 96
    %v685 = vpop.permute.xlu0 %684
    %v688 = vmul.f32 %v678, %v683
    %v689 = vmul.f32 %v679, %v685
    %690 = vrot.lane.b32.xlu0 %v456, 32
    %v691 = vpop.permute.xlu0 %690
    %692 = vrot.lane.b32.xlu0 %v457, 32
    %v693 = vpop.permute.xlu0 %692
    %v696 = vmul.f32 %v653, %v691
    %v697 = vmul.f32 %v655, %v693
    %v698 = vadd.f32 %v688, %v696
    %v699 = vadd.f32 %v689, %v697
    %702 = vrot.lane.b32.xlu0 %v698, 96
    %v703 = vpop.permute.xlu0 %702
    %704 = vrot.lane.b32.xlu0 %v699, 96
    %v705 = vpop.permute.xlu0 %704
    %708 = vst.msk [vmem:[#allocation2] sm:$0xff] %vm80, %v703
    %709 = vst.msk [vmem:[#allocation2 + $0x8] sm:$0xff] %vm80, %v705
    %v710 = vld [vmem:[%s17] sm:$0x1]
    %v711 = vld [vmem:[%s18] sm:$0x1]
    %v712 = vsel %vm80, %v703, 0.0
    %713 = vadd.xlane.f32.xlu0 %v712
    %v714 = vpop.xlane.xlu0 %713
    %v715 = vsel %vm80, %v705, 0.0
    %716 = vadd.xlane.f32.xlu0 %v715
    %v717 = vpop.xlane.xlu0 %716
    %v718 = vmul.f32 %v714, %v172
    %v719 = vmul.f32 %v717, %v172
    %v720 = vsub.f32 %v698, %v718
    %v721 = vsub.f32 %v699, %v719
    %v722 = vmul.f32 %v720, %v720
    %v723 = vmul.f32 %v721, %v721
    %726 = vrot.lane.b32.xlu0 %v722, 96
    %v727 = vpop.permute.xlu0 %726
    %728 = vrot.lane.b32.xlu0 %v723, 96
    %v729 = vpop.permute.xlu0 %728
    %v732 = vsel %vm80, %v727, 0.0
    %733 = vadd.xlane.f32.xlu0 %v732
    %v734 = vpop.xlane.xlu0 %733
    %v735 = vsel %vm80, %v729, 0.0
    %736 = vadd.xlane.f32.xlu0 %v735
    %v737 = vpop.xlane.xlu0 %736
    %v738 = vmul.f32 %v734, %v172
    %v739 = vmul.f32 %v737, %v172
    %v740 = vadd.f32 %v738, 1e-12
    %v741 = vadd.f32 %v739, 1e-12
    %v742 = vrsqrt.pop %v740
    %v743 = vrsqrt.pop %v741
    %v744 = vmul.f32 %v720, %v742
    %v745 = vmul.f32 %v721, %v743
    %v747 = vlaneseq
    %v748 = vshrl.u32 %v747, 7
    %v749 = vsub.s32 0, %v748
    %v750 = vrot.slane %v710, %v749
    %754 = vrot.lane.b32.xlu0 %v744, 96
    %v755 = vpop.permute.xlu0 %754
    %756 = vrot.lane.b32.xlu0 %v745, 96
    %v757 = vpop.permute.xlu0 %756
    %v760 = vmul.f32 %v750, %v755
    %v761 = vmul.f32 %v750, %v757
    %v763 = vlaneseq
    %v764 = vshrl.u32 %v763, 7
    %v765 = vsub.s32 0, %v764
    %v766 = vrot.slane %v711, %v765
    %v768 = vadd.f32 %v760, %v766
    %v769 = vadd.f32 %v761, %v766
    %770 = vst.msk [vmem:[%s20] sm:$0xff] %vm80, %v768
    %771 = vst.msk [vmem:[%s20 + $0x8] sm:$0xff] %vm80, %v769
    // Predicated region
    $region78: #{molgt_graphpred_forward.12} parent=1 // pred_check
      _
    $region79: #{molgt_graphpred_forward.12} parent=1 // pred_check_branch
      %773 = sbr.rel (0) target = $region81
    $region80: #{molgt_graphpred_forward.12} parent=1 // pred_region
      %s775 = ssub.s32 256, 256
      %776 = vsyncadd [#allocation3], %s775
      %s777 = sshll.u32 [#allocation2], 4
      %s778 = int_to_ptr.vmem [resolvable:$true] %s777
      %783 = dma.vmem_to_hbm [thread:$0]  %s778, 256, %s19, [#allocation3], 128, 128, 8
    $region81: #{molgt_graphpred_forward.12} parent=1 // pred_fallthru
      _
    // Predicated region
    $region82: #{molgt_graphpred_forward.12} parent=1 // pred_check
      _
    $region83: #{molgt_graphpred_forward.12} parent=1 // pred_check_branch
      %785 = sbr.rel (0) target = $region85
    $region84: #{molgt_graphpred_forward.12} parent=1 // pred_region
      _
    $region85: #{molgt_graphpred_forward.12} parent=1 // pred_fallthru
      _
    // Predicated region
    $region86: #{molgt_graphpred_forward.12} parent=1 // pred_check
      _
    $region87: #{molgt_graphpred_forward.12} parent=1 // pred_check_branch
      %787 = sbr.rel (0) target = $region89
    $region88: #{molgt_graphpred_forward.12} parent=1 // pred_region
      %788 = dma.done [#allocation3], 256
    $region89: #{molgt_graphpred_forward.12} parent=1 // pred_fallthru
      _
    // Predicated region
    $region90: #{molgt_graphpred_forward.12} parent=1 // pred_check
      _
    $region91: #{molgt_graphpred_forward.12} parent=1 // pred_check_branch
      %790 = sbr.rel (0) target = $region93
    $region92: #{molgt_graphpred_forward.12} parent=1 // pred_region
      _
    $region93: #{molgt_graphpred_forward.12} parent=1 // pred_fallthru
      _
    %791 = vsyncpa [#allocation3], 1

// kernel: molgt_graphpred_forward.10
$region0: #{molgt_graphpred_forward.10}
  #allocation0 [shape = 'u32[]', space=smem, size = 0x4, offset = 0x4, fixed_abs, tag = 'smem constant byte address 0x4 - core index']
  #allocation1 [shape = 'u32[144,128]{1,0:T(1,128)}', space=vmem, size = 0x12000, scoped, tag = 'internal scratch']
  %s0 = inlined_call_operand.vmem [shape: f32[16,32], index: 0, kind: input, shape index: {}]
  %s1 = inlined_call_operand.vmem [shape: f32[16,32], index: 1, kind: input, shape index: {}, may-alias: {1,2}]
  %s2 = inlined_call_operand.vmem [shape: f32[16,32], index: 2, kind: input, shape index: {}, may-alias: {1,2}]
  %s3 = inlined_call_operand.vmem [shape: f32[32,32], index: 3, kind: input, shape index: {}]
  %s4 = inlined_call_operand.vmem [shape: f32[1,32], index: 4, kind: input, shape index: {}]
  %s5 = inlined_call_operand.vmem [shape: f32[1,32], index: 5, kind: input, shape index: {}]
  %s6 = inlined_call_operand.vmem [shape: f32[1,32], index: 6, kind: input, shape index: {}]
  %s7 = inlined_call_operand.vmem [shape: f32[32,128], index: 7, kind: input, shape index: {}]
  %s8 = inlined_call_operand.vmem [shape: f32[1,128], index: 8, kind: input, shape index: {}]
  %s9 = inlined_call_operand.vmem [shape: f32[128,32], index: 9, kind: input, shape index: {}]
  %s10 = inlined_call_operand.vmem [shape: f32[1,32], index: 10, kind: input, shape index: {}]
  %s11 = inlined_call_operand.vmem [shape: f32[1,32], index: 11, kind: input, shape index: {}]
  %s12 = inlined_call_operand.vmem [shape: f32[1,32], index: 12, kind: input, shape index: {}]
  %s13 = inlined_call_operand.vmem [shape: f32[32,96], index: 13, kind: input, shape index: {}]
  %s14 = inlined_call_operand.vmem [shape: f32[32,96], index: 14, kind: input, shape index: {}]
  %s15 = inlined_call_operand.vmem [shape: f32[1,96], index: 15, kind: input, shape index: {}]
  %s16 = inlined_call_operand.vmem [shape: f32[1,96], index: 16, kind: input, shape index: {}]
  %s17 = inlined_call_operand.vmem [shape: f32[1,32], index: 17, kind: input, shape index: {}]
  %s18 = inlined_call_operand.vmem [shape: f32[1,32], index: 18, kind: input, shape index: {}]
  %s19 = inlined_call_operand.vmem [shape: f32[16,32], index: 19, kind: output, shape index: {0}]
  %s20 = inlined_call_operand.vmem [shape: f32[16,32], index: 20, kind: output, shape index: {1}]
  %21 = xla_tuple %s19, %s20
  %s22 = sld [smem:[#allocation0]]
  $region94: #{molgt_graphpred_forward.10} parent=0
    _
  %s24 = ssub.s32 1, %s22
  %s25 = scalar_select 0, %s24, %s22
  // Predicated region
  $region2: #{molgt_graphpred_forward.10} parent=0 // pred_check
    _
  $region3: #{molgt_graphpred_forward.10} parent=0 // pred_check_branch
    %27 = sbr.rel (0) target = $region5
  $region4: #{molgt_graphpred_forward.10} parent=0 // pred_region
    _
  $region5: #{molgt_graphpred_forward.10} parent=0 // pred_fallthru
    _
  // Predicated region
  $region6: #{molgt_graphpred_forward.10} parent=0 // pred_check
    _
  $region7: #{molgt_graphpred_forward.10} parent=0 // pred_check_branch
    %29 = sbr.rel (0) target = $region9
  $region8: #{molgt_graphpred_forward.10} parent=0 // pred_region
    _
  $region9: #{molgt_graphpred_forward.10} parent=0 // pred_fallthru
    _
  // Predicated region
  $region10: #{molgt_graphpred_forward.10} parent=0 // pred_check
    _
  $region11: #{molgt_graphpred_forward.10} parent=0 // pred_check_branch
    %31 = sbr.rel (0) target = $region13
  $region12: #{molgt_graphpred_forward.10} parent=0 // pred_region
    _
  $region13: #{molgt_graphpred_forward.10} parent=0 // pred_fallthru
    _
  // Predicated region
  $region14: #{molgt_graphpred_forward.10} parent=0 // pred_check
    _
  $region15: #{molgt_graphpred_forward.10} parent=0 // pred_check_branch
    %33 = sbr.rel (0) target = $region17
  $region16: #{molgt_graphpred_forward.10} parent=0 // pred_region
    _
  $region17: #{molgt_graphpred_forward.10} parent=0 // pred_fallthru
    _
  // Predicated region
  $region18: #{molgt_graphpred_forward.10} parent=0 // pred_check
    _
  $region19: #{molgt_graphpred_forward.10} parent=0 // pred_check_branch
    %35 = sbr.rel (0) target = $region21
  $region20: #{molgt_graphpred_forward.10} parent=0 // pred_region
    _
  $region21: #{molgt_graphpred_forward.10} parent=0 // pred_fallthru
    _
  // Predicated region
  $region22: #{molgt_graphpred_forward.10} parent=0 // pred_check
    _
  $region23: #{molgt_graphpred_forward.10} parent=0 // pred_check_branch
    %37 = sbr.rel (0) target = $region25
  $region24: #{molgt_graphpred_forward.10} parent=0 // pred_region
    _
  $region25: #{molgt_graphpred_forward.10} parent=0 // pred_fallthru
    _
  // Predicated region
  $region26: #{molgt_graphpred_forward.10} parent=0 // pred_check
    _
  $region27: #{molgt_graphpred_forward.10} parent=0 // pred_check_branch
    %39 = sbr.rel (0) target = $region29
  $region28: #{molgt_graphpred_forward.10} parent=0 // pred_region
    _
  $region29: #{molgt_graphpred_forward.10} parent=0 // pred_fallthru
    _
  // Predicated region
  $region30: #{molgt_graphpred_forward.10} parent=0 // pred_check
    _
  $region31: #{molgt_graphpred_forward.10} parent=0 // pred_check_branch
    %41 = sbr.rel (0) target = $region33
  $region32: #{molgt_graphpred_forward.10} parent=0 // pred_region
    _
  $region33: #{molgt_graphpred_forward.10} parent=0 // pred_fallthru
    _
  // Predicated region
  $region34: #{molgt_graphpred_forward.10} parent=0 // pred_check
    _
  $region35: #{molgt_graphpred_forward.10} parent=0 // pred_check_branch
    %43 = sbr.rel (0) target = $region37
  $region36: #{molgt_graphpred_forward.10} parent=0 // pred_region
    _
  $region37: #{molgt_graphpred_forward.10} parent=0 // pred_fallthru
    _
  // Predicated region
  $region38: #{molgt_graphpred_forward.10} parent=0 // pred_check
    _
  $region39: #{molgt_graphpred_forward.10} parent=0 // pred_check_branch
    %45 = sbr.rel (0) target = $region41
  $region40: #{molgt_graphpred_forward.10} parent=0 // pred_region
    _
  $region41: #{molgt_graphpred_forward.10} parent=0 // pred_fallthru
    _
  // Predicated region
  $region42: #{molgt_graphpred_forward.10} parent=0 // pred_check
    _
  $region43: #{molgt_graphpred_forward.10} parent=0 // pred_check_branch
    %47 = sbr.rel (0) target = $region45
  $region44: #{molgt_graphpred_forward.10} parent=0 // pred_region
    _
  $region45: #{molgt_graphpred_forward.10} parent=0 // pred_fallthru
    _
  // Predicated region
  $region46: #{molgt_graphpred_forward.10} parent=0 // pred_check
    _
  $region47: #{molgt_graphpred_forward.10} parent=0 // pred_check_branch
    %49 = sbr.rel (0) target = $region49
  $region48: #{molgt_graphpred_forward.10} parent=0 // pred_region
    _
  $region49: #{molgt_graphpred_forward.10} parent=0 // pred_fallthru
    _
  // Predicated region
  $region50: #{molgt_graphpred_forward.10} parent=0 // pred_check
    _
  $region51: #{molgt_graphpred_forward.10} parent=0 // pred_check_branch
    %51 = sbr.rel (0) target = $region53
  $region52: #{molgt_graphpred_forward.10} parent=0 // pred_region
    _
  $region53: #{molgt_graphpred_forward.10} parent=0 // pred_fallthru
    _
  // Predicated region
  $region54: #{molgt_graphpred_forward.10} parent=0 // pred_check
    _
  $region55: #{molgt_graphpred_forward.10} parent=0 // pred_check_branch
    %53 = sbr.rel (0) target = $region57
  $region56: #{molgt_graphpred_forward.10} parent=0 // pred_region
    _
  $region57: #{molgt_graphpred_forward.10} parent=0 // pred_fallthru
    _
  // Predicated region
  $region58: #{molgt_graphpred_forward.10} parent=0 // pred_check
    _
  $region59: #{molgt_graphpred_forward.10} parent=0 // pred_check_branch
    %55 = sbr.rel (0) target = $region61
  $region60: #{molgt_graphpred_forward.10} parent=0 // pred_region
    _
  $region61: #{molgt_graphpred_forward.10} parent=0 // pred_fallthru
    _
  // Predicated region
  $region62: #{molgt_graphpred_forward.10} parent=0 // pred_check
    _
  $region63: #{molgt_graphpred_forward.10} parent=0 // pred_check_branch
    %57 = sbr.rel (0) target = $region65
  $region64: #{molgt_graphpred_forward.10} parent=0 // pred_region
    _
  $region65: #{molgt_graphpred_forward.10} parent=0 // pred_fallthru
    _
  // Predicated region
  $region66: #{molgt_graphpred_forward.10} parent=0 // pred_check
    _
  $region67: #{molgt_graphpred_forward.10} parent=0 // pred_check_branch
    %59 = sbr.rel (0) target = $region69
  $region68: #{molgt_graphpred_forward.10} parent=0 // pred_region
    _
  $region69: #{molgt_graphpred_forward.10} parent=0 // pred_fallthru
    _
  // Predicated region
  $region70: #{molgt_graphpred_forward.10} parent=0 // pred_check
    _
  $region71: #{molgt_graphpred_forward.10} parent=0 // pred_check_branch
    %61 = sbr.rel (0) target = $region73
  $region72: #{molgt_graphpred_forward.10} parent=0 // pred_region
    _
  $region73: #{molgt_graphpred_forward.10} parent=0 // pred_fallthru
    _
  // Predicated region
  $region74: #{molgt_graphpred_forward.10} parent=0 // pred_check
    _
  $region75: #{molgt_graphpred_forward.10} parent=0 // pred_check_branch
    %63 = sbr.rel (0) target = $region77
  $region76: #{molgt_graphpred_forward.10} parent=0 // pred_region
    _
  $region77: #{molgt_graphpred_forward.10} parent=0 // pred_fallthru
    _
  %v64 = vld [vmem:[%s1] sm:$0xff]
  %v65 = vld [vmem:[%s1 + $0x8] sm:$0xff]
  %v66 = vld [vmem:[%s0] sm:$0xff]
  %v67 = vld [vmem:[%s0 + $0x8] sm:$0xff]
  %v68 = vld [vmem:[%s3] sm:$0xff]
  %v69 = vld [vmem:[%s3 + $0x8] sm:$0xff]
  %v70 = vld [vmem:[%s3 + $0x10] sm:$0xff]
  %v71 = vld [vmem:[%s3 + $0x18] sm:$0xff]
  %v72 = vld [vmem:[%s4] sm:$0x1]
  %v74 = vlaneseq
  %v75 = vshrl.u32 %v74, 7
  %v76 = vsub.s32 0, %v75
  %v77 = vrot.slane %v72, %v76
  %vm79 = vcmask 261120
  %v81 = vsel %vm79, %v66, 0
  %v84 = vsel %vm79, %v67, 0
  %86 = vmatprep.subr.mxu0 0.0
  %87 = vmatpush1.msra.mxu0 0.0
  %88 = vmatprep.subr.mxu0 0.0
  %89 = vmatpush1.msra.mxu0 0.0
  %90 = vmatprep.subr.mxu0 0.0
  %91 = vmatpush1.msra.mxu0 0.0
  %92 = vmatprep.subr.mxu0 0.0
  %93 = vmatpush1.msra.mxu0 0.0
  %94 = vmatprep.subr.mxu0 0.0
  %95 = vmatpush1.msra.mxu0 0.0
  %96 = vmatprep.subr.mxu0 0.0
  %97 = vmatpush1.msra.mxu0 0.0
  %98 = vmatprep.subr.mxu0 0.0
  %99 = vmatpush1.msra.mxu0 0.0
  %100 = vmatprep.subr.mxu0 0.0
  %101 = vmatpush1.msra.mxu0 0.0
  %102 = vmatprep.subr.mxu0 0.0
  %103 = vmatpush1.msra.mxu0 0.0
  %104 = vmatprep.subr.mxu0 0.0
  %105 = vmatpush1.msra.mxu0 0.0
  %106 = vmatprep.subr.mxu0 0.0
  %107 = vmatpush1.msra.mxu0 0.0
  %108 = vmatprep.subr.mxu0 0.0
  %109 = vmatpush1.msra.mxu0 0.0
  %110 = vmatprep.subr.mxu0 0.0
  %111 = vmatpush1.msra.mxu0 %v71
  %112 = vmatprep.subr.mxu0 0.0
  %113 = vmatpush1.msra.mxu0 %v70
  %114 = vmatprep.subr.mxu0 0.0
  %115 = vmatpush1.msra.mxu0 %v69
  %116 = vmatprep.subr.mxu0 0.0
  %117 = vmatpush1.msra.mxu0 %v68
  %118 = vmatprep.subr.mxu0 0.0
  %119 = vmatpush2.msra.mxu0 0.0
  %120 = vmatprep.subr.mxu0 0.0
  %121 = vmatpush2.msra.mxu0 0.0
  %122 = vmatprep.subr.mxu0 0.0
  %123 = vmatpush2.msra.mxu0 0.0
  %124 = vmatprep.subr.mxu0 0.0
  %125 = vmatpush2.msra.mxu0 0.0
  %126 = vmatprep.subr.mxu0 0.0
  %127 = vmatpush2.msra.mxu0 0.0
  %128 = vmatprep.subr.mxu0 0.0
  %129 = vmatpush2.msra.mxu0 0.0
  %130 = vmatprep.subr.mxu0 0.0
  %131 = vmatpush2.msra.mxu0 0.0
  %132 = vmatprep.subr.mxu0 0.0
  %133 = vmatpush2.msra.mxu0 0.0
  %134 = vmatprep.subr.mxu0 0.0
  %135 = vmatpush2.msra.mxu0 0.0
  %136 = vmatprep.subr.mxu0 0.0
  %137 = vmatpush2.msra.mxu0 0.0
  %138 = vmatprep.subr.mxu0 0.0
  %139 = vmatpush2.msra.mxu0 0.0
  %140 = vmatprep.subr.mxu0 0.0
  %141 = vmatpush2.msra.mxu0 0.0
  %142 = vmatprep.subr.mxu0 0.0
  %143 = vmatpush2.msra.mxu0 0.0
  %144 = vmatprep.subr.mxu0 0.0
  %145 = vmatpush2.msra.mxu0 0.0
  %146 = vmatprep.subr.mxu0 0.0
  %147 = vmatpush2.msra.mxu0 0.0
  %148 = vmatprep.subr.mxu0 0.0
  %149 = vmatpush2.msra.mxu0 0.0
  %150 = vmatprep.mubr.f32.mxu0 0.0
  %151 = vmatmul.mubr.f32.gmra.mxu0 %v81
  %v152 = vpop.f32.mrf.mxu0
  %v153 = vadd.f32 %v77, %v152
  %v154 = vpop.f32.mrf.mxu0
  %155 = vmatprep.mubr.f32.mxu0 0.0
  %156 = vmatmul.mubr.f32.gmra.mxu0 %v84
  %v157 = vpop.f32.mrf.mxu0
  %v158 = vadd.f32 %v77, %v157
  %v159 = vpop.f32.mrf.mxu0
  %160 = vdwg.mxu0
  %v161 = vadd.f32 %v153, %v64
  %v162 = vadd.f32 %v158, %v65
  %v163 = vld [vmem:[%s5] sm:$0x1]
  %v164 = vld [vmem:[%s6] sm:$0x1]
  %v165 = vsel %vm79, %v161, 0.0
  %166 = vadd.xlane.f32.xlu0 %v165
  %v167 = vpop.xlane.xlu0 %166
  %v168 = vsel %vm79, %v162, 0.0
  %169 = vadd.xlane.f32.xlu0 %v168
  %v170 = vpop.xlane.xlu0 %169
  %v171 = vrcp.pop 32.0
  %v172 = vmul.f32 %v167, %v171
  %v173 = vmul.f32 %v170, %v171
  %v174 = vsub.f32 %v161, %v172
  %v175 = vsub.f32 %v162, %v173
  %v176 = vmul.f32 %v174, %v174
  %v177 = vmul.f32 %v175, %v175
  %v178 = vsel %vm79, %v176, 0.0
  %179 = vadd.xlane.f32.xlu0 %v178
  %v180 = vpop.xlane.xlu0 %179
  %v181 = vsel %vm79, %v177, 0.0
  %182 = vadd.xlane.f32.xlu0 %v181
  %v183 = vpop.xlane.xlu0 %182
  %v184 = vmul.f32 %v180, %v171
  %v185 = vmul.f32 %v183, %v171
  %v186 = vadd.f32 %v184, 1e-12
  %v187 = vadd.f32 %v185, 1e-12
  %v188 = vrsqrt.pop %v186
  %v189 = vrsqrt.pop %v187
  %v190 = vmul.f32 %v174, %v188
  %v191 = vmul.f32 %v175, %v189
  %v193 = vlaneseq
  %v194 = vshrl.u32 %v193, 7
  %v195 = vsub.s32 0, %v194
  %v196 = vrot.slane %v163, %v195
  %v198 = vmul.f32 %v196, %v190
  %v199 = vmul.f32 %v196, %v191
  %v201 = vlaneseq
  %v202 = vshrl.u32 %v201, 7
  %v203 = vsub.s32 0, %v202
  %v204 = vrot.slane %v164, %v203
  %v206 = vadd.f32 %v198, %v204
  %v207 = vadd.f32 %v199, %v204
  %v208 = vld [vmem:[%s7] sm:$0xff]
  %v209 = vld [vmem:[%s7 + $0x8] sm:$0xff]
  %v210 = vld [vmem:[%s7 + $0x10] sm:$0xff]
  %v211 = vld [vmem:[%s7 + $0x18] sm:$0xff]
  %v212 = vld [vmem:[%s8] sm:$0x1]
  %v214 = vlaneseq
  %v215 = vshrl.u32 %v214, 7
  %v216 = vsub.s32 0, %v215
  %v217 = vrot.slane %v212, %v216
  %v220 = vsel %vm79, %v206, 0
  %v223 = vsel %vm79, %v207, 0
  %225 = vmatprep.subr.mxu0 0.0
  %226 = vmatpush1.msra.mxu0 0.0
  %227 = vmatprep.subr.mxu0 0.0
  %228 = vmatpush1.msra.mxu0 0.0
  %229 = vmatprep.subr.mxu0 0.0
  %230 = vmatpush1.msra.mxu0 0.0
  %231 = vmatprep.subr.mxu0 0.0
  %232 = vmatpush1.msra.mxu0 0.0
  %233 = vmatprep.subr.mxu0 0.0
  %234 = vmatpush1.msra.mxu0 0.0
  %235 = vmatprep.subr.mxu0 0.0
  %236 = vmatpush1.msra.mxu0 0.0
  %237 = vmatprep.subr.mxu0 0.0
  %238 = vmatpush1.msra.mxu0 0.0
  %239 = vmatprep.subr.mxu0 0.0
  %240 = vmatpush1.msra.mxu0 0.0
  %241 = vmatprep.subr.mxu0 0.0
  %242 = vmatpush1.msra.mxu0 0.0
  %243 = vmatprep.subr.mxu0 0.0
  %244 = vmatpush1.msra.mxu0 0.0
  %245 = vmatprep.subr.mxu0 0.0
  %246 = vmatpush1.msra.mxu0 0.0
  %247 = vmatprep.subr.mxu0 0.0
  %248 = vmatpush1.msra.mxu0 0.0
  %249 = vmatprep.subr.mxu0 0.0
  %250 = vmatpush1.msra.mxu0 %v211
  %251 = vmatprep.subr.mxu0 0.0
  %252 = vmatpush1.msra.mxu0 %v210
  %253 = vmatprep.subr.mxu0 0.0
  %254 = vmatpush1.msra.mxu0 %v209
  %255 = vmatprep.subr.mxu0 0.0
  %256 = vmatpush1.msra.mxu0 %v208
  %257 = vmatprep.subr.mxu0 0.0
  %258 = vmatpush2.msra.mxu0 0.0
  %259 = vmatprep.subr.mxu0 0.0
  %260 = vmatpush2.msra.mxu0 0.0
  %261 = vmatprep.subr.mxu0 0.0
  %262 = vmatpush2.msra.mxu0 0.0
  %263 = vmatprep.subr.mxu0 0.0
  %264 = vmatpush2.msra.mxu0 0.0
  %265 = vmatprep.subr.mxu0 0.0
  %266 = vmatpush2.msra.mxu0 0.0
  %267 = vmatprep.subr.mxu0 0.0
  %268 = vmatpush2.msra.mxu0 0.0
  %269 = vmatprep.subr.mxu0 0.0
  %270 = vmatpush2.msra.mxu0 0.0
  %271 = vmatprep.subr.mxu0 0.0
  %272 = vmatpush2.msra.mxu0 0.0
  %273 = vmatprep.subr.mxu0 0.0
  %274 = vmatpush2.msra.mxu0 0.0
  %275 = vmatprep.subr.mxu0 0.0
  %276 = vmatpush2.msra.mxu0 0.0
  %277 = vmatprep.subr.mxu0 0.0
  %278 = vmatpush2.msra.mxu0 0.0
  %279 = vmatprep.subr.mxu0 0.0
  %280 = vmatpush2.msra.mxu0 0.0
  %281 = vmatprep.subr.mxu0 0.0
  %282 = vmatpush2.msra.mxu0 0.0
  %283 = vmatprep.subr.mxu0 0.0
  %284 = vmatpush2.msra.mxu0 0.0
  %285 = vmatprep.subr.mxu0 0.0
  %286 = vmatpush2.msra.mxu0 0.0
  %287 = vmatprep.subr.mxu0 0.0
  %288 = vmatpush2.msra.mxu0 0.0
  %289 = vmatprep.mubr.f32.mxu0 0.0
  %290 = vmatmul.mubr.f32.gmra.mxu0 %v220
  %v291 = vpop.f32.mrf.mxu0
  %v292 = vadd.f32 %v217, %v291
  %v293 = vpop.f32.mrf.mxu0
  %294 = vmatprep.mubr.f32.mxu0 0.0
  %295 = vmatmul.mubr.f32.gmra.mxu0 %v223
  %v296 = vpop.f32.mrf.mxu0
  %v297 = vadd.f32 %v217, %v296
  %v298 = vpop.f32.mrf.mxu0
  %299 = vdwg.mxu0
  %v300 = vmul.f32 %v292, 0.5
  %v301 = vmul.f32 %v297, 0.5
  %v302 = vrcp.pop 1.41421
  %v303 = vmul.f32 %v292, %v302
  %v304 = vmul.f32 %v297, %v302
  %v305 = verf.f32.pop %v303
  %v306 = verf.f32.pop %v304
  %v307 = vadd.f32 %v305, 1.0
  %v308 = vadd.f32 %v306, 1.0
  %v309 = vmul.f32 %v300, %v307
  %v310 = vmul.f32 %v301, %v308
  %v311 = vld [vmem:[%s9] sm:$0xff]
  %v312 = vld [vmem:[%s9 + $0x8] sm:$0xff]
  %v313 = vld [vmem:[%s9 + $0x10] sm:$0xff]
  %v314 = vld [vmem:[%s9 + $0x18] sm:$0xff]
  %v315 = vld [vmem:[%s9 + $0x20] sm:$0xff]
  %v316 = vld [vmem:[%s9 + $0x28] sm:$0xff]
  %v317 = vld [vmem:[%s9 + $0x30] sm:$0xff]
  %v318 = vld [vmem:[%s9 + $0x38] sm:$0xff]
  %v319 = vld [vmem:[%s9 + $0x40] sm:$0xff]
  %v320 = vld [vmem:[%s9 + $0x48] sm:$0xff]
  %v321 = vld [vmem:[%s9 + $0x50] sm:$0xff]
  %v322 = vld [vmem:[%s9 + $0x58] sm:$0xff]
  %v323 = vld [vmem:[%s9 + $0x60] sm:$0xff]
  %v324 = vld [vmem:[%s9 + $0x68] sm:$0xff]
  %v325 = vld [vmem:[%s9 + $0x70] sm:$0xff]
  %v326 = vld [vmem:[%s9 + $0x78] sm:$0xff]
  %v327 = vld [vmem:[%s10] sm:$0x1]
  %v329 = vlaneseq
  %v330 = vshrl.u32 %v329, 7
  %v331 = vsub.s32 0, %v330
  %v332 = vrot.slane %v327, %v331
  %334 = vmatprep.subr.mxu0 0.0
  %335 = vmatpush1.msra.mxu0 %v326
  %336 = vmatprep.subr.mxu0 0.0
  %337 = vmatpush1.msra.mxu0 %v325
  %338 = vmatprep.subr.mxu0 0.0
  %339 = vmatpush1.msra.mxu0 %v324
  %340 = vmatprep.subr.mxu0 0.0
  %341 = vmatpush1.msra.mxu0 %v323
  %342 = vmatprep.subr.mxu0 0.0
  %343 = vmatpush1.msra.mxu0 %v322
  %344 = vmatprep.subr.mxu0 0.0
  %345 = vmatpush1.msra.mxu0 %v321
  %346 = vmatprep.subr.mxu0 0.0
  %347 = vmatpush1.msra.mxu0 %v320
  %348 = vmatprep.subr.mxu0 0.0
  %349 = vmatpush1.msra.mxu0 %v319
  %350 = vmatprep.subr.mxu0 0.0
  %351 = vmatpush1.msra.mxu0 %v318
  %352 = vmatprep.subr.mxu0 0.0
  %353 = vmatpush1.msra.mxu0 %v317
  %354 = vmatprep.subr.mxu0 0.0
  %355 = vmatpush1.msra.mxu0 %v316
  %356 = vmatprep.subr.mxu0 0.0
  %357 = vmatpush1.msra.mxu0 %v315
  %358 = vmatprep.subr.mxu0 0.0
  %359 = vmatpush1.msra.mxu0 %v314
  %360 = vmatprep.subr.mxu0 0.0
  %361 = vmatpush1.msra.mxu0 %v313
  %362 = vmatprep.subr.mxu0 0.0
  %363 = vmatpush1.msra.mxu0 %v312
  %364 = vmatprep.subr.mxu0 0.0
  %365 = vmatpush1.msra.mxu0 %v311
  %366 = vmatprep.subr.mxu0 0.0
  %367 = vmatpush2.msra.mxu0 0.0
  %368 = vmatprep.subr.mxu0 0.0
  %369 = vmatpush2.msra.mxu0 0.0
  %370 = vmatprep.subr.mxu0 0.0
  %371 = vmatpush2.msra.mxu0 0.0
  %372 = vmatprep.subr.mxu0 0.0
  %373 = vmatpush2.msra.mxu0 0.0
  %374 = vmatprep.subr.mxu0 0.0
  %375 = vmatpush2.msra.mxu0 0.0
  %376 = vmatprep.subr.mxu0 0.0
  %377 = vmatpush2.msra.mxu0 0.0
  %378 = vmatprep.subr.mxu0 0.0
  %379 = vmatpush2.msra.mxu0 0.0
  %380 = vmatprep.subr.mxu0 0.0
  %381 = vmatpush2.msra.mxu0 0.0
  %382 = vmatprep.subr.mxu0 0.0
  %383 = vmatpush2.msra.mxu0 0.0
  %384 = vmatprep.subr.mxu0 0.0
  %385 = vmatpush2.msra.mxu0 0.0
  %386 = vmatprep.subr.mxu0 0.0
  %387 = vmatpush2.msra.mxu0 0.0
  %388 = vmatprep.subr.mxu0 0.0
  %389 = vmatpush2.msra.mxu0 0.0
  %390 = vmatprep.subr.mxu0 0.0
  %391 = vmatpush2.msra.mxu0 0.0
  %392 = vmatprep.subr.mxu0 0.0
  %393 = vmatpush2.msra.mxu0 0.0
  %394 = vmatprep.subr.mxu0 0.0
  %395 = vmatpush2.msra.mxu0 0.0
  %396 = vmatprep.subr.mxu0 0.0
  %397 = vmatpush2.msra.mxu0 0.0
  %398 = vmatprep.mubr.f32.mxu0 0.0
  %399 = vmatmul.mubr.f32.gmra.mxu0 %v309
  %v400 = vpop.f32.mrf.mxu0
  %v401 = vadd.f32 %v332, %v400
  %v402 = vpop.f32.mrf.mxu0
  %403 = vmatprep.mubr.f32.mxu0 0.0
  %404 = vmatmul.mubr.f32.gmra.mxu0 %v310
  %v405 = vpop.f32.mrf.mxu0
  %v406 = vadd.f32 %v332, %v405
  %v407 = vpop.f32.mrf.mxu0
  %408 = vdwg.mxu0
  %v409 = vadd.f32 %v401, %v206
  %v410 = vadd.f32 %v406, %v207
  %v411 = vld [vmem:[%s11] sm:$0x1]
  %v412 = vld [vmem:[%s12] sm:$0x1]
  %v413 = vsel %vm79, %v409, 0.0
  %414 = vadd.xlane.f32.xlu0 %v413
  %v415 = vpop.xlane.xlu0 %414
  %v416 = vsel %vm79, %v410, 0.0
  %417 = vadd.xlane.f32.xlu0 %v416
  %v418 = vpop.xlane.xlu0 %417
  %v419 = vmul.f32 %v415, %v171
  %v420 = vmul.f32 %v418, %v171
  %v421 = vsub.f32 %v409, %v419
  %v422 = vsub.f32 %v410, %v420
  %v423 = vmul.f32 %v421, %v421
  %v424 = vmul.f32 %v422, %v422
  %v425 = vsel %vm79, %v423, 0.0
  %426 = vadd.xlane.f32.xlu0 %v425
  %v427 = vpop.xlane.xlu0 %426
  %v428 = vsel %vm79, %v424, 0.0
  %429 = vadd.xlane.f32.xlu0 %v428
  %v430 = vpop.xlane.xlu0 %429
  %v431 = vmul.f32 %v427, %v171
  %v432 = vmul.f32 %v430, %v171
  %v433 = vadd.f32 %v431, 1e-12
  %v434 = vadd.f32 %v432, 1e-12
  %v435 = vrsqrt.pop %v433
  %v436 = vrsqrt.pop %v434
  %v437 = vmul.f32 %v421, %v435
  %v438 = vmul.f32 %v422, %v436
  %v440 = vlaneseq
  %v441 = vshrl.u32 %v440, 7
  %v442 = vsub.s32 0, %v441
  %v443 = vrot.slane %v411, %v442
  %v445 = vmul.f32 %v443, %v437
  %v446 = vmul.f32 %v443, %v438
  %v448 = vlaneseq
  %v449 = vshrl.u32 %v448, 7
  %v450 = vsub.s32 0, %v449
  %v451 = vrot.slane %v412, %v450
  %v453 = vadd.f32 %v445, %v451
  %v454 = vadd.f32 %v446, %v451
  %v455 = vld [vmem:[%s2] sm:$0xff]
  %v456 = vld [vmem:[%s2 + $0x8] sm:$0xff]
  %v457 = vld [vmem:[%s13] sm:$0xff]
  %v458 = vld [vmem:[%s13 + $0x8] sm:$0xff]
  %v459 = vld [vmem:[%s13 + $0x10] sm:$0xff]
  %v460 = vld [vmem:[%s13 + $0x18] sm:$0xff]
  %v461 = vld [vmem:[%s15] sm:$0x1]
  %v463 = vlaneseq
  %v464 = vshrl.u32 %v463, 7
  %v465 = vsub.s32 0, %v464
  %v466 = vrot.slane %v461, %v465
  %v469 = vsel %vm79, %v453, 0
  %v472 = vsel %vm79, %v454, 0
  %474 = vmatprep.subr.mxu0 0.0
  %475 = vmatpush1.msra.mxu0 0.0
  %476 = vmatprep.subr.mxu0 0.0
  %477 = vmatpush1.msra.mxu0 0.0
  %478 = vmatprep.subr.mxu0 0.0
  %479 = vmatpush1.msra.mxu0 0.0
  %480 = vmatprep.subr.mxu0 0.0
  %481 = vmatpush1.msra.mxu0 0.0
  %482 = vmatprep.subr.mxu0 0.0
  %483 = vmatpush1.msra.mxu0 0.0
  %484 = vmatprep.subr.mxu0 0.0
  %485 = vmatpush1.msra.mxu0 0.0
  %486 = vmatprep.subr.mxu0 0.0
  %487 = vmatpush1.msra.mxu0 0.0
  %488 = vmatprep.subr.mxu0 0.0
  %489 = vmatpush1.msra.mxu0 0.0
  %490 = vmatprep.subr.mxu0 0.0
  %491 = vmatpush1.msra.mxu0 0.0
  %492 = vmatprep.subr.mxu0 0.0
  %493 = vmatpush1.msra.mxu0 0.0
  %494 = vmatprep.subr.mxu0 0.0
  %495 = vmatpush1.msra.mxu0 0.0
  %496 = vmatprep.subr.mxu0 0.0
  %497 = vmatpush1.msra.mxu0 0.0
  %498 = vmatprep.subr.mxu0 0.0
  %499 = vmatpush1.msra.mxu0 %v460
  %500 = vmatprep.subr.mxu0 0.0
  %501 = vmatpush1.msra.mxu0 %v459
  %502 = vmatprep.subr.mxu0 0.0
  %503 = vmatpush1.msra.mxu0 %v458
  %504 = vmatprep.subr.mxu0 0.0
  %505 = vmatpush1.msra.mxu0 %v457
  %506 = vmatprep.subr.mxu0 0.0
  %507 = vmatpush2.msra.mxu0 0.0
  %508 = vmatprep.subr.mxu0 0.0
  %509 = vmatpush2.msra.mxu0 0.0
  %510 = vmatprep.subr.mxu0 0.0
  %511 = vmatpush2.msra.mxu0 0.0
  %512 = vmatprep.subr.mxu0 0.0
  %513 = vmatpush2.msra.mxu0 0.0
  %514 = vmatprep.subr.mxu0 0.0
  %515 = vmatpush2.msra.mxu0 0.0
  %516 = vmatprep.subr.mxu0 0.0
  %517 = vmatpush2.msra.mxu0 0.0
  %518 = vmatprep.subr.mxu0 0.0
  %519 = vmatpush2.msra.mxu0 0.0
  %520 = vmatprep.subr.mxu0 0.0
  %521 = vmatpush2.msra.mxu0 0.0
  %522 = vmatprep.subr.mxu0 0.0
  %523 = vmatpush2.msra.mxu0 0.0
  %524 = vmatprep.subr.mxu0 0.0
  %525 = vmatpush2.msra.mxu0 0.0
  %526 = vmatprep.subr.mxu0 0.0
  %527 = vmatpush2.msra.mxu0 0.0
  %528 = vmatprep.subr.mxu0 0.0
  %529 = vmatpush2.msra.mxu0 0.0
  %530 = vmatprep.subr.mxu0 0.0
  %531 = vmatpush2.msra.mxu0 0.0
  %532 = vmatprep.subr.mxu0 0.0
  %533 = vmatpush2.msra.mxu0 0.0
  %534 = vmatprep.subr.mxu0 0.0
  %535 = vmatpush2.msra.mxu0 0.0
  %536 = vmatprep.subr.mxu0 0.0
  %537 = vmatpush2.msra.mxu0 0.0
  %538 = vmatprep.mubr.f32.mxu0 0.0
  %539 = vmatmul.mubr.f32.gmra.mxu0 %v469
  %v540 = vpop.f32.mrf.mxu0
  %v541 = vadd.f32 %v466, %v540
  %v542 = vpop.f32.mrf.mxu0
  %543 = vmatprep.mubr.f32.mxu0 0.0
  %544 = vmatmul.mubr.f32.gmra.mxu0 %v472
  %v545 = vpop.f32.mrf.mxu0
  %v546 = vadd.f32 %v466, %v545
  %v547 = vpop.f32.mrf.mxu0
  %548 = vdwg.mxu0
  %v549 = vld [vmem:[%s14] sm:$0xff]
  %v550 = vld [vmem:[%s14 + $0x8] sm:$0xff]
  %v551 = vld [vmem:[%s14 + $0x10] sm:$0xff]
  %v552 = vld [vmem:[%s14 + $0x18] sm:$0xff]
  %v553 = vld [vmem:[%s16] sm:$0x1]
  %v555 = vlaneseq
  %v556 = vshrl.u32 %v555, 7
  %v557 = vsub.s32 0, %v556
  %v558 = vrot.slane %v553, %v557
  %v561 = vsel %vm79, %v455, 0
  %v564 = vsel %vm79, %v456, 0
  %566 = vmatprep.subr.mxu0 0.0
  %567 = vmatpush1.msra.mxu0 0.0
  %568 = vmatprep.subr.mxu0 0.0
  %569 = vmatpush1.msra.mxu0 0.0
  %570 = vmatprep.subr.mxu0 0.0
  %571 = vmatpush1.msra.mxu0 0.0
  %572 = vmatprep.subr.mxu0 0.0
  %573 = vmatpush1.msra.mxu0 0.0
  %574 = vmatprep.subr.mxu0 0.0
  %575 = vmatpush1.msra.mxu0 0.0
  %576 = vmatprep.subr.mxu0 0.0
  %577 = vmatpush1.msra.mxu0 0.0
  %578 = vmatprep.subr.mxu0 0.0
  %579 = vmatpush1.msra.mxu0 0.0
  %580 = vmatprep.subr.mxu0 0.0
  %581 = vmatpush1.msra.mxu0 0.0
  %582 = vmatprep.subr.mxu0 0.0
  %583 = vmatpush1.msra.mxu0 0.0
  %584 = vmatprep.subr.mxu0 0.0
  %585 = vmatpush1.msra.mxu0 0.0
  %586 = vmatprep.subr.mxu0 0.0
  %587 = vmatpush1.msra.mxu0 0.0
  %588 = vmatprep.subr.mxu0 0.0
  %589 = vmatpush1.msra.mxu0 0.0
  %590 = vmatprep.subr.mxu0 0.0
  %591 = vmatpush1.msra.mxu0 %v552
  %592 = vmatprep.subr.mxu0 0.0
  %593 = vmatpush1.msra.mxu0 %v551
  %594 = vmatprep.subr.mxu0 0.0
  %595 = vmatpush1.msra.mxu0 %v550
  %596 = vmatprep.subr.mxu0 0.0
  %597 = vmatpush1.msra.mxu0 %v549
  %598 = vmatprep.subr.mxu0 0.0
  %599 = vmatpush2.msra.mxu0 0.0
  %600 = vmatprep.subr.mxu0 0.0
  %601 = vmatpush2.msra.mxu0 0.0
  %602 = vmatprep.subr.mxu0 0.0
  %603 = vmatpush2.msra.mxu0 0.0
  %604 = vmatprep.subr.mxu0 0.0
  %605 = vmatpush2.msra.mxu0 0.0
  %606 = vmatprep.subr.mxu0 0.0
  %607 = vmatpush2.msra.mxu0 0.0
  %608 = vmatprep.subr.mxu0 0.0
  %609 = vmatpush2.msra.mxu0 0.0
  %610 = vmatprep.subr.mxu0 0.0
  %611 = vmatpush2.msra.mxu0 0.0
  %612 = vmatprep.subr.mxu0 0.0
  %613 = vmatpush2.msra.mxu0 0.0
  %614 = vmatprep.subr.mxu0 0.0
  %615 = vmatpush2.msra.mxu0 0.0
  %616 = vmatprep.subr.mxu0 0.0
  %617 = vmatpush2.msra.mxu0 0.0
  %618 = vmatprep.subr.mxu0 0.0
  %619 = vmatpush2.msra.mxu0 0.0
  %620 = vmatprep.subr.mxu0 0.0
  %621 = vmatpush2.msra.mxu0 0.0
  %622 = vmatprep.subr.mxu0 0.0
  %623 = vmatpush2.msra.mxu0 0.0
  %624 = vmatprep.subr.mxu0 0.0
  %625 = vmatpush2.msra.mxu0 0.0
  %626 = vmatprep.subr.mxu0 0.0
  %627 = vmatpush2.msra.mxu0 0.0
  %628 = vmatprep.subr.mxu0 0.0
  %629 = vmatpush2.msra.mxu0 0.0
  %630 = vmatprep.mubr.f32.mxu0 0.0
  %631 = vmatmul.mubr.f32.gmra.mxu0 %v561
  %v632 = vpop.f32.mrf.mxu0
  %v633 = vadd.f32 %v558, %v632
  %v634 = vpop.f32.mrf.mxu0
  %635 = vmatprep.mubr.f32.mxu0 0.0
  %636 = vmatmul.mubr.f32.gmra.mxu0 %v564
  %v637 = vpop.f32.mrf.mxu0
  %v638 = vadd.f32 %v558, %v637
  %v639 = vpop.f32.mrf.mxu0
  %640 = vdwg.mxu0
  %v641 = vadd.f32 %v541, %v633
  %v642 = vadd.f32 %v546, %v638
  %v643 = vxor.u32 %v641, 2147483648
  %v644 = vxor.u32 %v642, 2147483648
  %v645 = vmul.f32 %v643, 1.442695
  %v646 = vpow.pop %v645
  %v647 = vmul.f32 %v644, 1.442695
  %v648 = vpow.pop %v647
  %v649 = vadd.f32 %v646, 1.0
  %v650 = vadd.f32 %v648, 1.0
  %v651 = vrcp.pop %v649
  %v652 = vmul.f32 1.0, %v651
  %v653 = vrcp.pop %v650
  %v654 = vmul.f32 1.0, %v653
  %657 = vrot.lane.b32.xlu0 %v633, 64
  %v658 = vpop.permute.xlu0 %657
  %659 = vrot.lane.b32.xlu0 %v638, 64
  %v660 = vpop.permute.xlu0 %659
  %v663 = vmul.f32 %v652, %v658
  %v664 = vmul.f32 %v654, %v660
  %667 = vrot.lane.b32.xlu0 %v663, 64
  %v668 = vpop.permute.xlu0 %667
  %669 = vrot.lane.b32.xlu0 %v664, 64
  %v670 = vpop.permute.xlu0 %669
  %v673 = vadd.f32 %v541, %v668
  %v674 = vadd.f32 %v546, %v670
  %v675 = vtanh.pop %v673
  %v676 = vtanh.pop %v674
  %v677 = vsub.f32 1.0, %v652
  %v678 = vsub.f32 1.0, %v654
  %681 = vrot.lane.b32.xlu0 %v675, 96
  %v682 = vpop.permute.xlu0 %681
  %683 = vrot.lane.b32.xlu0 %v676, 96
  %v684 = vpop.permute.xlu0 %683
  %v687 = vmul.f32 %v677, %v682
  %v688 = vmul.f32 %v678, %v684
  %689 = vrot.lane.b32.xlu0 %v455, 32
  %v690 = vpop.permute.xlu0 %689
  %691 = vrot.lane.b32.xlu0 %v456, 32
  %v692 = vpop.permute.xlu0 %691
  %v695 = vmul.f32 %v652, %v690
  %v696 = vmul.f32 %v654, %v692
  %v697 = vadd.f32 %v687, %v695
  %v698 = vadd.f32 %v688, %v696
  %701 = vrot.lane.b32.xlu0 %v697, 96
  %v702 = vpop.permute.xlu0 %701
  %703 = vrot.lane.b32.xlu0 %v698, 96
  %v704 = vpop.permute.xlu0 %703
  %707 = vst.msk [vmem:[%s19] sm:$0xff] %vm79, %v702
  %708 = vst.msk [vmem:[%s19 + $0x8] sm:$0xff] %vm79, %v704
  %v709 = vld [vmem:[%s17] sm:$0x1]
  %v710 = vld [vmem:[%s18] sm:$0x1]
  %v711 = vsel %vm79, %v702, 0.0
  %712 = vadd.xlane.f32.xlu0 %v711
  %v713 = vpop.xlane.xlu0 %712
  %v714 = vsel %vm79, %v704, 0.0
  %715 = vadd.xlane.f32.xlu0 %v714
  %v716 = vpop.xlane.xlu0 %715
  %v717 = vmul.f32 %v713, %v171
  %v718 = vmul.f32 %v716, %v171
  %v719 = vsub.f32 %v697, %v717
  %v720 = vsub.f32 %v698, %v718
  %v721 = vmul.f32 %v719, %v719
  %v722 = vmul.f32 %v720, %v720
  %725 = vrot.lane.b32.xlu0 %v721, 96
  %v726 = vpop.permute.xlu0 %725
  %727 = vrot.lane.b32.xlu0 %v722, 96
  %v728 = vpop.permute.xlu0 %727
  %v731 = vsel %vm79, %v726, 0.0
  %732 = vadd.xlane.f32.xlu0 %v731
  %v733 = vpop.xlane.xlu0 %732
  %v734 = vsel %vm79, %v728, 0.0
  %735 = vadd.xlane.f32.xlu0 %v734
  %v736 = vpop.xlane.xlu0 %735
  %v737 = vmul.f32 %v733, %v171
  %v738 = vmul.f32 %v736, %v171
  %v739 = vadd.f32 %v737, 1e-12
  %v740 = vadd.f32 %v738, 1e-12
  %v741 = vrsqrt.pop %v739
  %v742 = vrsqrt.pop %v740
  %v743 = vmul.f32 %v719, %v741
  %v744 = vmul.f32 %v720, %v742
  %v746 = vlaneseq
  %v747 = vshrl.u32 %v746, 7
  %v748 = vsub.s32 0, %v747
  %v749 = vrot.slane %v709, %v748
  %753 = vrot.lane.b32.xlu0 %v743, 96
  %v754 = vpop.permute.xlu0 %753
  %755 = vrot.lane.b32.xlu0 %v744, 96
  %v756 = vpop.permute.xlu0 %755
  %v759 = vmul.f32 %v749, %v754
  %v760 = vmul.f32 %v749, %v756
  %v762 = vlaneseq
  %v763 = vshrl.u32 %v762, 7
  %v764 = vsub.s32 0, %v763
  %v765 = vrot.slane %v710, %v764
  %v767 = vadd.f32 %v759, %v765
  %v768 = vadd.f32 %v760, %v765
  %769 = vst.msk [vmem:[%s20] sm:$0xff] %vm79, %v767
  %770 = vst.msk [vmem:[%s20 + $0x8] sm:$0xff] %vm79, %v768
  // Predicated region
  $region78: #{molgt_graphpred_forward.10} parent=0 // pred_check
    _
  $region79: #{molgt_graphpred_forward.10} parent=0 // pred_check_branch
    %772 = sbr.rel (0) target = $region81
  $region80: #{molgt_graphpred_forward.10} parent=0 // pred_region
    _
  $region81: #{molgt_graphpred_forward.10} parent=0 // pred_fallthru
    _
  // Predicated region
  $region82: #{molgt_graphpred_forward.10} parent=0 // pred_check
    _
  $region83: #{molgt_graphpred_forward.10} parent=0 // pred_check_branch
    %774 = sbr.rel (0) target = $region85
  $region84: #{molgt_graphpred_forward.10} parent=0 // pred_region
    _
  $region85: #{molgt_graphpred_forward.10} parent=0 // pred_fallthru
    _
  // Predicated region
  $region86: #{molgt_graphpred_forward.10} parent=0 // pred_check
    _
  $region87: #{molgt_graphpred_forward.10} parent=0 // pred_check_branch
    %776 = sbr.rel (0) target = $region89
  $region88: #{molgt_graphpred_forward.10} parent=0 // pred_region
    _
  $region89: #{molgt_graphpred_forward.10} parent=0 // pred_fallthru
    _
  // Predicated region
  $region90: #{molgt_graphpred_forward.10} parent=0 // pred_check
    _
  $region91: #{molgt_graphpred_forward.10} parent=0 // pred_check_branch
    %778 = sbr.rel (0) target = $region93
  $region92: #{molgt_graphpred_forward.10} parent=0 // pred_region
    _
  $region93: #{molgt_graphpred_forward.10} parent=0 // pred_fallthru
    _

// kernel: molgt_graphpred_forward.17
$region0: #{molgt_graphpred_forward.17}
  #allocation0 [shape = 'u32[]', space=smem, size = 0x4, offset = 0x4, fixed_abs, tag = 'smem constant byte address 0x4 - core index']
  #allocation1 [shape = 'u32[144,128]{1,0:T(1,128)}', space=vmem, size = 0x12000, scoped, tag = 'internal scratch']
  %s0 = inlined_call_operand.vmem [shape: f32[2,32], index: 0, kind: input, shape index: {}]
  %s1 = inlined_call_operand.vmem [shape: f32[32,3], index: 1, kind: input, shape index: {}]
  %s2 = inlined_call_operand.vmem [shape: f32[1,3], index: 2, kind: input, shape index: {}]
  %s3 = inlined_call_operand.hbm [shape: f32[2,3], index: 3, kind: output, shape index: {}]
  %s4 = sld [smem:[#allocation0]]
  $region22: #{molgt_graphpred_forward.17} parent=0
    _
  %s6 = ssub.s32 1, %s4
  %s7 = scalar_select 0, %s6, %s4
  $region1: #{molgt_graphpred_forward.17} parent=0
    #allocation2 [shape = 'u8[1024]{0}', space=vmem, size = 0x400, scoped, tag = 'output window, operand 0, single buffered']
    #allocation3 [shape = 's32[1]{0}', space=sflag, size = 0x4, scoped, tag = 'scoped memory for molgt_graphpred_forward.17']
    %8 = vsyncpa [#allocation3], 0
    // Predicated region
    $region2: #{molgt_graphpred_forward.17} parent=1 // pred_check
      _
    $region3: #{molgt_graphpred_forward.17} parent=1 // pred_check_branch
      %10 = sbr.rel (0) target = $region5
    $region4: #{molgt_graphpred_forward.17} parent=1 // pred_region
      _
    $region5: #{molgt_graphpred_forward.17} parent=1 // pred_fallthru
      _
    // Predicated region
    $region6: #{molgt_graphpred_forward.17} parent=1 // pred_check
      _
    $region7: #{molgt_graphpred_forward.17} parent=1 // pred_check_branch
      %12 = sbr.rel (0) target = $region9
    $region8: #{molgt_graphpred_forward.17} parent=1 // pred_region
      _
    $region9: #{molgt_graphpred_forward.17} parent=1 // pred_fallthru
      _
    // Predicated region
    $region10: #{molgt_graphpred_forward.17} parent=1 // pred_check
      _
    $region11: #{molgt_graphpred_forward.17} parent=1 // pred_check_branch
      %14 = sbr.rel (0) target = $region13
    $region12: #{molgt_graphpred_forward.17} parent=1 // pred_region
      _
    $region13: #{molgt_graphpred_forward.17} parent=1 // pred_fallthru
      _
    %v15 = vld [vmem:[%s0] sm:$0x3]
    %v16 = vld [vmem:[%s1] sm:$0xff]
    %v17 = vld [vmem:[%s1 + $0x8] sm:$0xff]
    %v18 = vld [vmem:[%s1 + $0x10] sm:$0xff]
    %v19 = vld [vmem:[%s1 + $0x18] sm:$0xff]
    %v20 = vld [vmem:[%s2] sm:$0x1]
    %v22 = vlaneseq
    %v23 = vshrl.u32 %v22, 7
    %v24 = vsub.s32 0, %v23
    %v25 = vrot.slane %v20, %v24
    %vm27 = vcmask 261120
    %v29 = vsel %vm27, %v15, 0
    %31 = vmatprep.subr.mxu0 0.0
    %32 = vmatpush1.msra.mxu0 0.0
    %33 = vmatprep.subr.mxu0 0.0
    %34 = vmatpush1.msra.mxu0 0.0
    %35 = vmatprep.subr.mxu0 0.0
    %36 = vmatpush1.msra.mxu0 0.0
    %37 = vmatprep.subr.mxu0 0.0
    %38 = vmatpush1.msra.mxu0 0.0
    %39 = vmatprep.subr.mxu0 0.0
    %40 = vmatpush1.msra.mxu0 0.0
    %41 = vmatprep.subr.mxu0 0.0
    %42 = vmatpush1.msra.mxu0 0.0
    %43 = vmatprep.subr.mxu0 0.0
    %44 = vmatpush1.msra.mxu0 0.0
    %45 = vmatprep.subr.mxu0 0.0
    %46 = vmatpush1.msra.mxu0 0.0
    %47 = vmatprep.subr.mxu0 0.0
    %48 = vmatpush1.msra.mxu0 0.0
    %49 = vmatprep.subr.mxu0 0.0
    %50 = vmatpush1.msra.mxu0 0.0
    %51 = vmatprep.subr.mxu0 0.0
    %52 = vmatpush1.msra.mxu0 0.0
    %53 = vmatprep.subr.mxu0 0.0
    %54 = vmatpush1.msra.mxu0 0.0
    %55 = vmatprep.subr.mxu0 0.0
    %56 = vmatpush1.msra.mxu0 %v19
    %57 = vmatprep.subr.mxu0 0.0
    %58 = vmatpush1.msra.mxu0 %v18
    %59 = vmatprep.subr.mxu0 0.0
    %60 = vmatpush1.msra.mxu0 %v17
    %61 = vmatprep.subr.mxu0 0.0
    %62 = vmatpush1.msra.mxu0 %v16
    %63 = vmatprep.subr.mxu0 0.0
    %64 = vmatpush2.msra.mxu0 0.0
    %65 = vmatprep.subr.mxu0 0.0
    %66 = vmatpush2.msra.mxu0 0.0
    %67 = vmatprep.subr.mxu0 0.0
    %68 = vmatpush2.msra.mxu0 0.0
    %69 = vmatprep.subr.mxu0 0.0
    %70 = vmatpush2.msra.mxu0 0.0
    %71 = vmatprep.subr.mxu0 0.0
    %72 = vmatpush2.msra.mxu0 0.0
    %73 = vmatprep.subr.mxu0 0.0
    %74 = vmatpush2.msra.mxu0 0.0
    %75 = vmatprep.subr.mxu0 0.0
    %76 = vmatpush2.msra.mxu0 0.0
    %77 = vmatprep.subr.mxu0 0.0
    %78 = vmatpush2.msra.mxu0 0.0
    %79 = vmatprep.subr.mxu0 0.0
    %80 = vmatpush2.msra.mxu0 0.0
    %81 = vmatprep.subr.mxu0 0.0
    %82 = vmatpush2.msra.mxu0 0.0
    %83 = vmatprep.subr.mxu0 0.0
    %84 = vmatpush2.msra.mxu0 0.0
    %85 = vmatprep.subr.mxu0 0.0
    %86 = vmatpush2.msra.mxu0 0.0
    %87 = vmatprep.subr.mxu0 0.0
    %88 = vmatpush2.msra.mxu0 0.0
    %89 = vmatprep.subr.mxu0 0.0
    %90 = vmatpush2.msra.mxu0 0.0
    %91 = vmatprep.subr.mxu0 0.0
    %92 = vmatpush2.msra.mxu0 0.0
    %93 = vmatprep.subr.mxu0 0.0
    %94 = vmatpush2.msra.mxu0 0.0
    %95 = vmatprep.mubr.f32.mxu0 0.0
    %96 = vmatmul.mubr.f32.gmra.mxu0 %v29
    %v97 = vpop.f32.mrf.mxu0
    %v98 = vadd.f32 %v25, %v97
    %v99 = vpop.f32.mrf.mxu0
    %100 = vdwg.mxu0
    %vm101 = vcmask 17408
    %102 = vst.msk [vmem:[#allocation2] sm:$0x3] %vm101, %v98
    // Predicated region
    $region14: #{molgt_graphpred_forward.17} parent=1 // pred_check
      _
    $region15: #{molgt_graphpred_forward.17} parent=1 // pred_check_branch
      %104 = sbr.rel (0) target = $region17
    $region16: #{molgt_graphpred_forward.17} parent=1 // pred_region
      %s106 = ssub.s32 32, 32
      %107 = vsyncadd [#allocation3], %s106
      %s109 = sshll.u32 [#allocation2], 4
      %s110 = int_to_ptr.vmem [resolvable:$true] %s109
      %112 = dma.vmem_to_hbm [thread:$0]  %s110, 32, %s3, [#allocation3]
    $region17: #{molgt_graphpred_forward.17} parent=1 // pred_fallthru
      _
    // Predicated region
    $region18: #{molgt_graphpred_forward.17} parent=1 // pred_check
      _
    $region19: #{molgt_graphpred_forward.17} parent=1 // pred_check_branch
      %114 = sbr.rel (0) target = $region21
    $region20: #{molgt_graphpred_forward.17} parent=1 // pred_region
      %115 = dma.done [#allocation3], 32
    $region21: #{molgt_graphpred_forward.17} parent=1 // pred_fallthru
      _
    %116 = vsyncpa [#allocation3], 1

</llo_original>
